<compile_context>
chip_gen: v7x
topology: tpu7x:2x2x1
jax: 0.10.0
libtpu: 0.0.40
codegen_flags: <defaults>
</compile_context>

<pallas_src>
import jax
import jax.numpy as jnp
from jax.experimental import pallas as pl
from jax.experimental.pallas import tpu as pltpu

_SQRT2 = 1.4142135623730951
LANE = 128


def _round_up(n, m):
    return ((n + m - 1) // m) * m


def _gelu(x):
    # exact GELU (matches torch.nn.GELU default), kept in f32
    return 0.5 * x * (1.0 + jax.lax.erf(x / _SQRT2))


def _masked_layer_norm(s, gamma, beta, c_true, eps=1e-5):
    """LayerNorm over the first c_true lanes of s (padded lanes of s are 0)."""
    inv_c = 1.0 / float(c_true)
    mean = jnp.sum(s, axis=-1, keepdims=True) * inv_c
    mask = jax.lax.broadcasted_iota(jnp.int32, s.shape, 1) < c_true
    centered = jnp.where(mask, s - mean, 0.0)
    var = jnp.sum(centered * centered, axis=-1, keepdims=True) * inv_c
    # gamma / beta are zero-padded -> padded lanes stay exactly 0
    return centered * jax.lax.rsqrt(var + eps) * gamma + beta


# ---------------------------------------------------------------------------
# Fused kernel (whole network in one pallas_call, no grid)
# ---------------------------------------------------------------------------
def make_fused_gcn_kernel(block_widths, out_channels):
    n_blocks = len(block_widths)

    def kernel(x_ref, adj_ref, w_ref, vec_ref, out_ref):
        adj = adj_ref[...]                 # bf16 [NP, NP]  (A_norm[dst, src])
        x_bf = x_ref[...]                  # bf16 [NP, CP]  (start of long residual)
        vecs = vec_ref[...]                # f32  [3*n_blocks + 3, CP]

        skip = x_bf
        h = x_bf
        for i in range(n_blocks):
            wc = w_ref[2 * i]              # bf16 [CP, CP]  conv weight
            wp = w_ref[2 * i + 1]          # bf16 [CP, CP]  skip-projection weight
            b = vecs[3 * i:3 * i + 1]      # f32  [1, CP]   folded bc + bp
            gamma = vecs[3 * i + 1:3 * i + 2]
            beta = vecs[3 * i + 2:3 * i + 3]

            # GCNConv: lin -> normalized aggregation; skip projection; fused bias
            t = jnp.dot(h.astype(jnp.bfloat16), wc,
                        preferred_element_type=jnp.float32)
            agg = jnp.dot(adj, t.astype(jnp.bfloat16),
                          preferred_element_type=jnp.float32)
            s = (agg
                 + jnp.dot(skip.astype(jnp.bfloat16), wp,
                           preferred_element_type=jnp.float32)
                 + b)
            skip = s                       # new "skip" (pre-LN value)
            h = _gelu(_masked_layer_norm(s, gamma, beta, block_widths[i]))
            # dropout(p=0.2) -> identity (eval mode)

        # head: long residual + fc1/gelu + fc2 + log_softmax(dim=1)
        base = 3 * n_blocks
        wip = w_ref[2 * n_blocks]
        w1 = w_ref[2 * n_blocks + 1]
        w2 = w_ref[2 * n_blocks + 2]
        bip = vecs[base:base + 1]
        b1 = vecs[base + 1:base + 2]
        b2 = vecs[base + 2:base + 3]

        z = h + jnp.dot(x_bf, wip, preferred_element_type=jnp.float32) + bip
        h1 = _gelu(jnp.dot(z.astype(jnp.bfloat16), w1,
                           preferred_element_type=jnp.float32) + b1)
        o = jnp.dot(h1.astype(jnp.bfloat16), w2,
                    preferred_element_type=jnp.float32) + b2

        # log_softmax over the true out_channels lanes only
        mask = jax.lax.broadcasted_iota(jnp.int32, o.shape, 1) < out_channels
        om = jnp.where(mask, o, jnp.float32(-1e30))
        m = jnp.max(om, axis=-1, keepdims=True)
        e = jnp.where(mask, jnp.exp(om - m), 0.0)
        lse = m + jnp.log(jnp.sum(e, axis=-1, keepdims=True))
        out_ref[...] = jnp.where(mask, o - lse, 0.0)

    return kernel


# ---------------------------------------------------------------------------
# Wrapper: uniform lane-dense padding, stacked weights, single pallas_call
# ---------------------------------------------------------------------------
def gcn_forward(x, adj, params, conv_channels, mlp_channels, out_channels):
    n, in_ch = x.shape
    dims = [in_ch] + list(conv_channels) + [mlp_channels[0]]
    block_widths = tuple(dims[1:])          # true LayerNorm widths per block
    n_blocks = len(block_widths)

    # One padded channel width (CP) for every feature axis; rows/adj padded to 128.
    cp = _round_up(max(dims + [mlp_channels[1], out_channels]), LANE)
    np_ = _round_up(n, LANE)

    def pad_w(w):                           # weights -> bf16, [CP, CP], zero-padded
        return jnp.pad(w, ((0, cp - w.shape[0]),
                           (0, cp - w.shape[1]))).astype(jnp.bfloat16)

    def pad_v(v):                           # biases / gamma / beta -> f32, [1, CP]
        return jnp.pad(v, ((0, 0), (0, cp - v.shape[1])))

    x_pad = jnp.pad(x, ((0, np_ - n), (0, cp - in_ch))).astype(jnp.bfloat16)
    adj_pad = jnp.pad(adj, ((0, np_ - n), (0, np_ - n))).astype(jnp.bfloat16)

    w_list, v_list = [], []
    for (wc, bc, wp, bp, gamma, beta) in params["blocks"]:
        w_list += [pad_w(wc), pad_w(wp)]
        v_list += [pad_v(bc + bp), pad_v(gamma), pad_v(beta)]   # bias folded
    w_list += [pad_w(params["wip"]), pad_w(params["w1"]), pad_w(params["w2"])]
    v_list += [pad_v(params["bip"]), pad_v(params["b1"]), pad_v(params["b2"])]

    w_stack = jnp.stack(w_list)                        # bf16 [2*n_blocks+3, CP, CP]
    vec_stack = jnp.concatenate(v_list, axis=0)        # f32  [3*n_blocks+3, CP]

    args = (x_pad, adj_pad, w_stack, vec_stack)

    in_bytes = sum(int(a.size) * a.dtype.itemsize for a in args)
    out_bytes = np_ * cp * 4
    flops = n_blocks * (4 * np_ * cp * cp + 2 * np_ * np_ * cp) + 6 * np_ * cp * cp
    transcendentals = (n_blocks + 2) * np_ * cp

    kernel = make_fused_gcn_kernel(block_widths, out_channels)
    vmem_spec = pl.BlockSpec(memory_space=pltpu.MemorySpace.VMEM)

    out = pl.pallas_call(
        kernel,
        in_specs=[vmem_spec] * len(args),
        out_specs=vmem_spec,
        out_shape=jax.ShapeDtypeStruct((np_, cp), jnp.float32),
        compiler_params=pltpu.CompilerParams(
            vmem_limit_bytes=int(max(32 * 1024 * 1024, 2 * (in_bytes + out_bytes)))),
        cost_estimate=pl.CostEstimate(flops=flops,
                                      transcendentals=transcendentals,
                                      bytes_accessed=in_bytes + out_bytes),
    )(*args)
    return out[:n, :out_channels]


# ---------------------------------------------------------------------------
# Glue: normalized adjacency, parameter init
# ---------------------------------------------------------------------------
def build_norm_adj(edge_index, num_nodes):
    """Dense D^{-1/2} (A + I) D^{-1/2}, matching torch_geometric GCNConv's gcn_norm."""
    src, dst = edge_index[0], edge_index[1]
    a = jnp.zeros((num_nodes, num_nodes), jnp.float32).at[dst, src].set(1.0)
    a = jnp.maximum(a, jnp.eye(num_nodes, dtype=jnp.float32))   # add self loops
    deg = a.sum(axis=1)
    d_inv_sqrt = jnp.where(deg > 0.0, 1.0 / jnp.sqrt(deg), 0.0)
    return a * d_inv_sqrt[:, None] * d_inv_sqrt[None, :]


def _linear_params(key, c_in, c_out):
    kw, kb = jax.random.split(key)
    scale = 1.0 / jnp.sqrt(jnp.float32(c_in))
    w = jax.random.normal(kw, (c_in, c_out), jnp.float32) * scale   # pre-transposed
    b = jax.random.normal(kb, (1, c_out), jnp.float32) * 0.01
    return w, b


def init_params(key, in_channels, conv_channels, mlp_channels, out_channels):
    dims = [in_channels] + list(conv_channels) + [mlp_channels[0]]
    keys = jax.random.split(key, 2 * (len(dims) - 1) + 3)
    blocks = []
    ki = 0
    for i in range(len(dims) - 1):
        wc, bc = _linear_params(keys[ki], dims[i], dims[i + 1]); ki += 1
        wp, bp = _linear_params(keys[ki], dims[i], dims[i + 1]); ki += 1
        gamma = jnp.ones((1, dims[i + 1]), jnp.float32)
        beta = jnp.zeros((1, dims[i + 1]), jnp.float32)
        blocks.append((wc, bc, wp, bp, gamma, beta))
    wip, bip = _linear_params(keys[ki], in_channels, mlp_channels[0]); ki += 1
    w1, b1 = _linear_params(keys[ki], mlp_channels[0], mlp_channels[1]); ki += 1
    w2, b2 = _linear_params(keys[ki], mlp_channels[1], out_channels); ki += 1
    return {"blocks": blocks, "wip": wip, "bip": bip,
            "w1": w1, "b1": b1, "w2": w2, "b2": b2}


if __name__ == "__main__":
    N = 16                 # number of graph nodes
    IN_CH = 8
    CONV_CHANNELS = [16, 16]
    MLP_CHANNELS = [32, 16]
    OUT_CH = 4

    key = jax.random.PRNGKey(0)
    k_x, k_p = jax.random.split(key)

    # node features
    x = jax.random.normal(k_x, (N, IN_CH), jnp.float32)

    # deterministic graph: ring edges + chords, symmetrized (no self loops / dups)
    src_list, dst_list = [], []
    for i in range(N):
        for j in ((i + 1) % N, (i + 3) % N):
            src_list += [i, j]
            dst_list += [j, i]
    edge_index = jnp.array([src_list, dst_list], dtype=jnp.int32)   # [2, 64]

    adj = build_norm_adj(edge_index, N)
    params = init_params(k_p, IN_CH, CONV_CHANNELS, MLP_CHANNELS, OUT_CH)

    out = gcn_forward(x, adj, params, CONV_CHANNELS, MLP_CHANNELS, OUT_CH)
    out = jax.block_until_ready(out)
    assert out.shape == (N, OUT_CH)
    # log_softmax sanity: rows should (approximately) exponentiate-sum to 1
    assert jnp.allclose(jnp.exp(out).sum(axis=1), 1.0, atol=1e-4)
    print("KERNEL_OK")
</pallas_src>

<mosaic_0001>
module attributes {stable_mosaic.version = 11 : i64} {
  func.func @kernel(%arg0: memref<128x128xbf16, #tpu.memory_space<vmem>>, %arg1: memref<128x128xbf16, #tpu.memory_space<vmem>>, %arg2: memref<9x128x128xbf16, #tpu.memory_space<vmem>>, %arg3: memref<12x128xf32, #tpu.memory_space<vmem>>, %arg4: memref<128x128xf32, #tpu.memory_space<vmem>>) attributes {dimension_semantics = [], scalar_prefetch = 0 : i64, scratch_operands = 0 : i64, tpu.core_type = #tpu.core_type<tc>} {
    %c0 = arith.constant 0 : index
    %c0_0 = arith.constant 0 : index
    %0 = vector.load %arg1[%c0, %c0_0] : memref<128x128xbf16, #tpu.memory_space<vmem>>, vector<128x128xbf16>
    %c0_1 = arith.constant 0 : index
    %c0_2 = arith.constant 0 : index
    %1 = vector.load %arg0[%c0_1, %c0_2] : memref<128x128xbf16, #tpu.memory_space<vmem>>, vector<128x128xbf16>
    %c0_3 = arith.constant 0 : index
    %c0_4 = arith.constant 0 : index
    %2 = vector.load %arg3[%c0_3, %c0_4] : memref<12x128xf32, #tpu.memory_space<vmem>>, vector<12x128xf32>
    %c0_5 = arith.constant 0 : index
    %c0_6 = arith.constant 0 : index
    %c0_7 = arith.constant 0 : index
    %3 = vector.load %arg2[%c0_5, %c0_6, %c0_7] : memref<9x128x128xbf16, #tpu.memory_space<vmem>>, vector<1x128x128xbf16>
    %4 = vector.shape_cast %3 : vector<1x128x128xbf16> to vector<128x128xbf16>
    %c1 = arith.constant 1 : index
    %c0_8 = arith.constant 0 : index
    %c0_9 = arith.constant 0 : index
    %5 = vector.load %arg2[%c1, %c0_8, %c0_9] : memref<9x128x128xbf16, #tpu.memory_space<vmem>>, vector<1x128x128xbf16>
    %6 = vector.shape_cast %5 : vector<1x128x128xbf16> to vector<128x128xbf16>
    %7 = vector.extract_strided_slice %2 {offsets = [0, 0], sizes = [1, 128], strides = [1, 1]} : vector<12x128xf32> to vector<1x128xf32>
    %8 = vector.extract_strided_slice %2 {offsets = [1, 0], sizes = [1, 128], strides = [1, 1]} : vector<12x128xf32> to vector<1x128xf32>
    %9 = vector.extract_strided_slice %2 {offsets = [2, 0], sizes = [1, 128], strides = [1, 1]} : vector<12x128xf32> to vector<1x128xf32>
    %cst = arith.constant dense<0.000000e+00> : vector<128x128xf32>
    %10 = tpu.matmul %1, %4, %cst {dimension_numbers = #tpu.dot_dimension_numbers<[1], [0], [0], [1], [0, 0, 1, 1], [], []>} : vector<128x128xbf16>, vector<128x128xbf16>, vector<128x128xf32> -> vector<128x128xf32>
    %11 = arith.truncf %10 : vector<128x128xf32> to vector<128x128xbf16>
    %cst_10 = arith.constant dense<0.000000e+00> : vector<128x128xf32>
    %12 = tpu.matmul %0, %11, %cst_10 {dimension_numbers = #tpu.dot_dimension_numbers<[1], [0], [0], [1], [0, 0, 1, 1], [], []>} : vector<128x128xbf16>, vector<128x128xbf16>, vector<128x128xf32> -> vector<128x128xf32>
    %cst_11 = arith.constant dense<0.000000e+00> : vector<128x128xf32>
    %13 = tpu.matmul %1, %6, %cst_11 {dimension_numbers = #tpu.dot_dimension_numbers<[1], [0], [0], [1], [0, 0, 1, 1], [], []>} : vector<128x128xbf16>, vector<128x128xbf16>, vector<128x128xf32> -> vector<128x128xf32>
    %14 = arith.addf %12, %13 : vector<128x128xf32>
    %15 = vector.broadcast %7 : vector<1x128xf32> to vector<128x128xf32>
    %16 = arith.addf %14, %15 : vector<128x128xf32>
    %cst_12 = arith.constant dense<0.000000e+00> : vector<128xf32>
    %17 = vector.multi_reduction <add>, %16, %cst_12 [1] : vector<128x128xf32> to vector<128xf32>
    %18 = vector.shape_cast %17 : vector<128xf32> to vector<128x1xf32>
    %cst_13 = arith.constant 6.250000e-02 : f32
    %19 = vector.broadcast %cst_13 : f32 to vector<128x1xf32>
    %20 = arith.mulf %18, %19 : vector<128x1xf32>
    %21 = tpu.iota {dimensions = array<i32: 1>} : vector<128x128xi32>
    %c16_i32 = arith.constant 16 : i32
    %22 = vector.broadcast %c16_i32 : i32 to vector<128x128xi32>
    %23 = arith.cmpi slt, %21, %22 : vector<128x128xi32>
    %24 = vector.broadcast %20 : vector<128x1xf32> to vector<128x128xf32>
    %25 = arith.subf %16, %24 : vector<128x128xf32>
    %cst_14 = arith.constant 0.000000e+00 : f32
    %26 = vector.broadcast %cst_14 : f32 to vector<128x128xf32>
    %27 = arith.select %23, %25, %26 : vector<128x128xi1>, vector<128x128xf32>
    %28 = arith.mulf %27, %27 : vector<128x128xf32>
    %cst_15 = arith.constant dense<0.000000e+00> : vector<128xf32>
    %29 = vector.multi_reduction <add>, %28, %cst_15 [1] : vector<128x128xf32> to vector<128xf32>
    %30 = vector.shape_cast %29 : vector<128xf32> to vector<128x1xf32>
    %cst_16 = arith.constant 6.250000e-02 : f32
    %31 = vector.broadcast %cst_16 : f32 to vector<128x1xf32>
    %32 = arith.mulf %30, %31 : vector<128x1xf32>
    %cst_17 = arith.constant 9.99999974E-6 : f32
    %33 = vector.broadcast %cst_17 : f32 to vector<128x1xf32>
    %34 = arith.addf %32, %33 : vector<128x1xf32>
    %35 = math.rsqrt %34 : vector<128x1xf32>
    %36 = vector.broadcast %35 : vector<128x1xf32> to vector<128x128xf32>
    %37 = arith.mulf %27, %36 : vector<128x128xf32>
    %38 = vector.broadcast %8 : vector<1x128xf32> to vector<128x128xf32>
    %39 = arith.mulf %37, %38 : vector<128x128xf32>
    %40 = vector.broadcast %9 : vector<1x128xf32> to vector<128x128xf32>
    %41 = arith.addf %39, %40 : vector<128x128xf32>
    %cst_18 = arith.constant 5.000000e-01 : f32
    %42 = vector.broadcast %cst_18 : f32 to vector<128x128xf32>
    %43 = arith.mulf %42, %41 : vector<128x128xf32>
    %cst_19 = arith.constant 1.41421354 : f32
    %44 = vector.broadcast %cst_19 : f32 to vector<128x128xf32>
    %45 = arith.divf %41, %44 : vector<128x128xf32>
    %46 = math.erf %45 : vector<128x128xf32>
    %cst_20 = arith.constant 1.000000e+00 : f32
    %47 = vector.broadcast %cst_20 : f32 to vector<128x128xf32>
    %48 = arith.addf %47, %46 : vector<128x128xf32>
    %49 = arith.mulf %43, %48 : vector<128x128xf32>
    %c2 = arith.constant 2 : index
    %c0_21 = arith.constant 0 : index
    %c0_22 = arith.constant 0 : index
    %50 = vector.load %arg2[%c2, %c0_21, %c0_22] : memref<9x128x128xbf16, #tpu.memory_space<vmem>>, vector<1x128x128xbf16>
    %51 = vector.shape_cast %50 : vector<1x128x128xbf16> to vector<128x128xbf16>
    %c3 = arith.constant 3 : index
    %c0_23 = arith.constant 0 : index
    %c0_24 = arith.constant 0 : index
    %52 = vector.load %arg2[%c3, %c0_23, %c0_24] : memref<9x128x128xbf16, #tpu.memory_space<vmem>>, vector<1x128x128xbf16>
    %53 = vector.shape_cast %52 : vector<1x128x128xbf16> to vector<128x128xbf16>
    %54 = vector.extract_strided_slice %2 {offsets = [3, 0], sizes = [1, 128], strides = [1, 1]} : vector<12x128xf32> to vector<1x128xf32>
    %55 = vector.extract_strided_slice %2 {offsets = [4, 0], sizes = [1, 128], strides = [1, 1]} : vector<12x128xf32> to vector<1x128xf32>
    %56 = vector.extract_strided_slice %2 {offsets = [5, 0], sizes = [1, 128], strides = [1, 1]} : vector<12x128xf32> to vector<1x128xf32>
    %57 = arith.truncf %49 : vector<128x128xf32> to vector<128x128xbf16>
    %cst_25 = arith.constant dense<0.000000e+00> : vector<128x128xf32>
    %58 = tpu.matmul %57, %51, %cst_25 {dimension_numbers = #tpu.dot_dimension_numbers<[1], [0], [0], [1], [0, 0, 1, 1], [], []>} : vector<128x128xbf16>, vector<128x128xbf16>, vector<128x128xf32> -> vector<128x128xf32>
    %59 = arith.truncf %58 : vector<128x128xf32> to vector<128x128xbf16>
    %cst_26 = arith.constant dense<0.000000e+00> : vector<128x128xf32>
    %60 = tpu.matmul %0, %59, %cst_26 {dimension_numbers = #tpu.dot_dimension_numbers<[1], [0], [0], [1], [0, 0, 1, 1], [], []>} : vector<128x128xbf16>, vector<128x128xbf16>, vector<128x128xf32> -> vector<128x128xf32>
    %61 = arith.truncf %16 : vector<128x128xf32> to vector<128x128xbf16>
    %cst_27 = arith.constant dense<0.000000e+00> : vector<128x128xf32>
    %62 = tpu.matmul %61, %53, %cst_27 {dimension_numbers = #tpu.dot_dimension_numbers<[1], [0], [0], [1], [0, 0, 1, 1], [], []>} : vector<128x128xbf16>, vector<128x128xbf16>, vector<128x128xf32> -> vector<128x128xf32>
    %63 = arith.addf %60, %62 : vector<128x128xf32>
    %64 = vector.broadcast %54 : vector<1x128xf32> to vector<128x128xf32>
    %65 = arith.addf %63, %64 : vector<128x128xf32>
    %cst_28 = arith.constant dense<0.000000e+00> : vector<128xf32>
    %66 = vector.multi_reduction <add>, %65, %cst_28 [1] : vector<128x128xf32> to vector<128xf32>
    %67 = vector.shape_cast %66 : vector<128xf32> to vector<128x1xf32>
    %cst_29 = arith.constant 6.250000e-02 : f32
    %68 = vector.broadcast %cst_29 : f32 to vector<128x1xf32>
    %69 = arith.mulf %67, %68 : vector<128x1xf32>
    %70 = tpu.iota {dimensions = array<i32: 1>} : vector<128x128xi32>
    %c16_i32_30 = arith.constant 16 : i32
    %71 = vector.broadcast %c16_i32_30 : i32 to vector<128x128xi32>
    %72 = arith.cmpi slt, %70, %71 : vector<128x128xi32>
    %73 = vector.broadcast %69 : vector<128x1xf32> to vector<128x128xf32>
    %74 = arith.subf %65, %73 : vector<128x128xf32>
    %cst_31 = arith.constant 0.000000e+00 : f32
    %75 = vector.broadcast %cst_31 : f32 to vector<128x128xf32>
    %76 = arith.select %72, %74, %75 : vector<128x128xi1>, vector<128x128xf32>
    %77 = arith.mulf %76, %76 : vector<128x128xf32>
    %cst_32 = arith.constant dense<0.000000e+00> : vector<128xf32>
    %78 = vector.multi_reduction <add>, %77, %cst_32 [1] : vector<128x128xf32> to vector<128xf32>
    %79 = vector.shape_cast %78 : vector<128xf32> to vector<128x1xf32>
    %cst_33 = arith.constant 6.250000e-02 : f32
    %80 = vector.broadcast %cst_33 : f32 to vector<128x1xf32>
    %81 = arith.mulf %79, %80 : vector<128x1xf32>
    %cst_34 = arith.constant 9.99999974E-6 : f32
    %82 = vector.broadcast %cst_34 : f32 to vector<128x1xf32>
    %83 = arith.addf %81, %82 : vector<128x1xf32>
    %84 = math.rsqrt %83 : vector<128x1xf32>
    %85 = vector.broadcast %84 : vector<128x1xf32> to vector<128x128xf32>
    %86 = arith.mulf %76, %85 : vector<128x128xf32>
    %87 = vector.broadcast %55 : vector<1x128xf32> to vector<128x128xf32>
    %88 = arith.mulf %86, %87 : vector<128x128xf32>
    %89 = vector.broadcast %56 : vector<1x128xf32> to vector<128x128xf32>
    %90 = arith.addf %88, %89 : vector<128x128xf32>
    %cst_35 = arith.constant 5.000000e-01 : f32
    %91 = vector.broadcast %cst_35 : f32 to vector<128x128xf32>
    %92 = arith.mulf %91, %90 : vector<128x128xf32>
    %cst_36 = arith.constant 1.41421354 : f32
    %93 = vector.broadcast %cst_36 : f32 to vector<128x128xf32>
    %94 = arith.divf %90, %93 : vector<128x128xf32>
    %95 = math.erf %94 : vector<128x128xf32>
    %cst_37 = arith.constant 1.000000e+00 : f32
    %96 = vector.broadcast %cst_37 : f32 to vector<128x128xf32>
    %97 = arith.addf %96, %95 : vector<128x128xf32>
    %98 = arith.mulf %92, %97 : vector<128x128xf32>
    %c4 = arith.constant 4 : index
    %c0_38 = arith.constant 0 : index
    %c0_39 = arith.constant 0 : index
    %99 = vector.load %arg2[%c4, %c0_38, %c0_39] : memref<9x128x128xbf16, #tpu.memory_space<vmem>>, vector<1x128x128xbf16>
    %100 = vector.shape_cast %99 : vector<1x128x128xbf16> to vector<128x128xbf16>
    %c5 = arith.constant 5 : index
    %c0_40 = arith.constant 0 : index
    %c0_41 = arith.constant 0 : index
    %101 = vector.load %arg2[%c5, %c0_40, %c0_41] : memref<9x128x128xbf16, #tpu.memory_space<vmem>>, vector<1x128x128xbf16>
    %102 = vector.shape_cast %101 : vector<1x128x128xbf16> to vector<128x128xbf16>
    %103 = vector.extract_strided_slice %2 {offsets = [6, 0], sizes = [1, 128], strides = [1, 1]} : vector<12x128xf32> to vector<1x128xf32>
    %104 = vector.extract_strided_slice %2 {offsets = [7, 0], sizes = [1, 128], strides = [1, 1]} : vector<12x128xf32> to vector<1x128xf32>
    %105 = vector.extract_strided_slice %2 {offsets = [8, 0], sizes = [1, 128], strides = [1, 1]} : vector<12x128xf32> to vector<1x128xf32>
    %106 = arith.truncf %98 : vector<128x128xf32> to vector<128x128xbf16>
    %cst_42 = arith.constant dense<0.000000e+00> : vector<128x128xf32>
    %107 = tpu.matmul %106, %100, %cst_42 {dimension_numbers = #tpu.dot_dimension_numbers<[1], [0], [0], [1], [0, 0, 1, 1], [], []>} : vector<128x128xbf16>, vector<128x128xbf16>, vector<128x128xf32> -> vector<128x128xf32>
    %108 = arith.truncf %107 : vector<128x128xf32> to vector<128x128xbf16>
    %cst_43 = arith.constant dense<0.000000e+00> : vector<128x128xf32>
    %109 = tpu.matmul %0, %108, %cst_43 {dimension_numbers = #tpu.dot_dimension_numbers<[1], [0], [0], [1], [0, 0, 1, 1], [], []>} : vector<128x128xbf16>, vector<128x128xbf16>, vector<128x128xf32> -> vector<128x128xf32>
    %110 = arith.truncf %65 : vector<128x128xf32> to vector<128x128xbf16>
    %cst_44 = arith.constant dense<0.000000e+00> : vector<128x128xf32>
    %111 = tpu.matmul %110, %102, %cst_44 {dimension_numbers = #tpu.dot_dimension_numbers<[1], [0], [0], [1], [0, 0, 1, 1], [], []>} : vector<128x128xbf16>, vector<128x128xbf16>, vector<128x128xf32> -> vector<128x128xf32>
    %112 = arith.addf %109, %111 : vector<128x128xf32>
    %113 = vector.broadcast %103 : vector<1x128xf32> to vector<128x128xf32>
    %114 = arith.addf %112, %113 : vector<128x128xf32>
    %cst_45 = arith.constant dense<0.000000e+00> : vector<128xf32>
    %115 = vector.multi_reduction <add>, %114, %cst_45 [1] : vector<128x128xf32> to vector<128xf32>
    %116 = vector.shape_cast %115 : vector<128xf32> to vector<128x1xf32>
    %cst_46 = arith.constant 3.125000e-02 : f32
    %117 = vector.broadcast %cst_46 : f32 to vector<128x1xf32>
    %118 = arith.mulf %116, %117 : vector<128x1xf32>
    %119 = tpu.iota {dimensions = array<i32: 1>} : vector<128x128xi32>
    %c32_i32 = arith.constant 32 : i32
    %120 = vector.broadcast %c32_i32 : i32 to vector<128x128xi32>
    %121 = arith.cmpi slt, %119, %120 : vector<128x128xi32>
    %122 = vector.broadcast %118 : vector<128x1xf32> to vector<128x128xf32>
    %123 = arith.subf %114, %122 : vector<128x128xf32>
    %cst_47 = arith.constant 0.000000e+00 : f32
    %124 = vector.broadcast %cst_47 : f32 to vector<128x128xf32>
    %125 = arith.select %121, %123, %124 : vector<128x128xi1>, vector<128x128xf32>
    %126 = arith.mulf %125, %125 : vector<128x128xf32>
    %cst_48 = arith.constant dense<0.000000e+00> : vector<128xf32>
    %127 = vector.multi_reduction <add>, %126, %cst_48 [1] : vector<128x128xf32> to vector<128xf32>
    %128 = vector.shape_cast %127 : vector<128xf32> to vector<128x1xf32>
    %cst_49 = arith.constant 3.125000e-02 : f32
    %129 = vector.broadcast %cst_49 : f32 to vector<128x1xf32>
    %130 = arith.mulf %128, %129 : vector<128x1xf32>
    %cst_50 = arith.constant 9.99999974E-6 : f32
    %131 = vector.broadcast %cst_50 : f32 to vector<128x1xf32>
    %132 = arith.addf %130, %131 : vector<128x1xf32>
    %133 = math.rsqrt %132 : vector<128x1xf32>
    %134 = vector.broadcast %133 : vector<128x1xf32> to vector<128x128xf32>
    %135 = arith.mulf %125, %134 : vector<128x128xf32>
    %136 = vector.broadcast %104 : vector<1x128xf32> to vector<128x128xf32>
    %137 = arith.mulf %135, %136 : vector<128x128xf32>
    %138 = vector.broadcast %105 : vector<1x128xf32> to vector<128x128xf32>
    %139 = arith.addf %137, %138 : vector<128x128xf32>
    %cst_51 = arith.constant 5.000000e-01 : f32
    %140 = vector.broadcast %cst_51 : f32 to vector<128x128xf32>
    %141 = arith.mulf %140, %139 : vector<128x128xf32>
    %cst_52 = arith.constant 1.41421354 : f32
    %142 = vector.broadcast %cst_52 : f32 to vector<128x128xf32>
    %143 = arith.divf %139, %142 : vector<128x128xf32>
    %144 = math.erf %143 : vector<128x128xf32>
    %cst_53 = arith.constant 1.000000e+00 : f32
    %145 = vector.broadcast %cst_53 : f32 to vector<128x128xf32>
    %146 = arith.addf %145, %144 : vector<128x128xf32>
    %147 = arith.mulf %141, %146 : vector<128x128xf32>
    %c6 = arith.constant 6 : index
    %c0_54 = arith.constant 0 : index
    %c0_55 = arith.constant 0 : index
    %148 = vector.load %arg2[%c6, %c0_54, %c0_55] : memref<9x128x128xbf16, #tpu.memory_space<vmem>>, vector<1x128x128xbf16>
    %149 = vector.shape_cast %148 : vector<1x128x128xbf16> to vector<128x128xbf16>
    %c7 = arith.constant 7 : index
    %c0_56 = arith.constant 0 : index
    %c0_57 = arith.constant 0 : index
    %150 = vector.load %arg2[%c7, %c0_56, %c0_57] : memref<9x128x128xbf16, #tpu.memory_space<vmem>>, vector<1x128x128xbf16>
    %151 = vector.shape_cast %150 : vector<1x128x128xbf16> to vector<128x128xbf16>
    %c8 = arith.constant 8 : index
    %c0_58 = arith.constant 0 : index
    %c0_59 = arith.constant 0 : index
    %152 = vector.load %arg2[%c8, %c0_58, %c0_59] : memref<9x128x128xbf16, #tpu.memory_space<vmem>>, vector<1x128x128xbf16>
    %153 = vector.shape_cast %152 : vector<1x128x128xbf16> to vector<128x128xbf16>
    %154 = vector.extract_strided_slice %2 {offsets = [9, 0], sizes = [1, 128], strides = [1, 1]} : vector<12x128xf32> to vector<1x128xf32>
    %155 = vector.extract_strided_slice %2 {offsets = [10, 0], sizes = [1, 128], strides = [1, 1]} : vector<12x128xf32> to vector<1x128xf32>
    %156 = vector.extract_strided_slice %2 {offsets = [11, 0], sizes = [1, 128], strides = [1, 1]} : vector<12x128xf32> to vector<1x128xf32>
    %cst_60 = arith.constant dense<0.000000e+00> : vector<128x128xf32>
    %157 = tpu.matmul %1, %149, %cst_60 {dimension_numbers = #tpu.dot_dimension_numbers<[1], [0], [0], [1], [0, 0, 1, 1], [], []>} : vector<128x128xbf16>, vector<128x128xbf16>, vector<128x128xf32> -> vector<128x128xf32>
    %158 = arith.addf %147, %157 : vector<128x128xf32>
    %159 = vector.broadcast %154 : vector<1x128xf32> to vector<128x128xf32>
    %160 = arith.addf %158, %159 : vector<128x128xf32>
    %161 = arith.truncf %160 : vector<128x128xf32> to vector<128x128xbf16>
    %cst_61 = arith.constant dense<0.000000e+00> : vector<128x128xf32>
    %162 = tpu.matmul %161, %151, %cst_61 {dimension_numbers = #tpu.dot_dimension_numbers<[1], [0], [0], [1], [0, 0, 1, 1], [], []>} : vector<128x128xbf16>, vector<128x128xbf16>, vector<128x128xf32> -> vector<128x128xf32>
    %163 = vector.broadcast %155 : vector<1x128xf32> to vector<128x128xf32>
    %164 = arith.addf %162, %163 : vector<128x128xf32>
    %cst_62 = arith.constant 5.000000e-01 : f32
    %165 = vector.broadcast %cst_62 : f32 to vector<128x128xf32>
    %166 = arith.mulf %165, %164 : vector<128x128xf32>
    %cst_63 = arith.constant 1.41421354 : f32
    %167 = vector.broadcast %cst_63 : f32 to vector<128x128xf32>
    %168 = arith.divf %164, %167 : vector<128x128xf32>
    %169 = math.erf %168 : vector<128x128xf32>
    %cst_64 = arith.constant 1.000000e+00 : f32
    %170 = vector.broadcast %cst_64 : f32 to vector<128x128xf32>
    %171 = arith.addf %170, %169 : vector<128x128xf32>
    %172 = arith.mulf %166, %171 : vector<128x128xf32>
    %173 = arith.truncf %172 : vector<128x128xf32> to vector<128x128xbf16>
    %cst_65 = arith.constant dense<0.000000e+00> : vector<128x128xf32>
    %174 = tpu.matmul %173, %153, %cst_65 {dimension_numbers = #tpu.dot_dimension_numbers<[1], [0], [0], [1], [0, 0, 1, 1], [], []>} : vector<128x128xbf16>, vector<128x128xbf16>, vector<128x128xf32> -> vector<128x128xf32>
    %175 = vector.broadcast %156 : vector<1x128xf32> to vector<128x128xf32>
    %176 = arith.addf %174, %175 : vector<128x128xf32>
    %177 = tpu.iota {dimensions = array<i32: 1>} : vector<128x128xi32>
    %c4_i32 = arith.constant 4 : i32
    %178 = vector.broadcast %c4_i32 : i32 to vector<128x128xi32>
    %179 = arith.cmpi slt, %177, %178 : vector<128x128xi32>
    %cst_66 = arith.constant -1.000000e+30 : f32
    %180 = vector.broadcast %cst_66 : f32 to vector<128x128xf32>
    %181 = arith.select %179, %176, %180 : vector<128x128xi1>, vector<128x128xf32>
    %cst_67 = arith.constant dense<0xFF800000> : vector<128xf32>
    %182 = vector.multi_reduction <maximumf>, %181, %cst_67 [1] : vector<128x128xf32> to vector<128xf32>
    %183 = vector.shape_cast %182 : vector<128xf32> to vector<128x1xf32>
    %184 = vector.broadcast %183 : vector<128x1xf32> to vector<128x128xf32>
    %185 = arith.subf %181, %184 : vector<128x128xf32>
    %186 = math.exp %185 : vector<128x128xf32>
    %cst_68 = arith.constant 0.000000e+00 : f32
    %187 = vector.broadcast %cst_68 : f32 to vector<128x128xf32>
    %188 = arith.select %179, %186, %187 : vector<128x128xi1>, vector<128x128xf32>
    %cst_69 = arith.constant dense<0.000000e+00> : vector<128xf32>
    %189 = vector.multi_reduction <add>, %188, %cst_69 [1] : vector<128x128xf32> to vector<128xf32>
    %190 = vector.shape_cast %189 : vector<128xf32> to vector<128x1xf32>
    %191 = math.log %190 : vector<128x1xf32>
    %192 = arith.addf %183, %191 : vector<128x1xf32>
    %193 = vector.broadcast %192 : vector<128x1xf32> to vector<128x128xf32>
    %194 = arith.subf %176, %193 : vector<128x128xf32>
    %cst_70 = arith.constant 0.000000e+00 : f32
    %195 = vector.broadcast %cst_70 : f32 to vector<128x128xf32>
    %196 = arith.select %179, %194, %195 : vector<128x128xi1>, vector<128x128xf32>
    %c0_71 = arith.constant 0 : index
    %c0_72 = arith.constant 0 : index
    %197 = vector.load %arg4[%c0_71, %c0_72] : memref<128x128xf32, #tpu.memory_space<vmem>>, vector<128x128xf32>
    tpu.vector_store %arg4[%c0_71, %c0_72], %196 {strides = array<i32>} : memref<128x128xf32, #tpu.memory_space<vmem>>, vector<128x128xf32>,
    return
  }
}

</mosaic_0001>

<llo_original>
// kernel: tpu_custom_call.1
$region0: #{tpu_custom_call.1}
  #allocation0 [shape = 'u32[]', space=smem, size = 0x4, offset = 0x4, fixed_abs, tag = 'smem constant byte address 0x4 - core index']
  #allocation1 [shape = 'u32[144,128]{1,0:T(1,128)}', space=vmem, size = 0x12000, scoped, tag = 'internal scratch']
  %s0 = inlined_call_operand.hbm [shape: bf16[128,128], index: 0, kind: input, shape index: {}]
  %s1 = inlined_call_operand.hbm [shape: bf16[128,128], index: 1, kind: input, shape index: {}]
  %s2 = inlined_call_operand.hbm [shape: bf16[9,128,128], index: 2, kind: input, shape index: {}]
  %s3 = inlined_call_operand.hbm [shape: f32[12,128], index: 3, kind: input, shape index: {}]
  %s4 = inlined_call_operand.hbm [shape: f32[128,128], index: 4, kind: output, shape index: {}]
  %s5 = sld [smem:[#allocation0]]
  $region42: #{tpu_custom_call.1} parent=0
    _
  %s7 = ssub.s32 1, %s5
  %s8 = scalar_select 0, %s7, %s5
  $region1: #{tpu_custom_call.1} parent=0
    #allocation2 [shape = 'u8[32768]{0}', space=vmem, size = 0x8000, scoped, tag = 'input window, operand 0, single buffered']
    #allocation3 [shape = 's32[1]{0}', space=sflag, size = 0x4, scoped, tag = 'scoped memory for tpu_custom_call.1']
    #allocation4 [shape = 's32[1]{0}', space=sflag, size = 0x4, scoped, tag = 'scoped memory for tpu_custom_call.1']
    #allocation5 [shape = 'u8[32768]{0}', space=vmem, size = 0x8000, scoped, tag = 'input window, operand 1, single buffered']
    #allocation6 [shape = 's32[1]{0}', space=sflag, size = 0x4, scoped, tag = 'scoped memory for tpu_custom_call.1']
    #allocation7 [shape = 'u8[294912]{0}', space=vmem, size = 0x48000, scoped, tag = 'input window, operand 2, single buffered']
    #allocation8 [shape = 'u8[8192]{0}', space=vmem, size = 0x2000, scoped, tag = 'input window, operand 3, single buffered']
    #allocation9 [shape = 's32[1]{0}', space=sflag, size = 0x4, scoped, tag = 'scoped memory for tpu_custom_call.1']
    #allocation10 [shape = 'u8[65536]{0}', space=vmem, size = 0x10000, scoped, tag = 'output window, operand 0, single buffered']
    %9 = vsyncpa [#allocation3], 0
    %10 = vsyncpa [#allocation6], 0
    %11 = vsyncpa [#allocation9], 0
    %12 = vsyncpa [#allocation4], 0
    // Predicated region
    $region2: #{tpu_custom_call.1} parent=1 // pred_check
      _
    $region3: #{tpu_custom_call.1} parent=1 // pred_check_branch
      %14 = sbr.rel (0) target = $region5
    $region4: #{tpu_custom_call.1} parent=1 // pred_region
      %s16 = ssub.s32 1024, 1024
      %17 = vsyncadd [#allocation3], %s16
      %s18 = sshll.u32 [#allocation2], 4
      %s19 = int_to_ptr.vmem [resolvable:$true] %s18
      %24 = dma.hbm_to_vmem [thread:$0]  %s0, 1024, %s19, [#allocation3], 64, 64, 4
    $region5: #{tpu_custom_call.1} parent=1 // pred_fallthru
      _
    // Predicated region
    $region6: #{tpu_custom_call.1} parent=1 // pred_check
      _
    $region7: #{tpu_custom_call.1} parent=1 // pred_check_branch
      %26 = sbr.rel (0) target = $region9
    $region8: #{tpu_custom_call.1} parent=1 // pred_region
      %s28 = ssub.s32 1024, 1024
      %29 = vsyncadd [#allocation6], %s28
      %s30 = sshll.u32 [#allocation5], 4
      %s31 = int_to_ptr.vmem [resolvable:$true] %s30
      %36 = dma.hbm_to_vmem [thread:$0]  %s1, 1024, %s31, [#allocation6], 64, 64, 4
    $region9: #{tpu_custom_call.1} parent=1 // pred_fallthru
      _
    // Predicated region
    $region10: #{tpu_custom_call.1} parent=1 // pred_check
      _
    $region11: #{tpu_custom_call.1} parent=1 // pred_check_branch
      %38 = sbr.rel (0) target = $region13
    $region12: #{tpu_custom_call.1} parent=1 // pred_region
      %s40 = ssub.s32 9216, 9216
      %41 = vsyncadd [#allocation6], %s40
      %s42 = sshll.u32 [#allocation7], 4
      %s43 = int_to_ptr.vmem [resolvable:$true] %s42
      %48 = dma.hbm_to_vmem [thread:$0]  %s2, 9216, %s43, [#allocation6], 64, 64, 4
    $region13: #{tpu_custom_call.1} parent=1 // pred_fallthru
      _
    // Predicated region
    $region14: #{tpu_custom_call.1} parent=1 // pred_check
      _
    $region15: #{tpu_custom_call.1} parent=1 // pred_check_branch
      %50 = sbr.rel (0) target = $region17
    $region16: #{tpu_custom_call.1} parent=1 // pred_region
      %s52 = ssub.s32 256, 256
      %53 = vsyncadd [#allocation9], %s52
      %s54 = sshll.u32 [#allocation8], 4
      %s55 = int_to_ptr.vmem [resolvable:$true] %s54
      %60 = dma.hbm_to_vmem [thread:$0]  %s3, 256, %s55, [#allocation9], 128, 128, 8
    $region17: #{tpu_custom_call.1} parent=1 // pred_fallthru
      _
    // Predicated region
    $region18: #{tpu_custom_call.1} parent=1 // pred_check
      _
    $region19: #{tpu_custom_call.1} parent=1 // pred_check_branch
      %62 = sbr.rel (0) target = $region21
    $region20: #{tpu_custom_call.1} parent=1 // pred_region
      %63 = dma.done [#allocation3], 1024
    $region21: #{tpu_custom_call.1} parent=1 // pred_fallthru
      _
    // Predicated region
    $region22: #{tpu_custom_call.1} parent=1 // pred_check
      _
    $region23: #{tpu_custom_call.1} parent=1 // pred_check_branch
      %65 = sbr.rel (0) target = $region25
    $region24: #{tpu_custom_call.1} parent=1 // pred_region
      %66 = dma.done [#allocation6], 1024
    $region25: #{tpu_custom_call.1} parent=1 // pred_fallthru
      _
    // Predicated region
    $region26: #{tpu_custom_call.1} parent=1 // pred_check
      _
    $region27: #{tpu_custom_call.1} parent=1 // pred_check_branch
      %68 = sbr.rel (0) target = $region29
    $region28: #{tpu_custom_call.1} parent=1 // pred_region
      %69 = dma.done [#allocation6], 9216
    $region29: #{tpu_custom_call.1} parent=1 // pred_fallthru
      _
    // Predicated region
    $region30: #{tpu_custom_call.1} parent=1 // pred_check
      _
    $region31: #{tpu_custom_call.1} parent=1 // pred_check_branch
      %71 = sbr.rel (0) target = $region33
    $region32: #{tpu_custom_call.1} parent=1 // pred_region
      %72 = dma.done [#allocation9], 256
    $region33: #{tpu_custom_call.1} parent=1 // pred_fallthru
      _
    %v74 = vld [vmem:[#allocation5] sm:$0xf]
    %v75 = vld [vmem:[#allocation5 + $0x4] sm:$0xf]
    %v76 = vld [vmem:[#allocation5 + $0x8] sm:$0xf]
    %v77 = vld [vmem:[#allocation5 + $0xc] sm:$0xf]
    %v78 = vld [vmem:[#allocation5 + $0x10] sm:$0xf]
    %v79 = vld [vmem:[#allocation5 + $0x14] sm:$0xf]
    %v80 = vld [vmem:[#allocation5 + $0x18] sm:$0xf]
    %v81 = vld [vmem:[#allocation5 + $0x1c] sm:$0xf]
    %v82 = vld [vmem:[#allocation5 + $0x20] sm:$0xf]
    %v83 = vld [vmem:[#allocation5 + $0x24] sm:$0xf]
    %v84 = vld [vmem:[#allocation5 + $0x28] sm:$0xf]
    %v85 = vld [vmem:[#allocation5 + $0x2c] sm:$0xf]
    %v86 = vld [vmem:[#allocation5 + $0x30] sm:$0xf]
    %v87 = vld [vmem:[#allocation5 + $0x34] sm:$0xf]
    %v88 = vld [vmem:[#allocation5 + $0x38] sm:$0xf]
    %v89 = vld [vmem:[#allocation5 + $0x3c] sm:$0xf]
    %v90 = vld [vmem:[#allocation2] sm:$0xf]
    %v91 = vld [vmem:[#allocation2 + $0x4] sm:$0xf]
    %v92 = vld [vmem:[#allocation2 + $0x8] sm:$0xf]
    %v93 = vld [vmem:[#allocation2 + $0xc] sm:$0xf]
    %v94 = vld [vmem:[#allocation2 + $0x10] sm:$0xf]
    %v95 = vld [vmem:[#allocation2 + $0x14] sm:$0xf]
    %v96 = vld [vmem:[#allocation2 + $0x18] sm:$0xf]
    %v97 = vld [vmem:[#allocation2 + $0x1c] sm:$0xf]
    %v98 = vld [vmem:[#allocation2 + $0x20] sm:$0xf]
    %v99 = vld [vmem:[#allocation2 + $0x24] sm:$0xf]
    %v100 = vld [vmem:[#allocation2 + $0x28] sm:$0xf]
    %v101 = vld [vmem:[#allocation2 + $0x2c] sm:$0xf]
    %v102 = vld [vmem:[#allocation2 + $0x30] sm:$0xf]
    %v103 = vld [vmem:[#allocation2 + $0x34] sm:$0xf]
    %v104 = vld [vmem:[#allocation2 + $0x38] sm:$0xf]
    %v105 = vld [vmem:[#allocation2 + $0x3c] sm:$0xf]
    %v106 = vld [vmem:[#allocation8] sm:$0xff]
    %v107 = vld [vmem:[#allocation8 + $0x8] sm:$0xf]
    %v108 = vld [vmem:[#allocation7] sm:$0xf]
    %v109 = vld [vmem:[#allocation7 + $0x4] sm:$0xf]
    %v110 = vld [vmem:[#allocation7 + $0x8] sm:$0xf]
    %v111 = vld [vmem:[#allocation7 + $0xc] sm:$0xf]
    %v112 = vld [vmem:[#allocation7 + $0x10] sm:$0xf]
    %v113 = vld [vmem:[#allocation7 + $0x14] sm:$0xf]
    %v114 = vld [vmem:[#allocation7 + $0x18] sm:$0xf]
    %v115 = vld [vmem:[#allocation7 + $0x1c] sm:$0xf]
    %v116 = vld [vmem:[#allocation7 + $0x20] sm:$0xf]
    %v117 = vld [vmem:[#allocation7 + $0x24] sm:$0xf]
    %v118 = vld [vmem:[#allocation7 + $0x28] sm:$0xf]
    %v119 = vld [vmem:[#allocation7 + $0x2c] sm:$0xf]
    %v120 = vld [vmem:[#allocation7 + $0x30] sm:$0xf]
    %v121 = vld [vmem:[#allocation7 + $0x34] sm:$0xf]
    %v122 = vld [vmem:[#allocation7 + $0x38] sm:$0xf]
    %v123 = vld [vmem:[#allocation7 + $0x3c] sm:$0xf]
    %s124 = scalar_lea.vmem [#allocation7], 64
    %v125 = vld [vmem:[%s124] sm:$0xf]
    %v126 = vld [vmem:[%s124 + $0x4] sm:$0xf]
    %v127 = vld [vmem:[%s124 + $0x8] sm:$0xf]
    %v128 = vld [vmem:[%s124 + $0xc] sm:$0xf]
    %v129 = vld [vmem:[%s124 + $0x10] sm:$0xf]
    %v130 = vld [vmem:[%s124 + $0x14] sm:$0xf]
    %v131 = vld [vmem:[%s124 + $0x18] sm:$0xf]
    %v132 = vld [vmem:[%s124 + $0x1c] sm:$0xf]
    %v133 = vld [vmem:[%s124 + $0x20] sm:$0xf]
    %v134 = vld [vmem:[%s124 + $0x24] sm:$0xf]
    %v135 = vld [vmem:[%s124 + $0x28] sm:$0xf]
    %v136 = vld [vmem:[%s124 + $0x2c] sm:$0xf]
    %v137 = vld [vmem:[%s124 + $0x30] sm:$0xf]
    %v138 = vld [vmem:[%s124 + $0x34] sm:$0xf]
    %v139 = vld [vmem:[%s124 + $0x38] sm:$0xf]
    %v140 = vld [vmem:[%s124 + $0x3c] sm:$0xf]
    %v157 = vunpack.c.l.b16 %v90
    %v158 = vunpack.c.l.b16 %v91
    %v159 = vunpack.c.l.b16 %v92
    %v160 = vunpack.c.l.b16 %v93
    %v161 = vunpack.c.l.b16 %v94
    %v162 = vunpack.c.l.b16 %v95
    %v163 = vunpack.c.l.b16 %v96
    %v164 = vunpack.c.l.b16 %v97
    %v165 = vunpack.c.l.b16 %v98
    %v166 = vunpack.c.l.b16 %v99
    %v167 = vunpack.c.l.b16 %v100
    %v168 = vunpack.c.l.b16 %v101
    %v169 = vunpack.c.l.b16 %v102
    %v170 = vunpack.c.l.b16 %v103
    %v171 = vunpack.c.l.b16 %v104
    %v172 = vunpack.c.l.b16 %v105
    %v173 = vpack.c.b16 %v158, %v157
    %v174 = vpack.c.b16 %v160, %v159
    %v175 = vpack.c.b16 %v162, %v161
    %v176 = vpack.c.b16 %v164, %v163
    %v177 = vpack.c.b16 %v166, %v165
    %v178 = vpack.c.b16 %v168, %v167
    %v179 = vpack.c.b16 %v170, %v169
    %v180 = vpack.c.b16 %v172, %v171
    %v205 = vunpack.c.l.b16 %v108
    %v206 = vunpack.c.l.b16 %v109
    %v207 = vunpack.c.l.b16 %v110
    %v208 = vunpack.c.l.b16 %v111
    %v209 = vunpack.c.l.b16 %v112
    %v210 = vunpack.c.l.b16 %v113
    %v211 = vunpack.c.l.b16 %v114
    %v212 = vunpack.c.l.b16 %v115
    %v213 = vunpack.c.l.b16 %v116
    %v214 = vunpack.c.l.b16 %v117
    %v215 = vunpack.c.l.b16 %v118
    %v216 = vunpack.c.l.b16 %v119
    %v217 = vunpack.c.l.b16 %v120
    %v218 = vunpack.c.l.b16 %v121
    %v219 = vunpack.c.l.b16 %v122
    %v220 = vunpack.c.l.b16 %v123
    %v221 = vpack.c.b16 %v206, %v205
    %v222 = vpack.c.b16 %v208, %v207
    %v223 = vpack.c.b16 %v210, %v209
    %v224 = vpack.c.b16 %v212, %v211
    %v225 = vpack.c.b16 %v214, %v213
    %v226 = vpack.c.b16 %v216, %v215
    %v227 = vpack.c.b16 %v218, %v217
    %v228 = vpack.c.b16 %v220, %v219
    %237 = vmatprep.subr.bf16.mxu0 0
    %238 = vmatpush1.bf16.msra.mxu0 %v221
    %239 = vmatprep.subr.bf16.mxu0 0
    %240 = vmatpush1.bf16.msra.mxu0 %v222
    %241 = vmatprep.subr.bf16.mxu0 0
    %242 = vmatpush1.bf16.msra.mxu0 %v223
    %243 = vmatprep.subr.bf16.mxu0 0
    %244 = vmatpush1.bf16.msra.mxu0 %v224
    %245 = vmatprep.subr.bf16.mxu0 0
    %246 = vmatpush1.bf16.msra.mxu0 %v225
    %247 = vmatprep.subr.bf16.mxu0 0
    %248 = vmatpush1.bf16.msra.mxu0 %v226
    %249 = vmatprep.subr.bf16.mxu0 0
    %250 = vmatpush1.bf16.msra.mxu0 %v227
    %251 = vmatprep.subr.bf16.mxu0 0
    %252 = vmatpush1.bf16.msra.mxu0 %v228
    %253 = vmatprep.subr.bf16.mxu0 0
    %254 = vmatpush1.bf16.msra.mxu0 0
    %255 = vmatprep.subr.bf16.mxu0 0
    %256 = vmatpush1.bf16.msra.mxu0 0
    %257 = vmatprep.subr.bf16.mxu0 0
    %258 = vmatpush1.bf16.msra.mxu0 0
    %259 = vmatprep.subr.bf16.mxu0 0
    %260 = vmatpush1.bf16.msra.mxu0 0
    %261 = vmatprep.subr.bf16.mxu0 0
    %262 = vmatpush1.bf16.msra.mxu0 0
    %263 = vmatprep.subr.bf16.mxu0 0
    %264 = vmatpush1.bf16.msra.mxu0 0
    %265 = vmatprep.subr.bf16.mxu0 0
    %266 = vmatpush1.bf16.msra.mxu0 0
    %267 = vmatprep.subr.bf16.mxu0 0
    %268 = vmatpush1.bf16.msra.mxu0 0
    %269 = vmatprep.mubr.bf16.mxu0 0
    %270 = vmatmul.mubr.bf16.gmra.mrb[0].mxu0 %v173
    %v271 = vpop.f32.mrb[0].mxu0
    %v272 = vadd.f32 0.0, %v271
    %v273 = vpop.f32.mrb[0].mxu0
    %v274 = vpop.f32.mrb[0].mxu0
    %v275 = vadd.f32 0.0, %v274
    %v276 = vpop.f32.mrb[0].mxu0
    %277 = vmatprep.mubr.bf16.mxu0 0
    %278 = vmatmul.mubr.bf16.gmra.mrb[0].mxu0 %v174
    %v279 = vpop.f32.mrb[0].mxu0
    %v280 = vadd.f32 0.0, %v279
    %v281 = vpop.f32.mrb[0].mxu0
    %v282 = vpop.f32.mrb[0].mxu0
    %v283 = vadd.f32 0.0, %v282
    %v284 = vpop.f32.mrb[0].mxu0
    %285 = vmatprep.mubr.bf16.mxu0 0
    %286 = vmatmul.mubr.bf16.gmra.mrb[0].mxu0 %v175
    %v287 = vpop.f32.mrb[0].mxu0
    %v288 = vadd.f32 0.0, %v287
    %v289 = vpop.f32.mrb[0].mxu0
    %v290 = vpop.f32.mrb[0].mxu0
    %v291 = vadd.f32 0.0, %v290
    %v292 = vpop.f32.mrb[0].mxu0
    %293 = vmatprep.mubr.bf16.mxu0 0
    %294 = vmatmul.mubr.bf16.gmra.mrb[0].mxu0 %v176
    %v295 = vpop.f32.mrb[0].mxu0
    %v296 = vadd.f32 0.0, %v295
    %v297 = vpop.f32.mrb[0].mxu0
    %v298 = vpop.f32.mrb[0].mxu0
    %v299 = vadd.f32 0.0, %v298
    %v300 = vpop.f32.mrb[0].mxu0
    %301 = vmatprep.mubr.bf16.mxu0 0
    %302 = vmatmul.mubr.bf16.gmra.mrb[0].mxu0 %v177
    %v303 = vpop.f32.mrb[0].mxu0
    %v304 = vadd.f32 0.0, %v303
    %v305 = vpop.f32.mrb[0].mxu0
    %v306 = vpop.f32.mrb[0].mxu0
    %v307 = vadd.f32 0.0, %v306
    %v308 = vpop.f32.mrb[0].mxu0
    %309 = vmatprep.mubr.bf16.mxu0 0
    %310 = vmatmul.mubr.bf16.gmra.mrb[0].mxu0 %v178
    %v311 = vpop.f32.mrb[0].mxu0
    %v312 = vadd.f32 0.0, %v311
    %v313 = vpop.f32.mrb[0].mxu0
    %v314 = vpop.f32.mrb[0].mxu0
    %v315 = vadd.f32 0.0, %v314
    %v316 = vpop.f32.mrb[0].mxu0
    %317 = vmatprep.mubr.bf16.mxu0 0
    %318 = vmatmul.mubr.bf16.gmra.mrb[0].mxu0 %v179
    %v319 = vpop.f32.mrb[0].mxu0
    %v320 = vadd.f32 0.0, %v319
    %v321 = vpop.f32.mrb[0].mxu0
    %v322 = vpop.f32.mrb[0].mxu0
    %v323 = vadd.f32 0.0, %v322
    %v324 = vpop.f32.mrb[0].mxu0
    %325 = vmatprep.mubr.bf16.mxu0 0
    %326 = vmatmul.mubr.bf16.gmra.mrb[0].mxu0 %v180
    %v327 = vpop.f32.mrb[0].mxu0
    %v328 = vadd.f32 0.0, %v327
    %v329 = vpop.f32.mrb[0].mxu0
    %v330 = vpop.f32.mrb[0].mxu0
    %v331 = vadd.f32 0.0, %v330
    %v332 = vpop.f32.mrb[0].mxu0
    %333 = vdwg.mxu0
    %v334 = vpack.c.bf16 %v275, %v272
    %v335 = vpack.c.bf16 %v283, %v280
    %v336 = vpack.c.bf16 %v291, %v288
    %v337 = vpack.c.bf16 %v299, %v296
    %v338 = vpack.c.bf16 %v307, %v304
    %v339 = vpack.c.bf16 %v315, %v312
    %v340 = vpack.c.bf16 %v323, %v320
    %v341 = vpack.c.bf16 %v331, %v328
    %v358 = vunpack.c.l.b16 %v125
    %v359 = vunpack.c.l.b16 %v126
    %v360 = vunpack.c.l.b16 %v127
    %v361 = vunpack.c.l.b16 %v128
    %v362 = vunpack.c.l.b16 %v129
    %v363 = vunpack.c.l.b16 %v130
    %v364 = vunpack.c.l.b16 %v131
    %v365 = vunpack.c.l.b16 %v132
    %v366 = vunpack.c.l.b16 %v133
    %v367 = vunpack.c.l.b16 %v134
    %v368 = vunpack.c.l.b16 %v135
    %v369 = vunpack.c.l.b16 %v136
    %v370 = vunpack.c.l.b16 %v137
    %v371 = vunpack.c.l.b16 %v138
    %v372 = vunpack.c.l.b16 %v139
    %v373 = vunpack.c.l.b16 %v140
    %v374 = vpack.c.b16 %v359, %v358
    %v375 = vpack.c.b16 %v361, %v360
    %v376 = vpack.c.b16 %v363, %v362
    %v377 = vpack.c.b16 %v365, %v364
    %v378 = vpack.c.b16 %v367, %v366
    %v379 = vpack.c.b16 %v369, %v368
    %v380 = vpack.c.b16 %v371, %v370
    %v381 = vpack.c.b16 %v373, %v372
    %390 = vmatprep.subr.bf16.mxu0 0
    %391 = vmatpush1.bf16.msra.mxu0 %v374
    %392 = vmatprep.subr.bf16.mxu0 0
    %393 = vmatpush1.bf16.msra.mxu0 %v375
    %394 = vmatprep.subr.bf16.mxu0 0
    %395 = vmatpush1.bf16.msra.mxu0 %v376
    %396 = vmatprep.subr.bf16.mxu0 0
    %397 = vmatpush1.bf16.msra.mxu0 %v377
    %398 = vmatprep.subr.bf16.mxu0 0
    %399 = vmatpush1.bf16.msra.mxu0 %v378
    %400 = vmatprep.subr.bf16.mxu0 0
    %401 = vmatpush1.bf16.msra.mxu0 %v379
    %402 = vmatprep.subr.bf16.mxu0 0
    %403 = vmatpush1.bf16.msra.mxu0 %v380
    %404 = vmatprep.subr.bf16.mxu0 0
    %405 = vmatpush1.bf16.msra.mxu0 %v381
    %406 = vmatprep.subr.bf16.mxu0 0
    %407 = vmatpush1.bf16.msra.mxu0 0
    %408 = vmatprep.subr.bf16.mxu0 0
    %409 = vmatpush1.bf16.msra.mxu0 0
    %410 = vmatprep.subr.bf16.mxu0 0
    %411 = vmatpush1.bf16.msra.mxu0 0
    %412 = vmatprep.subr.bf16.mxu0 0
    %413 = vmatpush1.bf16.msra.mxu0 0
    %414 = vmatprep.subr.bf16.mxu0 0
    %415 = vmatpush1.bf16.msra.mxu0 0
    %416 = vmatprep.subr.bf16.mxu0 0
    %417 = vmatpush1.bf16.msra.mxu0 0
    %418 = vmatprep.subr.bf16.mxu0 0
    %419 = vmatpush1.bf16.msra.mxu0 0
    %420 = vmatprep.subr.bf16.mxu0 0
    %421 = vmatpush1.bf16.msra.mxu0 0
    %422 = vmatprep.mubr.bf16.mxu0 0
    %423 = vmatmul.mubr.bf16.gmra.mrb[0].mxu0 %v173
    %v424 = vpop.f32.mrb[0].mxu0
    %v425 = vadd.f32 0.0, %v424
    %v426 = vpop.f32.mrb[0].mxu0
    %v427 = vpop.f32.mrb[0].mxu0
    %v428 = vadd.f32 0.0, %v427
    %v429 = vpop.f32.mrb[0].mxu0
    %430 = vmatprep.mubr.bf16.mxu0 0
    %431 = vmatmul.mubr.bf16.gmra.mrb[0].mxu0 %v174
    %v432 = vpop.f32.mrb[0].mxu0
    %v433 = vadd.f32 0.0, %v432
    %v434 = vpop.f32.mrb[0].mxu0
    %v435 = vpop.f32.mrb[0].mxu0
    %v436 = vadd.f32 0.0, %v435
    %v437 = vpop.f32.mrb[0].mxu0
    %438 = vmatprep.mubr.bf16.mxu0 0
    %439 = vmatmul.mubr.bf16.gmra.mrb[0].mxu0 %v175
    %v440 = vpop.f32.mrb[0].mxu0
    %v441 = vadd.f32 0.0, %v440
    %v442 = vpop.f32.mrb[0].mxu0
    %v443 = vpop.f32.mrb[0].mxu0
    %v444 = vadd.f32 0.0, %v443
    %v445 = vpop.f32.mrb[0].mxu0
    %446 = vmatprep.mubr.bf16.mxu0 0
    %447 = vmatmul.mubr.bf16.gmra.mrb[0].mxu0 %v176
    %v448 = vpop.f32.mrb[0].mxu0
    %v449 = vadd.f32 0.0, %v448
    %v450 = vpop.f32.mrb[0].mxu0
    %v451 = vpop.f32.mrb[0].mxu0
    %v452 = vadd.f32 0.0, %v451
    %v453 = vpop.f32.mrb[0].mxu0
    %454 = vmatprep.mubr.bf16.mxu0 0
    %455 = vmatmul.mubr.bf16.gmra.mrb[0].mxu0 %v177
    %v456 = vpop.f32.mrb[0].mxu0
    %v457 = vadd.f32 0.0, %v456
    %v458 = vpop.f32.mrb[0].mxu0
    %v459 = vpop.f32.mrb[0].mxu0
    %v460 = vadd.f32 0.0, %v459
    %v461 = vpop.f32.mrb[0].mxu0
    %462 = vmatprep.mubr.bf16.mxu0 0
    %463 = vmatmul.mubr.bf16.gmra.mrb[0].mxu0 %v178
    %v464 = vpop.f32.mrb[0].mxu0
    %v465 = vadd.f32 0.0, %v464
    %v466 = vpop.f32.mrb[0].mxu0
    %v467 = vpop.f32.mrb[0].mxu0
    %v468 = vadd.f32 0.0, %v467
    %v469 = vpop.f32.mrb[0].mxu0
    %470 = vmatprep.mubr.bf16.mxu0 0
    %471 = vmatmul.mubr.bf16.gmra.mrb[0].mxu0 %v179
    %v472 = vpop.f32.mrb[0].mxu0
    %v473 = vadd.f32 0.0, %v472
    %v474 = vpop.f32.mrb[0].mxu0
    %v475 = vpop.f32.mrb[0].mxu0
    %v476 = vadd.f32 0.0, %v475
    %v477 = vpop.f32.mrb[0].mxu0
    %478 = vmatprep.mubr.bf16.mxu0 0
    %479 = vmatmul.mubr.bf16.gmra.mrb[0].mxu0 %v180
    %v480 = vpop.f32.mrb[0].mxu0
    %v481 = vadd.f32 0.0, %v480
    %v482 = vpop.f32.mrb[0].mxu0
    %v483 = vpop.f32.mrb[0].mxu0
    %v484 = vadd.f32 0.0, %v483
    %v485 = vpop.f32.mrb[0].mxu0
    %486 = vdwg.mxu0
    %v503 = vunpack.c.l.b16 %v74
    %v504 = vunpack.c.l.b16 %v75
    %v505 = vunpack.c.l.b16 %v76
    %v506 = vunpack.c.l.b16 %v77
    %v507 = vunpack.c.l.b16 %v78
    %v508 = vunpack.c.l.b16 %v79
    %v509 = vunpack.c.l.b16 %v80
    %v510 = vunpack.c.l.b16 %v81
    %v511 = vunpack.c.l.b16 %v82
    %v512 = vunpack.c.l.b16 %v83
    %v513 = vunpack.c.l.b16 %v84
    %v514 = vunpack.c.l.b16 %v85
    %v515 = vunpack.c.l.b16 %v86
    %v516 = vunpack.c.l.b16 %v87
    %v517 = vunpack.c.l.b16 %v88
    %v518 = vunpack.c.l.b16 %v89
    %v519 = vpack.c.b16 %v504, %v503
    %v520 = vpack.c.b16 %v506, %v505
    %v521 = vpack.c.b16 %v508, %v507
    %v522 = vpack.c.b16 %v510, %v509
    %v523 = vpack.c.b16 %v512, %v511
    %v524 = vpack.c.b16 %v514, %v513
    %v525 = vpack.c.b16 %v516, %v515
    %v526 = vpack.c.b16 %v518, %v517
    %535 = vmatprep.subr.bf16.mxu0 0
    %536 = vmatpush1.bf16.msra.mxu0 %v334
    %537 = vmatprep.subr.bf16.mxu0 0
    %538 = vmatpush1.bf16.msra.mxu0 %v335
    %539 = vmatprep.subr.bf16.mxu0 0
    %540 = vmatpush1.bf16.msra.mxu0 %v336
    %541 = vmatprep.subr.bf16.mxu0 0
    %542 = vmatpush1.bf16.msra.mxu0 %v337
    %543 = vmatprep.subr.bf16.mxu0 0
    %544 = vmatpush1.bf16.msra.mxu0 %v338
    %545 = vmatprep.subr.bf16.mxu0 0
    %546 = vmatpush1.bf16.msra.mxu0 %v339
    %547 = vmatprep.subr.bf16.mxu0 0
    %548 = vmatpush1.bf16.msra.mxu0 %v340
    %549 = vmatprep.subr.bf16.mxu0 0
    %550 = vmatpush1.bf16.msra.mxu0 %v341
    %551 = vmatprep.subr.bf16.mxu0 0
    %552 = vmatpush1.bf16.msra.mxu0 0
    %553 = vmatprep.subr.bf16.mxu0 0
    %554 = vmatpush1.bf16.msra.mxu0 0
    %555 = vmatprep.subr.bf16.mxu0 0
    %556 = vmatpush1.bf16.msra.mxu0 0
    %557 = vmatprep.subr.bf16.mxu0 0
    %558 = vmatpush1.bf16.msra.mxu0 0
    %559 = vmatprep.subr.bf16.mxu0 0
    %560 = vmatpush1.bf16.msra.mxu0 0
    %561 = vmatprep.subr.bf16.mxu0 0
    %562 = vmatpush1.bf16.msra.mxu0 0
    %563 = vmatprep.subr.bf16.mxu0 0
    %564 = vmatpush1.bf16.msra.mxu0 0
    %565 = vmatprep.subr.bf16.mxu0 0
    %566 = vmatpush1.bf16.msra.mxu0 0
    %567 = vmatprep.mubr.bf16.mxu0 0
    %568 = vmatmul.mubr.bf16.gmra.mrb[0].mxu0 %v519
    %v569 = vpop.f32.mrb[0].mxu0
    %v570 = vadd.f32 %v425, %v569
    %v571 = vpop.f32.mrb[0].mxu0
    %v572 = vpop.f32.mrb[0].mxu0
    %v573 = vadd.f32 %v428, %v572
    %v574 = vpop.f32.mrb[0].mxu0
    %575 = vmatprep.mubr.bf16.mxu0 0
    %576 = vmatmul.mubr.bf16.gmra.mrb[0].mxu0 %v520
    %v577 = vpop.f32.mrb[0].mxu0
    %v578 = vadd.f32 %v433, %v577
    %v579 = vpop.f32.mrb[0].mxu0
    %v580 = vpop.f32.mrb[0].mxu0
    %v581 = vadd.f32 %v436, %v580
    %v582 = vpop.f32.mrb[0].mxu0
    %583 = vmatprep.mubr.bf16.mxu0 0
    %584 = vmatmul.mubr.bf16.gmra.mrb[0].mxu0 %v521
    %v585 = vpop.f32.mrb[0].mxu0
    %v586 = vadd.f32 %v441, %v585
    %v587 = vpop.f32.mrb[0].mxu0
    %v588 = vpop.f32.mrb[0].mxu0
    %v589 = vadd.f32 %v444, %v588
    %v590 = vpop.f32.mrb[0].mxu0
    %591 = vmatprep.mubr.bf16.mxu0 0
    %592 = vmatmul.mubr.bf16.gmra.mrb[0].mxu0 %v522
    %v593 = vpop.f32.mrb[0].mxu0
    %v594 = vadd.f32 %v449, %v593
    %v595 = vpop.f32.mrb[0].mxu0
    %v596 = vpop.f32.mrb[0].mxu0
    %v597 = vadd.f32 %v452, %v596
    %v598 = vpop.f32.mrb[0].mxu0
    %599 = vmatprep.mubr.bf16.mxu0 0
    %600 = vmatmul.mubr.bf16.gmra.mrb[0].mxu0 %v523
    %v601 = vpop.f32.mrb[0].mxu0
    %v602 = vadd.f32 %v457, %v601
    %v603 = vpop.f32.mrb[0].mxu0
    %v604 = vpop.f32.mrb[0].mxu0
    %v605 = vadd.f32 %v460, %v604
    %v606 = vpop.f32.mrb[0].mxu0
    %607 = vmatprep.mubr.bf16.mxu0 0
    %608 = vmatmul.mubr.bf16.gmra.mrb[0].mxu0 %v524
    %v609 = vpop.f32.mrb[0].mxu0
    %v610 = vadd.f32 %v465, %v609
    %v611 = vpop.f32.mrb[0].mxu0
    %v612 = vpop.f32.mrb[0].mxu0
    %v613 = vadd.f32 %v468, %v612
    %v614 = vpop.f32.mrb[0].mxu0
    %615 = vmatprep.mubr.bf16.mxu0 0
    %616 = vmatmul.mubr.bf16.gmra.mrb[0].mxu0 %v525
    %v617 = vpop.f32.mrb[0].mxu0
    %v618 = vadd.f32 %v473, %v617
    %v619 = vpop.f32.mrb[0].mxu0
    %v620 = vpop.f32.mrb[0].mxu0
    %v621 = vadd.f32 %v476, %v620
    %v622 = vpop.f32.mrb[0].mxu0
    %623 = vmatprep.mubr.bf16.mxu0 0
    %624 = vmatmul.mubr.bf16.gmra.mrb[0].mxu0 %v526
    %v625 = vpop.f32.mrb[0].mxu0
    %v626 = vadd.f32 %v481, %v625
    %v627 = vpop.f32.mrb[0].mxu0
    %v628 = vpop.f32.mrb[0].mxu0
    %v629 = vadd.f32 %v484, %v628
    %v630 = vpop.f32.mrb[0].mxu0
    %631 = vdwg.mxu0
    %v632 = vlaneseq
    %v633 = vshrl.u32 %v632, 7
    %v634 = vsub.s32 0, %v633
    %v635 = vrot.slane %v106, %v634
    %v636 = vadd.f32 %v570, %v635
    %v637 = vadd.f32 %v573, %v635
    %v638 = vadd.f32 %v578, %v635
    %v639 = vadd.f32 %v581, %v635
    %v640 = vadd.f32 %v586, %v635
    %v641 = vadd.f32 %v589, %v635
    %v642 = vadd.f32 %v594, %v635
    %v643 = vadd.f32 %v597, %v635
    %v644 = vadd.f32 %v602, %v635
    %v645 = vadd.f32 %v605, %v635
    %v646 = vadd.f32 %v610, %v635
    %v647 = vadd.f32 %v613, %v635
    %v648 = vadd.f32 %v618, %v635
    %v649 = vadd.f32 %v621, %v635
    %v650 = vadd.f32 %v626, %v635
    %v651 = vadd.f32 %v629, %v635
    %652 = vadd.xlane.f32.xlu0 %v636
    %v653 = vpop.xlane.xlu0 %652
    %654 = vadd.xlane.f32.xlu0 %v637
    %v655 = vpop.xlane.xlu0 %654
    %656 = vadd.xlane.f32.xlu0 %v638
    %v657 = vpop.xlane.xlu0 %656
    %658 = vadd.xlane.f32.xlu0 %v639
    %v659 = vpop.xlane.xlu0 %658
    %660 = vadd.xlane.f32.xlu0 %v640
    %v661 = vpop.xlane.xlu0 %660
    %662 = vadd.xlane.f32.xlu0 %v641
    %v663 = vpop.xlane.xlu0 %662
    %664 = vadd.xlane.f32.xlu0 %v642
    %v665 = vpop.xlane.xlu0 %664
    %666 = vadd.xlane.f32.xlu0 %v643
    %v667 = vpop.xlane.xlu0 %666
    %668 = vadd.xlane.f32.xlu0 %v644
    %v669 = vpop.xlane.xlu0 %668
    %670 = vadd.xlane.f32.xlu0 %v645
    %v671 = vpop.xlane.xlu0 %670
    %672 = vadd.xlane.f32.xlu0 %v646
    %v673 = vpop.xlane.xlu0 %672
    %674 = vadd.xlane.f32.xlu0 %v647
    %v675 = vpop.xlane.xlu0 %674
    %676 = vadd.xlane.f32.xlu0 %v648
    %v677 = vpop.xlane.xlu0 %676
    %678 = vadd.xlane.f32.xlu0 %v649
    %v679 = vpop.xlane.xlu0 %678
    %680 = vadd.xlane.f32.xlu0 %v650
    %v681 = vpop.xlane.xlu0 %680
    %682 = vadd.xlane.f32.xlu0 %v651
    %v683 = vpop.xlane.xlu0 %682
    %v684 = vmul.f32 %v653, 0.0625
    %v685 = vmul.f32 %v655, 0.0625
    %v686 = vmul.f32 %v657, 0.0625
    %v687 = vmul.f32 %v659, 0.0625
    %v688 = vmul.f32 %v661, 0.0625
    %v689 = vmul.f32 %v663, 0.0625
    %v690 = vmul.f32 %v665, 0.0625
    %v691 = vmul.f32 %v667, 0.0625
    %v692 = vmul.f32 %v669, 0.0625
    %v693 = vmul.f32 %v671, 0.0625
    %v694 = vmul.f32 %v673, 0.0625
    %v695 = vmul.f32 %v675, 0.0625
    %v696 = vmul.f32 %v677, 0.0625
    %v697 = vmul.f32 %v679, 0.0625
    %v698 = vmul.f32 %v681, 0.0625
    %v699 = vmul.f32 %v683, 0.0625
    %v700 = vlaneseq
    %v701 = vand.u32 %v700, 127
    %vm702 = vcmp.lt.s32.totalorder %v701, 16
    %v703 = vsub.f32 %v636, %v684
    %v704 = vsub.f32 %v637, %v685
    %v705 = vsub.f32 %v638, %v686
    %v706 = vsub.f32 %v639, %v687
    %v707 = vsub.f32 %v640, %v688
    %v708 = vsub.f32 %v641, %v689
    %v709 = vsub.f32 %v642, %v690
    %v710 = vsub.f32 %v643, %v691
    %v711 = vsub.f32 %v644, %v692
    %v712 = vsub.f32 %v645, %v693
    %v713 = vsub.f32 %v646, %v694
    %v714 = vsub.f32 %v647, %v695
    %v715 = vsub.f32 %v648, %v696
    %v716 = vsub.f32 %v649, %v697
    %v717 = vsub.f32 %v650, %v698
    %v718 = vsub.f32 %v651, %v699
    %v719 = vsel %vm702, %v703, 0.0
    %v720 = vsel %vm702, %v704, 0.0
    %v721 = vsel %vm702, %v705, 0.0
    %v722 = vsel %vm702, %v706, 0.0
    %v723 = vsel %vm702, %v707, 0.0
    %v724 = vsel %vm702, %v708, 0.0
    %v725 = vsel %vm702, %v709, 0.0
    %v726 = vsel %vm702, %v710, 0.0
    %v727 = vsel %vm702, %v711, 0.0
    %v728 = vsel %vm702, %v712, 0.0
    %v729 = vsel %vm702, %v713, 0.0
    %v730 = vsel %vm702, %v714, 0.0
    %v731 = vsel %vm702, %v715, 0.0
    %v732 = vsel %vm702, %v716, 0.0
    %v733 = vsel %vm702, %v717, 0.0
    %v734 = vsel %vm702, %v718, 0.0
    %v735 = vmul.f32 %v719, %v719
    %v736 = vmul.f32 %v720, %v720
    %v737 = vmul.f32 %v721, %v721
    %v738 = vmul.f32 %v722, %v722
    %v739 = vmul.f32 %v723, %v723
    %v740 = vmul.f32 %v724, %v724
    %v741 = vmul.f32 %v725, %v725
    %v742 = vmul.f32 %v726, %v726
    %v743 = vmul.f32 %v727, %v727
    %v744 = vmul.f32 %v728, %v728
    %v745 = vmul.f32 %v729, %v729
    %v746 = vmul.f32 %v730, %v730
    %v747 = vmul.f32 %v731, %v731
    %v748 = vmul.f32 %v732, %v732
    %v749 = vmul.f32 %v733, %v733
    %v750 = vmul.f32 %v734, %v734
    %751 = vadd.xlane.f32.xlu0 %v735
    %v752 = vpop.xlane.xlu0 %751
    %753 = vadd.xlane.f32.xlu0 %v736
    %v754 = vpop.xlane.xlu0 %753
    %755 = vadd.xlane.f32.xlu0 %v737
    %v756 = vpop.xlane.xlu0 %755
    %757 = vadd.xlane.f32.xlu0 %v738
    %v758 = vpop.xlane.xlu0 %757
    %759 = vadd.xlane.f32.xlu0 %v739
    %v760 = vpop.xlane.xlu0 %759
    %761 = vadd.xlane.f32.xlu0 %v740
    %v762 = vpop.xlane.xlu0 %761
    %763 = vadd.xlane.f32.xlu0 %v741
    %v764 = vpop.xlane.xlu0 %763
    %765 = vadd.xlane.f32.xlu0 %v742
    %v766 = vpop.xlane.xlu0 %765
    %767 = vadd.xlane.f32.xlu0 %v743
    %v768 = vpop.xlane.xlu0 %767
    %769 = vadd.xlane.f32.xlu0 %v744
    %v770 = vpop.xlane.xlu0 %769
    %771 = vadd.xlane.f32.xlu0 %v745
    %v772 = vpop.xlane.xlu0 %771
    %773 = vadd.xlane.f32.xlu0 %v746
    %v774 = vpop.xlane.xlu0 %773
    %775 = vadd.xlane.f32.xlu0 %v747
    %v776 = vpop.xlane.xlu0 %775
    %777 = vadd.xlane.f32.xlu0 %v748
    %v778 = vpop.xlane.xlu0 %777
    %779 = vadd.xlane.f32.xlu0 %v749
    %v780 = vpop.xlane.xlu0 %779
    %781 = vadd.xlane.f32.xlu0 %v750
    %v782 = vpop.xlane.xlu0 %781
    %v783 = vmul.f32 %v752, 0.0625
    %v784 = vmul.f32 %v754, 0.0625
    %v785 = vmul.f32 %v756, 0.0625
    %v786 = vmul.f32 %v758, 0.0625
    %v787 = vmul.f32 %v760, 0.0625
    %v788 = vmul.f32 %v762, 0.0625
    %v789 = vmul.f32 %v764, 0.0625
    %v790 = vmul.f32 %v766, 0.0625
    %v791 = vmul.f32 %v768, 0.0625
    %v792 = vmul.f32 %v770, 0.0625
    %v793 = vmul.f32 %v772, 0.0625
    %v794 = vmul.f32 %v774, 0.0625
    %v795 = vmul.f32 %v776, 0.0625
    %v796 = vmul.f32 %v778, 0.0625
    %v797 = vmul.f32 %v780, 0.0625
    %v798 = vmul.f32 %v782, 0.0625
    %v799 = vadd.f32 %v783, 1e-05
    %v800 = vadd.f32 %v784, 1e-05
    %v801 = vadd.f32 %v785, 1e-05
    %v802 = vadd.f32 %v786, 1e-05
    %v803 = vadd.f32 %v787, 1e-05
    %v804 = vadd.f32 %v788, 1e-05
    %v805 = vadd.f32 %v789, 1e-05
    %v806 = vadd.f32 %v790, 1e-05
    %v807 = vadd.f32 %v791, 1e-05
    %v808 = vadd.f32 %v792, 1e-05
    %v809 = vadd.f32 %v793, 1e-05
    %v810 = vadd.f32 %v794, 1e-05
    %v811 = vadd.f32 %v795, 1e-05
    %v812 = vadd.f32 %v796, 1e-05
    %v813 = vadd.f32 %v797, 1e-05
    %v814 = vadd.f32 %v798, 1e-05
    %v815 = vrsqrt.pop %v799
    %v816 = vrsqrt.pop %v800
    %v817 = vrsqrt.pop %v801
    %v818 = vrsqrt.pop %v802
    %v819 = vrsqrt.pop %v803
    %v820 = vrsqrt.pop %v804
    %v821 = vrsqrt.pop %v805
    %v822 = vrsqrt.pop %v806
    %v823 = vrsqrt.pop %v807
    %v824 = vrsqrt.pop %v808
    %v825 = vrsqrt.pop %v809
    %v826 = vrsqrt.pop %v810
    %v827 = vrsqrt.pop %v811
    %v828 = vrsqrt.pop %v812
    %v829 = vrsqrt.pop %v813
    %v830 = vrsqrt.pop %v814
    %v831 = vmul.f32 %v719, %v815
    %v832 = vmul.f32 %v720, %v816
    %v833 = vmul.f32 %v721, %v817
    %v834 = vmul.f32 %v722, %v818
    %v835 = vmul.f32 %v723, %v819
    %v836 = vmul.f32 %v724, %v820
    %v837 = vmul.f32 %v725, %v821
    %v838 = vmul.f32 %v726, %v822
    %v839 = vmul.f32 %v727, %v823
    %v840 = vmul.f32 %v728, %v824
    %v841 = vmul.f32 %v729, %v825
    %v842 = vmul.f32 %v730, %v826
    %v843 = vmul.f32 %v731, %v827
    %v844 = vmul.f32 %v732, %v828
    %v845 = vmul.f32 %v733, %v829
    %v846 = vmul.f32 %v734, %v830
    %v847 = vlaneseq
    %v848 = vshrl.u32 %v847, 7
    %v849 = vsub.s32 1, %v848
    %v850 = vrot.slane %v106, %v849
    %v851 = vmul.f32 %v831, %v850
    %v852 = vmul.f32 %v832, %v850
    %v853 = vmul.f32 %v833, %v850
    %v854 = vmul.f32 %v834, %v850
    %v855 = vmul.f32 %v835, %v850
    %v856 = vmul.f32 %v836, %v850
    %v857 = vmul.f32 %v837, %v850
    %v858 = vmul.f32 %v838, %v850
    %v859 = vmul.f32 %v839, %v850
    %v860 = vmul.f32 %v840, %v850
    %v861 = vmul.f32 %v841, %v850
    %v862 = vmul.f32 %v842, %v850
    %v863 = vmul.f32 %v843, %v850
    %v864 = vmul.f32 %v844, %v850
    %v865 = vmul.f32 %v845, %v850
    %v866 = vmul.f32 %v846, %v850
    %v867 = vlaneseq
    %v868 = vshrl.u32 %v867, 7
    %v869 = vsub.s32 2, %v868
    %v870 = vrot.slane %v106, %v869
    %v871 = vadd.f32 %v851, %v870
    %v872 = vadd.f32 %v852, %v870
    %v873 = vadd.f32 %v853, %v870
    %v874 = vadd.f32 %v854, %v870
    %v875 = vadd.f32 %v855, %v870
    %v876 = vadd.f32 %v856, %v870
    %v877 = vadd.f32 %v857, %v870
    %v878 = vadd.f32 %v858, %v870
    %v879 = vadd.f32 %v859, %v870
    %v880 = vadd.f32 %v860, %v870
    %v881 = vadd.f32 %v861, %v870
    %v882 = vadd.f32 %v862, %v870
    %v883 = vadd.f32 %v863, %v870
    %v884 = vadd.f32 %v864, %v870
    %v885 = vadd.f32 %v865, %v870
    %v886 = vadd.f32 %v866, %v870
    %v887 = vmul.f32 %v871, 0.5
    %v888 = vmul.f32 %v872, 0.5
    %v889 = vmul.f32 %v873, 0.5
    %v890 = vmul.f32 %v874, 0.5
    %v891 = vmul.f32 %v875, 0.5
    %v892 = vmul.f32 %v876, 0.5
    %v893 = vmul.f32 %v877, 0.5
    %v894 = vmul.f32 %v878, 0.5
    %v895 = vmul.f32 %v879, 0.5
    %v896 = vmul.f32 %v880, 0.5
    %v897 = vmul.f32 %v881, 0.5
    %v898 = vmul.f32 %v882, 0.5
    %v899 = vmul.f32 %v883, 0.5
    %v900 = vmul.f32 %v884, 0.5
    %v901 = vmul.f32 %v885, 0.5
    %v902 = vmul.f32 %v886, 0.5
    %v903 = vrcp.pop 1.4142135
    %v904 = vmul.f32 %v871, %v903
    %v905 = vmul.f32 %v872, %v903
    %v906 = vmul.f32 %v873, %v903
    %v907 = vmul.f32 %v874, %v903
    %v908 = vmul.f32 %v875, %v903
    %v909 = vmul.f32 %v876, %v903
    %v910 = vmul.f32 %v877, %v903
    %v911 = vmul.f32 %v878, %v903
    %v912 = vmul.f32 %v879, %v903
    %v913 = vmul.f32 %v880, %v903
    %v914 = vmul.f32 %v881, %v903
    %v915 = vmul.f32 %v882, %v903
    %v916 = vmul.f32 %v883, %v903
    %v917 = vmul.f32 %v884, %v903
    %v918 = vmul.f32 %v885, %v903
    %v919 = vmul.f32 %v886, %v903
    %v920 = verf.f32.pop %v904
    %v921 = verf.f32.pop %v905
    %v922 = verf.f32.pop %v906
    %v923 = verf.f32.pop %v907
    %v924 = verf.f32.pop %v908
    %v925 = verf.f32.pop %v909
    %v926 = verf.f32.pop %v910
    %v927 = verf.f32.pop %v911
    %v928 = verf.f32.pop %v912
    %v929 = verf.f32.pop %v913
    %v930 = verf.f32.pop %v914
    %v931 = verf.f32.pop %v915
    %v932 = verf.f32.pop %v916
    %v933 = verf.f32.pop %v917
    %v934 = verf.f32.pop %v918
    %v935 = verf.f32.pop %v919
    %v936 = vadd.f32 %v920, 1.0
    %v937 = vadd.f32 %v921, 1.0
    %v938 = vadd.f32 %v922, 1.0
    %v939 = vadd.f32 %v923, 1.0
    %v940 = vadd.f32 %v924, 1.0
    %v941 = vadd.f32 %v925, 1.0
    %v942 = vadd.f32 %v926, 1.0
    %v943 = vadd.f32 %v927, 1.0
    %v944 = vadd.f32 %v928, 1.0
    %v945 = vadd.f32 %v929, 1.0
    %v946 = vadd.f32 %v930, 1.0
    %v947 = vadd.f32 %v931, 1.0
    %v948 = vadd.f32 %v932, 1.0
    %v949 = vadd.f32 %v933, 1.0
    %v950 = vadd.f32 %v934, 1.0
    %v951 = vadd.f32 %v935, 1.0
    %v952 = vmul.f32 %v887, %v936
    %v953 = vmul.f32 %v888, %v937
    %v954 = vmul.f32 %v889, %v938
    %v955 = vmul.f32 %v890, %v939
    %v956 = vmul.f32 %v891, %v940
    %v957 = vmul.f32 %v892, %v941
    %v958 = vmul.f32 %v893, %v942
    %v959 = vmul.f32 %v894, %v943
    %v960 = vmul.f32 %v895, %v944
    %v961 = vmul.f32 %v896, %v945
    %v962 = vmul.f32 %v897, %v946
    %v963 = vmul.f32 %v898, %v947
    %v964 = vmul.f32 %v899, %v948
    %v965 = vmul.f32 %v900, %v949
    %v966 = vmul.f32 %v901, %v950
    %v967 = vmul.f32 %v902, %v951
    %s968 = scalar_lea.vmem [#allocation7], 128
    %v969 = vld [vmem:[%s968] sm:$0xf]
    %v970 = vld [vmem:[%s968 + $0x4] sm:$0xf]
    %v971 = vld [vmem:[%s968 + $0x8] sm:$0xf]
    %v972 = vld [vmem:[%s968 + $0xc] sm:$0xf]
    %v973 = vld [vmem:[%s968 + $0x10] sm:$0xf]
    %v974 = vld [vmem:[%s968 + $0x14] sm:$0xf]
    %v975 = vld [vmem:[%s968 + $0x18] sm:$0xf]
    %v976 = vld [vmem:[%s968 + $0x1c] sm:$0xf]
    %v977 = vld [vmem:[%s968 + $0x20] sm:$0xf]
    %v978 = vld [vmem:[%s968 + $0x24] sm:$0xf]
    %v979 = vld [vmem:[%s968 + $0x28] sm:$0xf]
    %v980 = vld [vmem:[%s968 + $0x2c] sm:$0xf]
    %v981 = vld [vmem:[%s968 + $0x30] sm:$0xf]
    %v982 = vld [vmem:[%s968 + $0x34] sm:$0xf]
    %v983 = vld [vmem:[%s968 + $0x38] sm:$0xf]
    %v984 = vld [vmem:[%s968 + $0x3c] sm:$0xf]
    %s985 = scalar_lea.vmem [#allocation7], 192
    %v986 = vld [vmem:[%s985] sm:$0xf]
    %v987 = vld [vmem:[%s985 + $0x4] sm:$0xf]
    %v988 = vld [vmem:[%s985 + $0x8] sm:$0xf]
    %v989 = vld [vmem:[%s985 + $0xc] sm:$0xf]
    %v990 = vld [vmem:[%s985 + $0x10] sm:$0xf]
    %v991 = vld [vmem:[%s985 + $0x14] sm:$0xf]
    %v992 = vld [vmem:[%s985 + $0x18] sm:$0xf]
    %v993 = vld [vmem:[%s985 + $0x1c] sm:$0xf]
    %v994 = vld [vmem:[%s985 + $0x20] sm:$0xf]
    %v995 = vld [vmem:[%s985 + $0x24] sm:$0xf]
    %v996 = vld [vmem:[%s985 + $0x28] sm:$0xf]
    %v997 = vld [vmem:[%s985 + $0x2c] sm:$0xf]
    %v998 = vld [vmem:[%s985 + $0x30] sm:$0xf]
    %v999 = vld [vmem:[%s985 + $0x34] sm:$0xf]
    %v1000 = vld [vmem:[%s985 + $0x38] sm:$0xf]
    %v1001 = vld [vmem:[%s985 + $0x3c] sm:$0xf]
    %v1002 = vpack.c.bf16 %v953, %v952
    %v1003 = vpack.c.bf16 %v955, %v954
    %v1004 = vpack.c.bf16 %v957, %v956
    %v1005 = vpack.c.bf16 %v959, %v958
    %v1006 = vpack.c.bf16 %v961, %v960
    %v1007 = vpack.c.bf16 %v963, %v962
    %v1008 = vpack.c.bf16 %v965, %v964
    %v1009 = vpack.c.bf16 %v967, %v966
    %v1026 = vunpack.c.l.b16 %v969
    %v1027 = vunpack.c.l.b16 %v970
    %v1028 = vunpack.c.l.b16 %v971
    %v1029 = vunpack.c.l.b16 %v972
    %v1030 = vunpack.c.l.b16 %v973
    %v1031 = vunpack.c.l.b16 %v974
    %v1032 = vunpack.c.l.b16 %v975
    %v1033 = vunpack.c.l.b16 %v976
    %v1034 = vunpack.c.l.b16 %v977
    %v1035 = vunpack.c.l.b16 %v978
    %v1036 = vunpack.c.l.b16 %v979
    %v1037 = vunpack.c.l.b16 %v980
    %v1038 = vunpack.c.l.b16 %v981
    %v1039 = vunpack.c.l.b16 %v982
    %v1040 = vunpack.c.l.b16 %v983
    %v1041 = vunpack.c.l.b16 %v984
    %v1042 = vpack.c.b16 %v1027, %v1026
    %v1043 = vpack.c.b16 %v1029, %v1028
    %v1044 = vpack.c.b16 %v1031, %v1030
    %v1045 = vpack.c.b16 %v1033, %v1032
    %v1046 = vpack.c.b16 %v1035, %v1034
    %v1047 = vpack.c.b16 %v1037, %v1036
    %v1048 = vpack.c.b16 %v1039, %v1038
    %v1049 = vpack.c.b16 %v1041, %v1040
    %1058 = vmatprep.subr.bf16.mxu0 0
    %1059 = vmatpush1.bf16.msra.mxu0 %v1042
    %1060 = vmatprep.subr.bf16.mxu0 0
    %1061 = vmatpush1.bf16.msra.mxu0 %v1043
    %1062 = vmatprep.subr.bf16.mxu0 0
    %1063 = vmatpush1.bf16.msra.mxu0 %v1044
    %1064 = vmatprep.subr.bf16.mxu0 0
    %1065 = vmatpush1.bf16.msra.mxu0 %v1045
    %1066 = vmatprep.subr.bf16.mxu0 0
    %1067 = vmatpush1.bf16.msra.mxu0 %v1046
    %1068 = vmatprep.subr.bf16.mxu0 0
    %1069 = vmatpush1.bf16.msra.mxu0 %v1047
    %1070 = vmatprep.subr.bf16.mxu0 0
    %1071 = vmatpush1.bf16.msra.mxu0 %v1048
    %1072 = vmatprep.subr.bf16.mxu0 0
    %1073 = vmatpush1.bf16.msra.mxu0 %v1049
    %1074 = vmatprep.subr.bf16.mxu0 0
    %1075 = vmatpush1.bf16.msra.mxu0 0
    %1076 = vmatprep.subr.bf16.mxu0 0
    %1077 = vmatpush1.bf16.msra.mxu0 0
    %1078 = vmatprep.subr.bf16.mxu0 0
    %1079 = vmatpush1.bf16.msra.mxu0 0
    %1080 = vmatprep.subr.bf16.mxu0 0
    %1081 = vmatpush1.bf16.msra.mxu0 0
    %1082 = vmatprep.subr.bf16.mxu0 0
    %1083 = vmatpush1.bf16.msra.mxu0 0
    %1084 = vmatprep.subr.bf16.mxu0 0
    %1085 = vmatpush1.bf16.msra.mxu0 0
    %1086 = vmatprep.subr.bf16.mxu0 0
    %1087 = vmatpush1.bf16.msra.mxu0 0
    %1088 = vmatprep.subr.bf16.mxu0 0
    %1089 = vmatpush1.bf16.msra.mxu0 0
    %1090 = vmatprep.mubr.bf16.mxu0 0
    %1091 = vmatmul.mubr.bf16.gmra.mrb[0].mxu0 %v1002
    %v1092 = vpop.f32.mrb[0].mxu0
    %v1093 = vadd.f32 0.0, %v1092
    %v1094 = vpop.f32.mrb[0].mxu0
    %v1095 = vpop.f32.mrb[0].mxu0
    %v1096 = vadd.f32 0.0, %v1095
    %v1097 = vpop.f32.mrb[0].mxu0
    %1098 = vmatprep.mubr.bf16.mxu0 0
    %1099 = vmatmul.mubr.bf16.gmra.mrb[0].mxu0 %v1003
    %v1100 = vpop.f32.mrb[0].mxu0
    %v1101 = vadd.f32 0.0, %v1100
    %v1102 = vpop.f32.mrb[0].mxu0
    %v1103 = vpop.f32.mrb[0].mxu0
    %v1104 = vadd.f32 0.0, %v1103
    %v1105 = vpop.f32.mrb[0].mxu0
    %1106 = vmatprep.mubr.bf16.mxu0 0
    %1107 = vmatmul.mubr.bf16.gmra.mrb[0].mxu0 %v1004
    %v1108 = vpop.f32.mrb[0].mxu0
    %v1109 = vadd.f32 0.0, %v1108
    %v1110 = vpop.f32.mrb[0].mxu0
    %v1111 = vpop.f32.mrb[0].mxu0
    %v1112 = vadd.f32 0.0, %v1111
    %v1113 = vpop.f32.mrb[0].mxu0
    %1114 = vmatprep.mubr.bf16.mxu0 0
    %1115 = vmatmul.mubr.bf16.gmra.mrb[0].mxu0 %v1005
    %v1116 = vpop.f32.mrb[0].mxu0
    %v1117 = vadd.f32 0.0, %v1116
    %v1118 = vpop.f32.mrb[0].mxu0
    %v1119 = vpop.f32.mrb[0].mxu0
    %v1120 = vadd.f32 0.0, %v1119
    %v1121 = vpop.f32.mrb[0].mxu0
    %1122 = vmatprep.mubr.bf16.mxu0 0
    %1123 = vmatmul.mubr.bf16.gmra.mrb[0].mxu0 %v1006
    %v1124 = vpop.f32.mrb[0].mxu0
    %v1125 = vadd.f32 0.0, %v1124
    %v1126 = vpop.f32.mrb[0].mxu0
    %v1127 = vpop.f32.mrb[0].mxu0
    %v1128 = vadd.f32 0.0, %v1127
    %v1129 = vpop.f32.mrb[0].mxu0
    %1130 = vmatprep.mubr.bf16.mxu0 0
    %1131 = vmatmul.mubr.bf16.gmra.mrb[0].mxu0 %v1007
    %v1132 = vpop.f32.mrb[0].mxu0
    %v1133 = vadd.f32 0.0, %v1132
    %v1134 = vpop.f32.mrb[0].mxu0
    %v1135 = vpop.f32.mrb[0].mxu0
    %v1136 = vadd.f32 0.0, %v1135
    %v1137 = vpop.f32.mrb[0].mxu0
    %1138 = vmatprep.mubr.bf16.mxu0 0
    %1139 = vmatmul.mubr.bf16.gmra.mrb[0].mxu0 %v1008
    %v1140 = vpop.f32.mrb[0].mxu0
    %v1141 = vadd.f32 0.0, %v1140
    %v1142 = vpop.f32.mrb[0].mxu0
    %v1143 = vpop.f32.mrb[0].mxu0
    %v1144 = vadd.f32 0.0, %v1143
    %v1145 = vpop.f32.mrb[0].mxu0
    %1146 = vmatprep.mubr.bf16.mxu0 0
    %1147 = vmatmul.mubr.bf16.gmra.mrb[0].mxu0 %v1009
    %v1148 = vpop.f32.mrb[0].mxu0
    %v1149 = vadd.f32 0.0, %v1148
    %v1150 = vpop.f32.mrb[0].mxu0
    %v1151 = vpop.f32.mrb[0].mxu0
    %v1152 = vadd.f32 0.0, %v1151
    %v1153 = vpop.f32.mrb[0].mxu0
    %1154 = vdwg.mxu0
    %v1155 = vpack.c.bf16 %v1096, %v1093
    %v1156 = vpack.c.bf16 %v1104, %v1101
    %v1157 = vpack.c.bf16 %v1112, %v1109
    %v1158 = vpack.c.bf16 %v1120, %v1117
    %v1159 = vpack.c.bf16 %v1128, %v1125
    %v1160 = vpack.c.bf16 %v1136, %v1133
    %v1161 = vpack.c.bf16 %v1144, %v1141
    %v1162 = vpack.c.bf16 %v1152, %v1149
    %v1163 = vpack.c.bf16 %v637, %v636
    %v1164 = vpack.c.bf16 %v639, %v638
    %v1165 = vpack.c.bf16 %v641, %v640
    %v1166 = vpack.c.bf16 %v643, %v642
    %v1167 = vpack.c.bf16 %v645, %v644
    %v1168 = vpack.c.bf16 %v647, %v646
    %v1169 = vpack.c.bf16 %v649, %v648
    %v1170 = vpack.c.bf16 %v651, %v650
    %v1187 = vunpack.c.l.b16 %v986
    %v1188 = vunpack.c.l.b16 %v987
    %v1189 = vunpack.c.l.b16 %v988
    %v1190 = vunpack.c.l.b16 %v989
    %v1191 = vunpack.c.l.b16 %v990
    %v1192 = vunpack.c.l.b16 %v991
    %v1193 = vunpack.c.l.b16 %v992
    %v1194 = vunpack.c.l.b16 %v993
    %v1195 = vunpack.c.l.b16 %v994
    %v1196 = vunpack.c.l.b16 %v995
    %v1197 = vunpack.c.l.b16 %v996
    %v1198 = vunpack.c.l.b16 %v997
    %v1199 = vunpack.c.l.b16 %v998
    %v1200 = vunpack.c.l.b16 %v999
    %v1201 = vunpack.c.l.b16 %v1000
    %v1202 = vunpack.c.l.b16 %v1001
    %v1203 = vpack.c.b16 %v1188, %v1187
    %v1204 = vpack.c.b16 %v1190, %v1189
    %v1205 = vpack.c.b16 %v1192, %v1191
    %v1206 = vpack.c.b16 %v1194, %v1193
    %v1207 = vpack.c.b16 %v1196, %v1195
    %v1208 = vpack.c.b16 %v1198, %v1197
    %v1209 = vpack.c.b16 %v1200, %v1199
    %v1210 = vpack.c.b16 %v1202, %v1201
    %1219 = vmatprep.subr.bf16.mxu0 0
    %1220 = vmatpush1.bf16.msra.mxu0 %v1203
    %1221 = vmatprep.subr.bf16.mxu0 0
    %1222 = vmatpush1.bf16.msra.mxu0 %v1204
    %1223 = vmatprep.subr.bf16.mxu0 0
    %1224 = vmatpush1.bf16.msra.mxu0 %v1205
    %1225 = vmatprep.subr.bf16.mxu0 0
    %1226 = vmatpush1.bf16.msra.mxu0 %v1206
    %1227 = vmatprep.subr.bf16.mxu0 0
    %1228 = vmatpush1.bf16.msra.mxu0 %v1207
    %1229 = vmatprep.subr.bf16.mxu0 0
    %1230 = vmatpush1.bf16.msra.mxu0 %v1208
    %1231 = vmatprep.subr.bf16.mxu0 0
    %1232 = vmatpush1.bf16.msra.mxu0 %v1209
    %1233 = vmatprep.subr.bf16.mxu0 0
    %1234 = vmatpush1.bf16.msra.mxu0 %v1210
    %1235 = vmatprep.subr.bf16.mxu0 0
    %1236 = vmatpush1.bf16.msra.mxu0 0
    %1237 = vmatprep.subr.bf16.mxu0 0
    %1238 = vmatpush1.bf16.msra.mxu0 0
    %1239 = vmatprep.subr.bf16.mxu0 0
    %1240 = vmatpush1.bf16.msra.mxu0 0
    %1241 = vmatprep.subr.bf16.mxu0 0
    %1242 = vmatpush1.bf16.msra.mxu0 0
    %1243 = vmatprep.subr.bf16.mxu0 0
    %1244 = vmatpush1.bf16.msra.mxu0 0
    %1245 = vmatprep.subr.bf16.mxu0 0
    %1246 = vmatpush1.bf16.msra.mxu0 0
    %1247 = vmatprep.subr.bf16.mxu0 0
    %1248 = vmatpush1.bf16.msra.mxu0 0
    %1249 = vmatprep.subr.bf16.mxu0 0
    %1250 = vmatpush1.bf16.msra.mxu0 0
    %1251 = vmatprep.mubr.bf16.mxu0 0
    %1252 = vmatmul.mubr.bf16.gmra.mrb[0].mxu0 %v1163
    %v1253 = vpop.f32.mrb[0].mxu0
    %v1254 = vadd.f32 0.0, %v1253
    %v1255 = vpop.f32.mrb[0].mxu0
    %v1256 = vpop.f32.mrb[0].mxu0
    %v1257 = vadd.f32 0.0, %v1256
    %v1258 = vpop.f32.mrb[0].mxu0
    %1259 = vmatprep.mubr.bf16.mxu0 0
    %1260 = vmatmul.mubr.bf16.gmra.mrb[0].mxu0 %v1164
    %v1261 = vpop.f32.mrb[0].mxu0
    %v1262 = vadd.f32 0.0, %v1261
    %v1263 = vpop.f32.mrb[0].mxu0
    %v1264 = vpop.f32.mrb[0].mxu0
    %v1265 = vadd.f32 0.0, %v1264
    %v1266 = vpop.f32.mrb[0].mxu0
    %1267 = vmatprep.mubr.bf16.mxu0 0
    %1268 = vmatmul.mubr.bf16.gmra.mrb[0].mxu0 %v1165
    %v1269 = vpop.f32.mrb[0].mxu0
    %v1270 = vadd.f32 0.0, %v1269
    %v1271 = vpop.f32.mrb[0].mxu0
    %v1272 = vpop.f32.mrb[0].mxu0
    %v1273 = vadd.f32 0.0, %v1272
    %v1274 = vpop.f32.mrb[0].mxu0
    %1275 = vmatprep.mubr.bf16.mxu0 0
    %1276 = vmatmul.mubr.bf16.gmra.mrb[0].mxu0 %v1166
    %v1277 = vpop.f32.mrb[0].mxu0
    %v1278 = vadd.f32 0.0, %v1277
    %v1279 = vpop.f32.mrb[0].mxu0
    %v1280 = vpop.f32.mrb[0].mxu0
    %v1281 = vadd.f32 0.0, %v1280
    %v1282 = vpop.f32.mrb[0].mxu0
    %1283 = vmatprep.mubr.bf16.mxu0 0
    %1284 = vmatmul.mubr.bf16.gmra.mrb[0].mxu0 %v1167
    %v1285 = vpop.f32.mrb[0].mxu0
    %v1286 = vadd.f32 0.0, %v1285
    %v1287 = vpop.f32.mrb[0].mxu0
    %v1288 = vpop.f32.mrb[0].mxu0
    %v1289 = vadd.f32 0.0, %v1288
    %v1290 = vpop.f32.mrb[0].mxu0
    %1291 = vmatprep.mubr.bf16.mxu0 0
    %1292 = vmatmul.mubr.bf16.gmra.mrb[0].mxu0 %v1168
    %v1293 = vpop.f32.mrb[0].mxu0
    %v1294 = vadd.f32 0.0, %v1293
    %v1295 = vpop.f32.mrb[0].mxu0
    %v1296 = vpop.f32.mrb[0].mxu0
    %v1297 = vadd.f32 0.0, %v1296
    %v1298 = vpop.f32.mrb[0].mxu0
    %1299 = vmatprep.mubr.bf16.mxu0 0
    %1300 = vmatmul.mubr.bf16.gmra.mrb[0].mxu0 %v1169
    %v1301 = vpop.f32.mrb[0].mxu0
    %v1302 = vadd.f32 0.0, %v1301
    %v1303 = vpop.f32.mrb[0].mxu0
    %v1304 = vpop.f32.mrb[0].mxu0
    %v1305 = vadd.f32 0.0, %v1304
    %v1306 = vpop.f32.mrb[0].mxu0
    %1307 = vmatprep.mubr.bf16.mxu0 0
    %1308 = vmatmul.mubr.bf16.gmra.mrb[0].mxu0 %v1170
    %v1309 = vpop.f32.mrb[0].mxu0
    %v1310 = vadd.f32 0.0, %v1309
    %v1311 = vpop.f32.mrb[0].mxu0
    %v1312 = vpop.f32.mrb[0].mxu0
    %v1313 = vadd.f32 0.0, %v1312
    %v1314 = vpop.f32.mrb[0].mxu0
    %1315 = vdwg.mxu0
    %1316 = vmatprep.subr.bf16.mxu0 0
    %1317 = vmatpush1.bf16.msra.mxu0 %v1155
    %1318 = vmatprep.subr.bf16.mxu0 0
    %1319 = vmatpush1.bf16.msra.mxu0 %v1156
    %1320 = vmatprep.subr.bf16.mxu0 0
    %1321 = vmatpush1.bf16.msra.mxu0 %v1157
    %1322 = vmatprep.subr.bf16.mxu0 0
    %1323 = vmatpush1.bf16.msra.mxu0 %v1158
    %1324 = vmatprep.subr.bf16.mxu0 0
    %1325 = vmatpush1.bf16.msra.mxu0 %v1159
    %1326 = vmatprep.subr.bf16.mxu0 0
    %1327 = vmatpush1.bf16.msra.mxu0 %v1160
    %1328 = vmatprep.subr.bf16.mxu0 0
    %1329 = vmatpush1.bf16.msra.mxu0 %v1161
    %1330 = vmatprep.subr.bf16.mxu0 0
    %1331 = vmatpush1.bf16.msra.mxu0 %v1162
    %1332 = vmatprep.subr.bf16.mxu0 0
    %1333 = vmatpush1.bf16.msra.mxu0 0
    %1334 = vmatprep.subr.bf16.mxu0 0
    %1335 = vmatpush1.bf16.msra.mxu0 0
    %1336 = vmatprep.subr.bf16.mxu0 0
    %1337 = vmatpush1.bf16.msra.mxu0 0
    %1338 = vmatprep.subr.bf16.mxu0 0
    %1339 = vmatpush1.bf16.msra.mxu0 0
    %1340 = vmatprep.subr.bf16.mxu0 0
    %1341 = vmatpush1.bf16.msra.mxu0 0
    %1342 = vmatprep.subr.bf16.mxu0 0
    %1343 = vmatpush1.bf16.msra.mxu0 0
    %1344 = vmatprep.subr.bf16.mxu0 0
    %1345 = vmatpush1.bf16.msra.mxu0 0
    %1346 = vmatprep.subr.bf16.mxu0 0
    %1347 = vmatpush1.bf16.msra.mxu0 0
    %1348 = vmatprep.mubr.bf16.mxu0 0
    %1349 = vmatmul.mubr.bf16.gmra.mrb[0].mxu0 %v519
    %v1350 = vpop.f32.mrb[0].mxu0
    %v1351 = vadd.f32 %v1254, %v1350
    %v1352 = vpop.f32.mrb[0].mxu0
    %v1353 = vpop.f32.mrb[0].mxu0
    %v1354 = vadd.f32 %v1257, %v1353
    %v1355 = vpop.f32.mrb[0].mxu0
    %1356 = vmatprep.mubr.bf16.mxu0 0
    %1357 = vmatmul.mubr.bf16.gmra.mrb[0].mxu0 %v520
    %v1358 = vpop.f32.mrb[0].mxu0
    %v1359 = vadd.f32 %v1262, %v1358
    %v1360 = vpop.f32.mrb[0].mxu0
    %v1361 = vpop.f32.mrb[0].mxu0
    %v1362 = vadd.f32 %v1265, %v1361
    %v1363 = vpop.f32.mrb[0].mxu0
    %1364 = vmatprep.mubr.bf16.mxu0 0
    %1365 = vmatmul.mubr.bf16.gmra.mrb[0].mxu0 %v521
    %v1366 = vpop.f32.mrb[0].mxu0
    %v1367 = vadd.f32 %v1270, %v1366
    %v1368 = vpop.f32.mrb[0].mxu0
    %v1369 = vpop.f32.mrb[0].mxu0
    %v1370 = vadd.f32 %v1273, %v1369
    %v1371 = vpop.f32.mrb[0].mxu0
    %1372 = vmatprep.mubr.bf16.mxu0 0
    %1373 = vmatmul.mubr.bf16.gmra.mrb[0].mxu0 %v522
    %v1374 = vpop.f32.mrb[0].mxu0
    %v1375 = vadd.f32 %v1278, %v1374
    %v1376 = vpop.f32.mrb[0].mxu0
    %v1377 = vpop.f32.mrb[0].mxu0
    %v1378 = vadd.f32 %v1281, %v1377
    %v1379 = vpop.f32.mrb[0].mxu0
    %1380 = vmatprep.mubr.bf16.mxu0 0
    %1381 = vmatmul.mubr.bf16.gmra.mrb[0].mxu0 %v523
    %v1382 = vpop.f32.mrb[0].mxu0
    %v1383 = vadd.f32 %v1286, %v1382
    %v1384 = vpop.f32.mrb[0].mxu0
    %v1385 = vpop.f32.mrb[0].mxu0
    %v1386 = vadd.f32 %v1289, %v1385
    %v1387 = vpop.f32.mrb[0].mxu0
    %1388 = vmatprep.mubr.bf16.mxu0 0
    %1389 = vmatmul.mubr.bf16.gmra.mrb[0].mxu0 %v524
    %v1390 = vpop.f32.mrb[0].mxu0
    %v1391 = vadd.f32 %v1294, %v1390
    %v1392 = vpop.f32.mrb[0].mxu0
    %v1393 = vpop.f32.mrb[0].mxu0
    %v1394 = vadd.f32 %v1297, %v1393
    %v1395 = vpop.f32.mrb[0].mxu0
    %1396 = vmatprep.mubr.bf16.mxu0 0
    %1397 = vmatmul.mubr.bf16.gmra.mrb[0].mxu0 %v525
    %v1398 = vpop.f32.mrb[0].mxu0
    %v1399 = vadd.f32 %v1302, %v1398
    %v1400 = vpop.f32.mrb[0].mxu0
    %v1401 = vpop.f32.mrb[0].mxu0
    %v1402 = vadd.f32 %v1305, %v1401
    %v1403 = vpop.f32.mrb[0].mxu0
    %1404 = vmatprep.mubr.bf16.mxu0 0
    %1405 = vmatmul.mubr.bf16.gmra.mrb[0].mxu0 %v526
    %v1406 = vpop.f32.mrb[0].mxu0
    %v1407 = vadd.f32 %v1310, %v1406
    %v1408 = vpop.f32.mrb[0].mxu0
    %v1409 = vpop.f32.mrb[0].mxu0
    %v1410 = vadd.f32 %v1313, %v1409
    %v1411 = vpop.f32.mrb[0].mxu0
    %1412 = vdwg.mxu0
    %v1413 = vlaneseq
    %v1414 = vshrl.u32 %v1413, 7
    %v1415 = vsub.s32 3, %v1414
    %v1416 = vrot.slane %v106, %v1415
    %v1417 = vadd.f32 %v1351, %v1416
    %v1418 = vadd.f32 %v1354, %v1416
    %v1419 = vadd.f32 %v1359, %v1416
    %v1420 = vadd.f32 %v1362, %v1416
    %v1421 = vadd.f32 %v1367, %v1416
    %v1422 = vadd.f32 %v1370, %v1416
    %v1423 = vadd.f32 %v1375, %v1416
    %v1424 = vadd.f32 %v1378, %v1416
    %v1425 = vadd.f32 %v1383, %v1416
    %v1426 = vadd.f32 %v1386, %v1416
    %v1427 = vadd.f32 %v1391, %v1416
    %v1428 = vadd.f32 %v1394, %v1416
    %v1429 = vadd.f32 %v1399, %v1416
    %v1430 = vadd.f32 %v1402, %v1416
    %v1431 = vadd.f32 %v1407, %v1416
    %v1432 = vadd.f32 %v1410, %v1416
    %1433 = vadd.xlane.f32.xlu0 %v1417
    %v1434 = vpop.xlane.xlu0 %1433
    %1435 = vadd.xlane.f32.xlu0 %v1418
    %v1436 = vpop.xlane.xlu0 %1435
    %1437 = vadd.xlane.f32.xlu0 %v1419
    %v1438 = vpop.xlane.xlu0 %1437
    %1439 = vadd.xlane.f32.xlu0 %v1420
    %v1440 = vpop.xlane.xlu0 %1439
    %1441 = vadd.xlane.f32.xlu0 %v1421
    %v1442 = vpop.xlane.xlu0 %1441
    %1443 = vadd.xlane.f32.xlu0 %v1422
    %v1444 = vpop.xlane.xlu0 %1443
    %1445 = vadd.xlane.f32.xlu0 %v1423
    %v1446 = vpop.xlane.xlu0 %1445
    %1447 = vadd.xlane.f32.xlu0 %v1424
    %v1448 = vpop.xlane.xlu0 %1447
    %1449 = vadd.xlane.f32.xlu0 %v1425
    %v1450 = vpop.xlane.xlu0 %1449
    %1451 = vadd.xlane.f32.xlu0 %v1426
    %v1452 = vpop.xlane.xlu0 %1451
    %1453 = vadd.xlane.f32.xlu0 %v1427
    %v1454 = vpop.xlane.xlu0 %1453
    %1455 = vadd.xlane.f32.xlu0 %v1428
    %v1456 = vpop.xlane.xlu0 %1455
    %1457 = vadd.xlane.f32.xlu0 %v1429
    %v1458 = vpop.xlane.xlu0 %1457
    %1459 = vadd.xlane.f32.xlu0 %v1430
    %v1460 = vpop.xlane.xlu0 %1459
    %1461 = vadd.xlane.f32.xlu0 %v1431
    %v1462 = vpop.xlane.xlu0 %1461
    %1463 = vadd.xlane.f32.xlu0 %v1432
    %v1464 = vpop.xlane.xlu0 %1463
    %v1465 = vmul.f32 %v1434, 0.0625
    %v1466 = vmul.f32 %v1436, 0.0625
    %v1467 = vmul.f32 %v1438, 0.0625
    %v1468 = vmul.f32 %v1440, 0.0625
    %v1469 = vmul.f32 %v1442, 0.0625
    %v1470 = vmul.f32 %v1444, 0.0625
    %v1471 = vmul.f32 %v1446, 0.0625
    %v1472 = vmul.f32 %v1448, 0.0625
    %v1473 = vmul.f32 %v1450, 0.0625
    %v1474 = vmul.f32 %v1452, 0.0625
    %v1475 = vmul.f32 %v1454, 0.0625
    %v1476 = vmul.f32 %v1456, 0.0625
    %v1477 = vmul.f32 %v1458, 0.0625
    %v1478 = vmul.f32 %v1460, 0.0625
    %v1479 = vmul.f32 %v1462, 0.0625
    %v1480 = vmul.f32 %v1464, 0.0625
    %v1481 = vsub.f32 %v1417, %v1465
    %v1482 = vsub.f32 %v1418, %v1466
    %v1483 = vsub.f32 %v1419, %v1467
    %v1484 = vsub.f32 %v1420, %v1468
    %v1485 = vsub.f32 %v1421, %v1469
    %v1486 = vsub.f32 %v1422, %v1470
    %v1487 = vsub.f32 %v1423, %v1471
    %v1488 = vsub.f32 %v1424, %v1472
    %v1489 = vsub.f32 %v1425, %v1473
    %v1490 = vsub.f32 %v1426, %v1474
    %v1491 = vsub.f32 %v1427, %v1475
    %v1492 = vsub.f32 %v1428, %v1476
    %v1493 = vsub.f32 %v1429, %v1477
    %v1494 = vsub.f32 %v1430, %v1478
    %v1495 = vsub.f32 %v1431, %v1479
    %v1496 = vsub.f32 %v1432, %v1480
    %v1497 = vsel %vm702, %v1481, 0.0
    %v1498 = vsel %vm702, %v1482, 0.0
    %v1499 = vsel %vm702, %v1483, 0.0
    %v1500 = vsel %vm702, %v1484, 0.0
    %v1501 = vsel %vm702, %v1485, 0.0
    %v1502 = vsel %vm702, %v1486, 0.0
    %v1503 = vsel %vm702, %v1487, 0.0
    %v1504 = vsel %vm702, %v1488, 0.0
    %v1505 = vsel %vm702, %v1489, 0.0
    %v1506 = vsel %vm702, %v1490, 0.0
    %v1507 = vsel %vm702, %v1491, 0.0
    %v1508 = vsel %vm702, %v1492, 0.0
    %v1509 = vsel %vm702, %v1493, 0.0
    %v1510 = vsel %vm702, %v1494, 0.0
    %v1511 = vsel %vm702, %v1495, 0.0
    %v1512 = vsel %vm702, %v1496, 0.0
    %v1513 = vmul.f32 %v1497, %v1497
    %v1514 = vmul.f32 %v1498, %v1498
    %v1515 = vmul.f32 %v1499, %v1499
    %v1516 = vmul.f32 %v1500, %v1500
    %v1517 = vmul.f32 %v1501, %v1501
    %v1518 = vmul.f32 %v1502, %v1502
    %v1519 = vmul.f32 %v1503, %v1503
    %v1520 = vmul.f32 %v1504, %v1504
    %v1521 = vmul.f32 %v1505, %v1505
    %v1522 = vmul.f32 %v1506, %v1506
    %v1523 = vmul.f32 %v1507, %v1507
    %v1524 = vmul.f32 %v1508, %v1508
    %v1525 = vmul.f32 %v1509, %v1509
    %v1526 = vmul.f32 %v1510, %v1510
    %v1527 = vmul.f32 %v1511, %v1511
    %v1528 = vmul.f32 %v1512, %v1512
    %1529 = vadd.xlane.f32.xlu0 %v1513
    %v1530 = vpop.xlane.xlu0 %1529
    %1531 = vadd.xlane.f32.xlu0 %v1514
    %v1532 = vpop.xlane.xlu0 %1531
    %1533 = vadd.xlane.f32.xlu0 %v1515
    %v1534 = vpop.xlane.xlu0 %1533
    %1535 = vadd.xlane.f32.xlu0 %v1516
    %v1536 = vpop.xlane.xlu0 %1535
    %1537 = vadd.xlane.f32.xlu0 %v1517
    %v1538 = vpop.xlane.xlu0 %1537
    %1539 = vadd.xlane.f32.xlu0 %v1518
    %v1540 = vpop.xlane.xlu0 %1539
    %1541 = vadd.xlane.f32.xlu0 %v1519
    %v1542 = vpop.xlane.xlu0 %1541
    %1543 = vadd.xlane.f32.xlu0 %v1520
    %v1544 = vpop.xlane.xlu0 %1543
    %1545 = vadd.xlane.f32.xlu0 %v1521
    %v1546 = vpop.xlane.xlu0 %1545
    %1547 = vadd.xlane.f32.xlu0 %v1522
    %v1548 = vpop.xlane.xlu0 %1547
    %1549 = vadd.xlane.f32.xlu0 %v1523
    %v1550 = vpop.xlane.xlu0 %1549
    %1551 = vadd.xlane.f32.xlu0 %v1524
    %v1552 = vpop.xlane.xlu0 %1551
    %1553 = vadd.xlane.f32.xlu0 %v1525
    %v1554 = vpop.xlane.xlu0 %1553
    %1555 = vadd.xlane.f32.xlu0 %v1526
    %v1556 = vpop.xlane.xlu0 %1555
    %1557 = vadd.xlane.f32.xlu0 %v1527
    %v1558 = vpop.xlane.xlu0 %1557
    %1559 = vadd.xlane.f32.xlu0 %v1528
    %v1560 = vpop.xlane.xlu0 %1559
    %v1561 = vmul.f32 %v1530, 0.0625
    %v1562 = vmul.f32 %v1532, 0.0625
    %v1563 = vmul.f32 %v1534, 0.0625
    %v1564 = vmul.f32 %v1536, 0.0625
    %v1565 = vmul.f32 %v1538, 0.0625
    %v1566 = vmul.f32 %v1540, 0.0625
    %v1567 = vmul.f32 %v1542, 0.0625
    %v1568 = vmul.f32 %v1544, 0.0625
    %v1569 = vmul.f32 %v1546, 0.0625
    %v1570 = vmul.f32 %v1548, 0.0625
    %v1571 = vmul.f32 %v1550, 0.0625
    %v1572 = vmul.f32 %v1552, 0.0625
    %v1573 = vmul.f32 %v1554, 0.0625
    %v1574 = vmul.f32 %v1556, 0.0625
    %v1575 = vmul.f32 %v1558, 0.0625
    %v1576 = vmul.f32 %v1560, 0.0625
    %v1577 = vadd.f32 %v1561, 1e-05
    %v1578 = vadd.f32 %v1562, 1e-05
    %v1579 = vadd.f32 %v1563, 1e-05
    %v1580 = vadd.f32 %v1564, 1e-05
    %v1581 = vadd.f32 %v1565, 1e-05
    %v1582 = vadd.f32 %v1566, 1e-05
    %v1583 = vadd.f32 %v1567, 1e-05
    %v1584 = vadd.f32 %v1568, 1e-05
    %v1585 = vadd.f32 %v1569, 1e-05
    %v1586 = vadd.f32 %v1570, 1e-05
    %v1587 = vadd.f32 %v1571, 1e-05
    %v1588 = vadd.f32 %v1572, 1e-05
    %v1589 = vadd.f32 %v1573, 1e-05
    %v1590 = vadd.f32 %v1574, 1e-05
    %v1591 = vadd.f32 %v1575, 1e-05
    %v1592 = vadd.f32 %v1576, 1e-05
    %v1593 = vrsqrt.pop %v1577
    %v1594 = vrsqrt.pop %v1578
    %v1595 = vrsqrt.pop %v1579
    %v1596 = vrsqrt.pop %v1580
    %v1597 = vrsqrt.pop %v1581
    %v1598 = vrsqrt.pop %v1582
    %v1599 = vrsqrt.pop %v1583
    %v1600 = vrsqrt.pop %v1584
    %v1601 = vrsqrt.pop %v1585
    %v1602 = vrsqrt.pop %v1586
    %v1603 = vrsqrt.pop %v1587
    %v1604 = vrsqrt.pop %v1588
    %v1605 = vrsqrt.pop %v1589
    %v1606 = vrsqrt.pop %v1590
    %v1607 = vrsqrt.pop %v1591
    %v1608 = vrsqrt.pop %v1592
    %v1609 = vmul.f32 %v1497, %v1593
    %v1610 = vmul.f32 %v1498, %v1594
    %v1611 = vmul.f32 %v1499, %v1595
    %v1612 = vmul.f32 %v1500, %v1596
    %v1613 = vmul.f32 %v1501, %v1597
    %v1614 = vmul.f32 %v1502, %v1598
    %v1615 = vmul.f32 %v1503, %v1599
    %v1616 = vmul.f32 %v1504, %v1600
    %v1617 = vmul.f32 %v1505, %v1601
    %v1618 = vmul.f32 %v1506, %v1602
    %v1619 = vmul.f32 %v1507, %v1603
    %v1620 = vmul.f32 %v1508, %v1604
    %v1621 = vmul.f32 %v1509, %v1605
    %v1622 = vmul.f32 %v1510, %v1606
    %v1623 = vmul.f32 %v1511, %v1607
    %v1624 = vmul.f32 %v1512, %v1608
    %v1625 = vlaneseq
    %v1626 = vshrl.u32 %v1625, 7
    %v1627 = vsub.s32 4, %v1626
    %v1628 = vrot.slane %v106, %v1627
    %v1629 = vmul.f32 %v1609, %v1628
    %v1630 = vmul.f32 %v1610, %v1628
    %v1631 = vmul.f32 %v1611, %v1628
    %v1632 = vmul.f32 %v1612, %v1628
    %v1633 = vmul.f32 %v1613, %v1628
    %v1634 = vmul.f32 %v1614, %v1628
    %v1635 = vmul.f32 %v1615, %v1628
    %v1636 = vmul.f32 %v1616, %v1628
    %v1637 = vmul.f32 %v1617, %v1628
    %v1638 = vmul.f32 %v1618, %v1628
    %v1639 = vmul.f32 %v1619, %v1628
    %v1640 = vmul.f32 %v1620, %v1628
    %v1641 = vmul.f32 %v1621, %v1628
    %v1642 = vmul.f32 %v1622, %v1628
    %v1643 = vmul.f32 %v1623, %v1628
    %v1644 = vmul.f32 %v1624, %v1628
    %v1645 = vlaneseq
    %v1646 = vshrl.u32 %v1645, 7
    %v1647 = vsub.s32 5, %v1646
    %v1648 = vrot.slane %v106, %v1647
    %v1649 = vadd.f32 %v1629, %v1648
    %v1650 = vadd.f32 %v1630, %v1648
    %v1651 = vadd.f32 %v1631, %v1648
    %v1652 = vadd.f32 %v1632, %v1648
    %v1653 = vadd.f32 %v1633, %v1648
    %v1654 = vadd.f32 %v1634, %v1648
    %v1655 = vadd.f32 %v1635, %v1648
    %v1656 = vadd.f32 %v1636, %v1648
    %v1657 = vadd.f32 %v1637, %v1648
    %v1658 = vadd.f32 %v1638, %v1648
    %v1659 = vadd.f32 %v1639, %v1648
    %v1660 = vadd.f32 %v1640, %v1648
    %v1661 = vadd.f32 %v1641, %v1648
    %v1662 = vadd.f32 %v1642, %v1648
    %v1663 = vadd.f32 %v1643, %v1648
    %v1664 = vadd.f32 %v1644, %v1648
    %v1665 = vmul.f32 %v1649, 0.5
    %v1666 = vmul.f32 %v1650, 0.5
    %v1667 = vmul.f32 %v1651, 0.5
    %v1668 = vmul.f32 %v1652, 0.5
    %v1669 = vmul.f32 %v1653, 0.5
    %v1670 = vmul.f32 %v1654, 0.5
    %v1671 = vmul.f32 %v1655, 0.5
    %v1672 = vmul.f32 %v1656, 0.5
    %v1673 = vmul.f32 %v1657, 0.5
    %v1674 = vmul.f32 %v1658, 0.5
    %v1675 = vmul.f32 %v1659, 0.5
    %v1676 = vmul.f32 %v1660, 0.5
    %v1677 = vmul.f32 %v1661, 0.5
    %v1678 = vmul.f32 %v1662, 0.5
    %v1679 = vmul.f32 %v1663, 0.5
    %v1680 = vmul.f32 %v1664, 0.5
    %v1681 = vmul.f32 %v1649, %v903
    %v1682 = vmul.f32 %v1650, %v903
    %v1683 = vmul.f32 %v1651, %v903
    %v1684 = vmul.f32 %v1652, %v903
    %v1685 = vmul.f32 %v1653, %v903
    %v1686 = vmul.f32 %v1654, %v903
    %v1687 = vmul.f32 %v1655, %v903
    %v1688 = vmul.f32 %v1656, %v903
    %v1689 = vmul.f32 %v1657, %v903
    %v1690 = vmul.f32 %v1658, %v903
    %v1691 = vmul.f32 %v1659, %v903
    %v1692 = vmul.f32 %v1660, %v903
    %v1693 = vmul.f32 %v1661, %v903
    %v1694 = vmul.f32 %v1662, %v903
    %v1695 = vmul.f32 %v1663, %v903
    %v1696 = vmul.f32 %v1664, %v903
    %v1697 = verf.f32.pop %v1681
    %v1698 = verf.f32.pop %v1682
    %v1699 = verf.f32.pop %v1683
    %v1700 = verf.f32.pop %v1684
    %v1701 = verf.f32.pop %v1685
    %v1702 = verf.f32.pop %v1686
    %v1703 = verf.f32.pop %v1687
    %v1704 = verf.f32.pop %v1688
    %v1705 = verf.f32.pop %v1689
    %v1706 = verf.f32.pop %v1690
    %v1707 = verf.f32.pop %v1691
    %v1708 = verf.f32.pop %v1692
    %v1709 = verf.f32.pop %v1693
    %v1710 = verf.f32.pop %v1694
    %v1711 = verf.f32.pop %v1695
    %v1712 = verf.f32.pop %v1696
    %v1713 = vadd.f32 %v1697, 1.0
    %v1714 = vadd.f32 %v1698, 1.0
    %v1715 = vadd.f32 %v1699, 1.0
    %v1716 = vadd.f32 %v1700, 1.0
    %v1717 = vadd.f32 %v1701, 1.0
    %v1718 = vadd.f32 %v1702, 1.0
    %v1719 = vadd.f32 %v1703, 1.0
    %v1720 = vadd.f32 %v1704, 1.0
    %v1721 = vadd.f32 %v1705, 1.0
    %v1722 = vadd.f32 %v1706, 1.0
    %v1723 = vadd.f32 %v1707, 1.0
    %v1724 = vadd.f32 %v1708, 1.0
    %v1725 = vadd.f32 %v1709, 1.0
    %v1726 = vadd.f32 %v1710, 1.0
    %v1727 = vadd.f32 %v1711, 1.0
    %v1728 = vadd.f32 %v1712, 1.0
    %v1729 = vmul.f32 %v1665, %v1713
    %v1730 = vmul.f32 %v1666, %v1714
    %v1731 = vmul.f32 %v1667, %v1715
    %v1732 = vmul.f32 %v1668, %v1716
    %v1733 = vmul.f32 %v1669, %v1717
    %v1734 = vmul.f32 %v1670, %v1718
    %v1735 = vmul.f32 %v1671, %v1719
    %v1736 = vmul.f32 %v1672, %v1720
    %v1737 = vmul.f32 %v1673, %v1721
    %v1738 = vmul.f32 %v1674, %v1722
    %v1739 = vmul.f32 %v1675, %v1723
    %v1740 = vmul.f32 %v1676, %v1724
    %v1741 = vmul.f32 %v1677, %v1725
    %v1742 = vmul.f32 %v1678, %v1726
    %v1743 = vmul.f32 %v1679, %v1727
    %v1744 = vmul.f32 %v1680, %v1728
    %s1745 = scalar_lea.vmem [#allocation7], 256
    %v1746 = vld [vmem:[%s1745] sm:$0xf]
    %v1747 = vld [vmem:[%s1745 + $0x4] sm:$0xf]
    %v1748 = vld [vmem:[%s1745 + $0x8] sm:$0xf]
    %v1749 = vld [vmem:[%s1745 + $0xc] sm:$0xf]
    %v1750 = vld [vmem:[%s1745 + $0x10] sm:$0xf]
    %v1751 = vld [vmem:[%s1745 + $0x14] sm:$0xf]
    %v1752 = vld [vmem:[%s1745 + $0x18] sm:$0xf]
    %v1753 = vld [vmem:[%s1745 + $0x1c] sm:$0xf]
    %v1754 = vld [vmem:[%s1745 + $0x20] sm:$0xf]
    %v1755 = vld [vmem:[%s1745 + $0x24] sm:$0xf]
    %v1756 = vld [vmem:[%s1745 + $0x28] sm:$0xf]
    %v1757 = vld [vmem:[%s1745 + $0x2c] sm:$0xf]
    %v1758 = vld [vmem:[%s1745 + $0x30] sm:$0xf]
    %v1759 = vld [vmem:[%s1745 + $0x34] sm:$0xf]
    %v1760 = vld [vmem:[%s1745 + $0x38] sm:$0xf]
    %v1761 = vld [vmem:[%s1745 + $0x3c] sm:$0xf]
    %s1762 = scalar_lea.vmem [#allocation7], 320
    %v1763 = vld [vmem:[%s1762] sm:$0xf]
    %v1764 = vld [vmem:[%s1762 + $0x4] sm:$0xf]
    %v1765 = vld [vmem:[%s1762 + $0x8] sm:$0xf]
    %v1766 = vld [vmem:[%s1762 + $0xc] sm:$0xf]
    %v1767 = vld [vmem:[%s1762 + $0x10] sm:$0xf]
    %v1768 = vld [vmem:[%s1762 + $0x14] sm:$0xf]
    %v1769 = vld [vmem:[%s1762 + $0x18] sm:$0xf]
    %v1770 = vld [vmem:[%s1762 + $0x1c] sm:$0xf]
    %v1771 = vld [vmem:[%s1762 + $0x20] sm:$0xf]
    %v1772 = vld [vmem:[%s1762 + $0x24] sm:$0xf]
    %v1773 = vld [vmem:[%s1762 + $0x28] sm:$0xf]
    %v1774 = vld [vmem:[%s1762 + $0x2c] sm:$0xf]
    %v1775 = vld [vmem:[%s1762 + $0x30] sm:$0xf]
    %v1776 = vld [vmem:[%s1762 + $0x34] sm:$0xf]
    %v1777 = vld [vmem:[%s1762 + $0x38] sm:$0xf]
    %v1778 = vld [vmem:[%s1762 + $0x3c] sm:$0xf]
    %v1779 = vpack.c.bf16 %v1730, %v1729
    %v1780 = vpack.c.bf16 %v1732, %v1731
    %v1781 = vpack.c.bf16 %v1734, %v1733
    %v1782 = vpack.c.bf16 %v1736, %v1735
    %v1783 = vpack.c.bf16 %v1738, %v1737
    %v1784 = vpack.c.bf16 %v1740, %v1739
    %v1785 = vpack.c.bf16 %v1742, %v1741
    %v1786 = vpack.c.bf16 %v1744, %v1743
    %v1803 = vunpack.c.l.b16 %v1746
    %v1804 = vunpack.c.l.b16 %v1747
    %v1805 = vunpack.c.l.b16 %v1748
    %v1806 = vunpack.c.l.b16 %v1749
    %v1807 = vunpack.c.l.b16 %v1750
    %v1808 = vunpack.c.l.b16 %v1751
    %v1809 = vunpack.c.l.b16 %v1752
    %v1810 = vunpack.c.l.b16 %v1753
    %v1811 = vunpack.c.l.b16 %v1754
    %v1812 = vunpack.c.l.b16 %v1755
    %v1813 = vunpack.c.l.b16 %v1756
    %v1814 = vunpack.c.l.b16 %v1757
    %v1815 = vunpack.c.l.b16 %v1758
    %v1816 = vunpack.c.l.b16 %v1759
    %v1817 = vunpack.c.l.b16 %v1760
    %v1818 = vunpack.c.l.b16 %v1761
    %v1819 = vpack.c.b16 %v1804, %v1803
    %v1820 = vpack.c.b16 %v1806, %v1805
    %v1821 = vpack.c.b16 %v1808, %v1807
    %v1822 = vpack.c.b16 %v1810, %v1809
    %v1823 = vpack.c.b16 %v1812, %v1811
    %v1824 = vpack.c.b16 %v1814, %v1813
    %v1825 = vpack.c.b16 %v1816, %v1815
    %v1826 = vpack.c.b16 %v1818, %v1817
    %1835 = vmatprep.subr.bf16.mxu0 0
    %1836 = vmatpush1.bf16.msra.mxu0 %v1819
    %1837 = vmatprep.subr.bf16.mxu0 0
    %1838 = vmatpush1.bf16.msra.mxu0 %v1820
    %1839 = vmatprep.subr.bf16.mxu0 0
    %1840 = vmatpush1.bf16.msra.mxu0 %v1821
    %1841 = vmatprep.subr.bf16.mxu0 0
    %1842 = vmatpush1.bf16.msra.mxu0 %v1822
    %1843 = vmatprep.subr.bf16.mxu0 0
    %1844 = vmatpush1.bf16.msra.mxu0 %v1823
    %1845 = vmatprep.subr.bf16.mxu0 0
    %1846 = vmatpush1.bf16.msra.mxu0 %v1824
    %1847 = vmatprep.subr.bf16.mxu0 0
    %1848 = vmatpush1.bf16.msra.mxu0 %v1825
    %1849 = vmatprep.subr.bf16.mxu0 0
    %1850 = vmatpush1.bf16.msra.mxu0 %v1826
    %1851 = vmatprep.subr.bf16.mxu0 0
    %1852 = vmatpush1.bf16.msra.mxu0 0
    %1853 = vmatprep.subr.bf16.mxu0 0
    %1854 = vmatpush1.bf16.msra.mxu0 0
    %1855 = vmatprep.subr.bf16.mxu0 0
    %1856 = vmatpush1.bf16.msra.mxu0 0
    %1857 = vmatprep.subr.bf16.mxu0 0
    %1858 = vmatpush1.bf16.msra.mxu0 0
    %1859 = vmatprep.subr.bf16.mxu0 0
    %1860 = vmatpush1.bf16.msra.mxu0 0
    %1861 = vmatprep.subr.bf16.mxu0 0
    %1862 = vmatpush1.bf16.msra.mxu0 0
    %1863 = vmatprep.subr.bf16.mxu0 0
    %1864 = vmatpush1.bf16.msra.mxu0 0
    %1865 = vmatprep.subr.bf16.mxu0 0
    %1866 = vmatpush1.bf16.msra.mxu0 0
    %1867 = vmatprep.mubr.bf16.mxu0 0
    %1868 = vmatmul.mubr.bf16.gmra.mrb[0].mxu0 %v1779
    %v1869 = vpop.f32.mrb[0].mxu0
    %v1870 = vadd.f32 0.0, %v1869
    %v1871 = vpop.f32.mrb[0].mxu0
    %v1872 = vpop.f32.mrb[0].mxu0
    %v1873 = vadd.f32 0.0, %v1872
    %v1874 = vpop.f32.mrb[0].mxu0
    %1875 = vmatprep.mubr.bf16.mxu0 0
    %1876 = vmatmul.mubr.bf16.gmra.mrb[0].mxu0 %v1780
    %v1877 = vpop.f32.mrb[0].mxu0
    %v1878 = vadd.f32 0.0, %v1877
    %v1879 = vpop.f32.mrb[0].mxu0
    %v1880 = vpop.f32.mrb[0].mxu0
    %v1881 = vadd.f32 0.0, %v1880
    %v1882 = vpop.f32.mrb[0].mxu0
    %1883 = vmatprep.mubr.bf16.mxu0 0
    %1884 = vmatmul.mubr.bf16.gmra.mrb[0].mxu0 %v1781
    %v1885 = vpop.f32.mrb[0].mxu0
    %v1886 = vadd.f32 0.0, %v1885
    %v1887 = vpop.f32.mrb[0].mxu0
    %v1888 = vpop.f32.mrb[0].mxu0
    %v1889 = vadd.f32 0.0, %v1888
    %v1890 = vpop.f32.mrb[0].mxu0
    %1891 = vmatprep.mubr.bf16.mxu0 0
    %1892 = vmatmul.mubr.bf16.gmra.mrb[0].mxu0 %v1782
    %v1893 = vpop.f32.mrb[0].mxu0
    %v1894 = vadd.f32 0.0, %v1893
    %v1895 = vpop.f32.mrb[0].mxu0
    %v1896 = vpop.f32.mrb[0].mxu0
    %v1897 = vadd.f32 0.0, %v1896
    %v1898 = vpop.f32.mrb[0].mxu0
    %1899 = vmatprep.mubr.bf16.mxu0 0
    %1900 = vmatmul.mubr.bf16.gmra.mrb[0].mxu0 %v1783
    %v1901 = vpop.f32.mrb[0].mxu0
    %v1902 = vadd.f32 0.0, %v1901
    %v1903 = vpop.f32.mrb[0].mxu0
    %v1904 = vpop.f32.mrb[0].mxu0
    %v1905 = vadd.f32 0.0, %v1904
    %v1906 = vpop.f32.mrb[0].mxu0
    %1907 = vmatprep.mubr.bf16.mxu0 0
    %1908 = vmatmul.mubr.bf16.gmra.mrb[0].mxu0 %v1784
    %v1909 = vpop.f32.mrb[0].mxu0
    %v1910 = vadd.f32 0.0, %v1909
    %v1911 = vpop.f32.mrb[0].mxu0
    %v1912 = vpop.f32.mrb[0].mxu0
    %v1913 = vadd.f32 0.0, %v1912
    %v1914 = vpop.f32.mrb[0].mxu0
    %1915 = vmatprep.mubr.bf16.mxu0 0
    %1916 = vmatmul.mubr.bf16.gmra.mrb[0].mxu0 %v1785
    %v1917 = vpop.f32.mrb[0].mxu0
    %v1918 = vadd.f32 0.0, %v1917
    %v1919 = vpop.f32.mrb[0].mxu0
    %v1920 = vpop.f32.mrb[0].mxu0
    %v1921 = vadd.f32 0.0, %v1920
    %v1922 = vpop.f32.mrb[0].mxu0
    %1923 = vmatprep.mubr.bf16.mxu0 0
    %1924 = vmatmul.mubr.bf16.gmra.mrb[0].mxu0 %v1786
    %v1925 = vpop.f32.mrb[0].mxu0
    %v1926 = vadd.f32 0.0, %v1925
    %v1927 = vpop.f32.mrb[0].mxu0
    %v1928 = vpop.f32.mrb[0].mxu0
    %v1929 = vadd.f32 0.0, %v1928
    %v1930 = vpop.f32.mrb[0].mxu0
    %1931 = vdwg.mxu0
    %v1932 = vpack.c.bf16 %v1873, %v1870
    %v1933 = vpack.c.bf16 %v1881, %v1878
    %v1934 = vpack.c.bf16 %v1889, %v1886
    %v1935 = vpack.c.bf16 %v1897, %v1894
    %v1936 = vpack.c.bf16 %v1905, %v1902
    %v1937 = vpack.c.bf16 %v1913, %v1910
    %v1938 = vpack.c.bf16 %v1921, %v1918
    %v1939 = vpack.c.bf16 %v1929, %v1926
    %v1940 = vpack.c.bf16 %v1418, %v1417
    %v1941 = vpack.c.bf16 %v1420, %v1419
    %v1942 = vpack.c.bf16 %v1422, %v1421
    %v1943 = vpack.c.bf16 %v1424, %v1423
    %v1944 = vpack.c.bf16 %v1426, %v1425
    %v1945 = vpack.c.bf16 %v1428, %v1427
    %v1946 = vpack.c.bf16 %v1430, %v1429
    %v1947 = vpack.c.bf16 %v1432, %v1431
    %v1964 = vunpack.c.l.b16 %v1763
    %v1965 = vunpack.c.l.b16 %v1764
    %v1966 = vunpack.c.l.b16 %v1765
    %v1967 = vunpack.c.l.b16 %v1766
    %v1968 = vunpack.c.l.b16 %v1767
    %v1969 = vunpack.c.l.b16 %v1768
    %v1970 = vunpack.c.l.b16 %v1769
    %v1971 = vunpack.c.l.b16 %v1770
    %v1972 = vunpack.c.l.b16 %v1771
    %v1973 = vunpack.c.l.b16 %v1772
    %v1974 = vunpack.c.l.b16 %v1773
    %v1975 = vunpack.c.l.b16 %v1774
    %v1976 = vunpack.c.l.b16 %v1775
    %v1977 = vunpack.c.l.b16 %v1776
    %v1978 = vunpack.c.l.b16 %v1777
    %v1979 = vunpack.c.l.b16 %v1778
    %v1980 = vpack.c.b16 %v1965, %v1964
    %v1981 = vpack.c.b16 %v1967, %v1966
    %v1982 = vpack.c.b16 %v1969, %v1968
    %v1983 = vpack.c.b16 %v1971, %v1970
    %v1984 = vpack.c.b16 %v1973, %v1972
    %v1985 = vpack.c.b16 %v1975, %v1974
    %v1986 = vpack.c.b16 %v1977, %v1976
    %v1987 = vpack.c.b16 %v1979, %v1978
    %1996 = vmatprep.subr.bf16.mxu0 0
    %1997 = vmatpush1.bf16.msra.mxu0 %v1980
    %1998 = vmatprep.subr.bf16.mxu0 0
    %1999 = vmatpush1.bf16.msra.mxu0 %v1981
    %2000 = vmatprep.subr.bf16.mxu0 0
    %2001 = vmatpush1.bf16.msra.mxu0 %v1982
    %2002 = vmatprep.subr.bf16.mxu0 0
    %2003 = vmatpush1.bf16.msra.mxu0 %v1983
    %2004 = vmatprep.subr.bf16.mxu0 0
    %2005 = vmatpush1.bf16.msra.mxu0 %v1984
    %2006 = vmatprep.subr.bf16.mxu0 0
    %2007 = vmatpush1.bf16.msra.mxu0 %v1985
    %2008 = vmatprep.subr.bf16.mxu0 0
    %2009 = vmatpush1.bf16.msra.mxu0 %v1986
    %2010 = vmatprep.subr.bf16.mxu0 0
    %2011 = vmatpush1.bf16.msra.mxu0 %v1987
    %2012 = vmatprep.subr.bf16.mxu0 0
    %2013 = vmatpush1.bf16.msra.mxu0 0
    %2014 = vmatprep.subr.bf16.mxu0 0
    %2015 = vmatpush1.bf16.msra.mxu0 0
    %2016 = vmatprep.subr.bf16.mxu0 0
    %2017 = vmatpush1.bf16.msra.mxu0 0
    %2018 = vmatprep.subr.bf16.mxu0 0
    %2019 = vmatpush1.bf16.msra.mxu0 0
    %2020 = vmatprep.subr.bf16.mxu0 0
    %2021 = vmatpush1.bf16.msra.mxu0 0
    %2022 = vmatprep.subr.bf16.mxu0 0
    %2023 = vmatpush1.bf16.msra.mxu0 0
    %2024 = vmatprep.subr.bf16.mxu0 0
    %2025 = vmatpush1.bf16.msra.mxu0 0
    %2026 = vmatprep.subr.bf16.mxu0 0
    %2027 = vmatpush1.bf16.msra.mxu0 0
    %2028 = vmatprep.mubr.bf16.mxu0 0
    %2029 = vmatmul.mubr.bf16.gmra.mrb[0].mxu0 %v1940
    %v2030 = vpop.f32.mrb[0].mxu0
    %v2031 = vadd.f32 0.0, %v2030
    %v2032 = vpop.f32.mrb[0].mxu0
    %v2033 = vpop.f32.mrb[0].mxu0
    %v2034 = vadd.f32 0.0, %v2033
    %v2035 = vpop.f32.mrb[0].mxu0
    %2036 = vmatprep.mubr.bf16.mxu0 0
    %2037 = vmatmul.mubr.bf16.gmra.mrb[0].mxu0 %v1941
    %v2038 = vpop.f32.mrb[0].mxu0
    %v2039 = vadd.f32 0.0, %v2038
    %v2040 = vpop.f32.mrb[0].mxu0
    %v2041 = vpop.f32.mrb[0].mxu0
    %v2042 = vadd.f32 0.0, %v2041
    %v2043 = vpop.f32.mrb[0].mxu0
    %2044 = vmatprep.mubr.bf16.mxu0 0
    %2045 = vmatmul.mubr.bf16.gmra.mrb[0].mxu0 %v1942
    %v2046 = vpop.f32.mrb[0].mxu0
    %v2047 = vadd.f32 0.0, %v2046
    %v2048 = vpop.f32.mrb[0].mxu0
    %v2049 = vpop.f32.mrb[0].mxu0
    %v2050 = vadd.f32 0.0, %v2049
    %v2051 = vpop.f32.mrb[0].mxu0
    %2052 = vmatprep.mubr.bf16.mxu0 0
    %2053 = vmatmul.mubr.bf16.gmra.mrb[0].mxu0 %v1943
    %v2054 = vpop.f32.mrb[0].mxu0
    %v2055 = vadd.f32 0.0, %v2054
    %v2056 = vpop.f32.mrb[0].mxu0
    %v2057 = vpop.f32.mrb[0].mxu0
    %v2058 = vadd.f32 0.0, %v2057
    %v2059 = vpop.f32.mrb[0].mxu0
    %2060 = vmatprep.mubr.bf16.mxu0 0
    %2061 = vmatmul.mubr.bf16.gmra.mrb[0].mxu0 %v1944
    %v2062 = vpop.f32.mrb[0].mxu0
    %v2063 = vadd.f32 0.0, %v2062
    %v2064 = vpop.f32.mrb[0].mxu0
    %v2065 = vpop.f32.mrb[0].mxu0
    %v2066 = vadd.f32 0.0, %v2065
    %v2067 = vpop.f32.mrb[0].mxu0
    %2068 = vmatprep.mubr.bf16.mxu0 0
    %2069 = vmatmul.mubr.bf16.gmra.mrb[0].mxu0 %v1945
    %v2070 = vpop.f32.mrb[0].mxu0
    %v2071 = vadd.f32 0.0, %v2070
    %v2072 = vpop.f32.mrb[0].mxu0
    %v2073 = vpop.f32.mrb[0].mxu0
    %v2074 = vadd.f32 0.0, %v2073
    %v2075 = vpop.f32.mrb[0].mxu0
    %2076 = vmatprep.mubr.bf16.mxu0 0
    %2077 = vmatmul.mubr.bf16.gmra.mrb[0].mxu0 %v1946
    %v2078 = vpop.f32.mrb[0].mxu0
    %v2079 = vadd.f32 0.0, %v2078
    %v2080 = vpop.f32.mrb[0].mxu0
    %v2081 = vpop.f32.mrb[0].mxu0
    %v2082 = vadd.f32 0.0, %v2081
    %v2083 = vpop.f32.mrb[0].mxu0
    %2084 = vmatprep.mubr.bf16.mxu0 0
    %2085 = vmatmul.mubr.bf16.gmra.mrb[0].mxu0 %v1947
    %v2086 = vpop.f32.mrb[0].mxu0
    %v2087 = vadd.f32 0.0, %v2086
    %v2088 = vpop.f32.mrb[0].mxu0
    %v2089 = vpop.f32.mrb[0].mxu0
    %v2090 = vadd.f32 0.0, %v2089
    %v2091 = vpop.f32.mrb[0].mxu0
    %2092 = vdwg.mxu0
    %2093 = vmatprep.subr.bf16.mxu0 0
    %2094 = vmatpush1.bf16.msra.mxu0 %v1932
    %2095 = vmatprep.subr.bf16.mxu0 0
    %2096 = vmatpush1.bf16.msra.mxu0 %v1933
    %2097 = vmatprep.subr.bf16.mxu0 0
    %2098 = vmatpush1.bf16.msra.mxu0 %v1934
    %2099 = vmatprep.subr.bf16.mxu0 0
    %2100 = vmatpush1.bf16.msra.mxu0 %v1935
    %2101 = vmatprep.subr.bf16.mxu0 0
    %2102 = vmatpush1.bf16.msra.mxu0 %v1936
    %2103 = vmatprep.subr.bf16.mxu0 0
    %2104 = vmatpush1.bf16.msra.mxu0 %v1937
    %2105 = vmatprep.subr.bf16.mxu0 0
    %2106 = vmatpush1.bf16.msra.mxu0 %v1938
    %2107 = vmatprep.subr.bf16.mxu0 0
    %2108 = vmatpush1.bf16.msra.mxu0 %v1939
    %2109 = vmatprep.subr.bf16.mxu0 0
    %2110 = vmatpush1.bf16.msra.mxu0 0
    %2111 = vmatprep.subr.bf16.mxu0 0
    %2112 = vmatpush1.bf16.msra.mxu0 0
    %2113 = vmatprep.subr.bf16.mxu0 0
    %2114 = vmatpush1.bf16.msra.mxu0 0
    %2115 = vmatprep.subr.bf16.mxu0 0
    %2116 = vmatpush1.bf16.msra.mxu0 0
    %2117 = vmatprep.subr.bf16.mxu0 0
    %2118 = vmatpush1.bf16.msra.mxu0 0
    %2119 = vmatprep.subr.bf16.mxu0 0
    %2120 = vmatpush1.bf16.msra.mxu0 0
    %2121 = vmatprep.subr.bf16.mxu0 0
    %2122 = vmatpush1.bf16.msra.mxu0 0
    %2123 = vmatprep.subr.bf16.mxu0 0
    %2124 = vmatpush1.bf16.msra.mxu0 0
    %2125 = vmatprep.mubr.bf16.mxu0 0
    %2126 = vmatmul.mubr.bf16.gmra.mrb[0].mxu0 %v519
    %v2127 = vpop.f32.mrb[0].mxu0
    %v2128 = vadd.f32 %v2031, %v2127
    %v2129 = vpop.f32.mrb[0].mxu0
    %v2130 = vpop.f32.mrb[0].mxu0
    %v2131 = vadd.f32 %v2034, %v2130
    %v2132 = vpop.f32.mrb[0].mxu0
    %2133 = vmatprep.mubr.bf16.mxu0 0
    %2134 = vmatmul.mubr.bf16.gmra.mrb[0].mxu0 %v520
    %v2135 = vpop.f32.mrb[0].mxu0
    %v2136 = vadd.f32 %v2039, %v2135
    %v2137 = vpop.f32.mrb[0].mxu0
    %v2138 = vpop.f32.mrb[0].mxu0
    %v2139 = vadd.f32 %v2042, %v2138
    %v2140 = vpop.f32.mrb[0].mxu0
    %2141 = vmatprep.mubr.bf16.mxu0 0
    %2142 = vmatmul.mubr.bf16.gmra.mrb[0].mxu0 %v521
    %v2143 = vpop.f32.mrb[0].mxu0
    %v2144 = vadd.f32 %v2047, %v2143
    %v2145 = vpop.f32.mrb[0].mxu0
    %v2146 = vpop.f32.mrb[0].mxu0
    %v2147 = vadd.f32 %v2050, %v2146
    %v2148 = vpop.f32.mrb[0].mxu0
    %2149 = vmatprep.mubr.bf16.mxu0 0
    %2150 = vmatmul.mubr.bf16.gmra.mrb[0].mxu0 %v522
    %v2151 = vpop.f32.mrb[0].mxu0
    %v2152 = vadd.f32 %v2055, %v2151
    %v2153 = vpop.f32.mrb[0].mxu0
    %v2154 = vpop.f32.mrb[0].mxu0
    %v2155 = vadd.f32 %v2058, %v2154
    %v2156 = vpop.f32.mrb[0].mxu0
    %2157 = vmatprep.mubr.bf16.mxu0 0
    %2158 = vmatmul.mubr.bf16.gmra.mrb[0].mxu0 %v523
    %v2159 = vpop.f32.mrb[0].mxu0
    %v2160 = vadd.f32 %v2063, %v2159
    %v2161 = vpop.f32.mrb[0].mxu0
    %v2162 = vpop.f32.mrb[0].mxu0
    %v2163 = vadd.f32 %v2066, %v2162
    %v2164 = vpop.f32.mrb[0].mxu0
    %2165 = vmatprep.mubr.bf16.mxu0 0
    %2166 = vmatmul.mubr.bf16.gmra.mrb[0].mxu0 %v524
    %v2167 = vpop.f32.mrb[0].mxu0
    %v2168 = vadd.f32 %v2071, %v2167
    %v2169 = vpop.f32.mrb[0].mxu0
    %v2170 = vpop.f32.mrb[0].mxu0
    %v2171 = vadd.f32 %v2074, %v2170
    %v2172 = vpop.f32.mrb[0].mxu0
    %2173 = vmatprep.mubr.bf16.mxu0 0
    %2174 = vmatmul.mubr.bf16.gmra.mrb[0].mxu0 %v525
    %v2175 = vpop.f32.mrb[0].mxu0
    %v2176 = vadd.f32 %v2079, %v2175
    %v2177 = vpop.f32.mrb[0].mxu0
    %v2178 = vpop.f32.mrb[0].mxu0
    %v2179 = vadd.f32 %v2082, %v2178
    %v2180 = vpop.f32.mrb[0].mxu0
    %2181 = vmatprep.mubr.bf16.mxu0 0
    %2182 = vmatmul.mubr.bf16.gmra.mrb[0].mxu0 %v526
    %v2183 = vpop.f32.mrb[0].mxu0
    %v2184 = vadd.f32 %v2087, %v2183
    %v2185 = vpop.f32.mrb[0].mxu0
    %v2186 = vpop.f32.mrb[0].mxu0
    %v2187 = vadd.f32 %v2090, %v2186
    %v2188 = vpop.f32.mrb[0].mxu0
    %2189 = vdwg.mxu0
    %v2190 = vlaneseq
    %v2191 = vshrl.u32 %v2190, 7
    %v2192 = vsub.s32 6, %v2191
    %v2193 = vrot.slane %v106, %v2192
    %v2194 = vadd.f32 %v2128, %v2193
    %v2195 = vadd.f32 %v2131, %v2193
    %v2196 = vadd.f32 %v2136, %v2193
    %v2197 = vadd.f32 %v2139, %v2193
    %v2198 = vadd.f32 %v2144, %v2193
    %v2199 = vadd.f32 %v2147, %v2193
    %v2200 = vadd.f32 %v2152, %v2193
    %v2201 = vadd.f32 %v2155, %v2193
    %v2202 = vadd.f32 %v2160, %v2193
    %v2203 = vadd.f32 %v2163, %v2193
    %v2204 = vadd.f32 %v2168, %v2193
    %v2205 = vadd.f32 %v2171, %v2193
    %v2206 = vadd.f32 %v2176, %v2193
    %v2207 = vadd.f32 %v2179, %v2193
    %v2208 = vadd.f32 %v2184, %v2193
    %v2209 = vadd.f32 %v2187, %v2193
    %2210 = vadd.xlane.f32.xlu0 %v2194
    %v2211 = vpop.xlane.xlu0 %2210
    %2212 = vadd.xlane.f32.xlu0 %v2195
    %v2213 = vpop.xlane.xlu0 %2212
    %2214 = vadd.xlane.f32.xlu0 %v2196
    %v2215 = vpop.xlane.xlu0 %2214
    %2216 = vadd.xlane.f32.xlu0 %v2197
    %v2217 = vpop.xlane.xlu0 %2216
    %2218 = vadd.xlane.f32.xlu0 %v2198
    %v2219 = vpop.xlane.xlu0 %2218
    %2220 = vadd.xlane.f32.xlu0 %v2199
    %v2221 = vpop.xlane.xlu0 %2220
    %2222 = vadd.xlane.f32.xlu0 %v2200
    %v2223 = vpop.xlane.xlu0 %2222
    %2224 = vadd.xlane.f32.xlu0 %v2201
    %v2225 = vpop.xlane.xlu0 %2224
    %2226 = vadd.xlane.f32.xlu0 %v2202
    %v2227 = vpop.xlane.xlu0 %2226
    %2228 = vadd.xlane.f32.xlu0 %v2203
    %v2229 = vpop.xlane.xlu0 %2228
    %2230 = vadd.xlane.f32.xlu0 %v2204
    %v2231 = vpop.xlane.xlu0 %2230
    %2232 = vadd.xlane.f32.xlu0 %v2205
    %v2233 = vpop.xlane.xlu0 %2232
    %2234 = vadd.xlane.f32.xlu0 %v2206
    %v2235 = vpop.xlane.xlu0 %2234
    %2236 = vadd.xlane.f32.xlu0 %v2207
    %v2237 = vpop.xlane.xlu0 %2236
    %2238 = vadd.xlane.f32.xlu0 %v2208
    %v2239 = vpop.xlane.xlu0 %2238
    %2240 = vadd.xlane.f32.xlu0 %v2209
    %v2241 = vpop.xlane.xlu0 %2240
    %v2242 = vmul.f32 %v2211, 0.03125
    %v2243 = vmul.f32 %v2213, 0.03125
    %v2244 = vmul.f32 %v2215, 0.03125
    %v2245 = vmul.f32 %v2217, 0.03125
    %v2246 = vmul.f32 %v2219, 0.03125
    %v2247 = vmul.f32 %v2221, 0.03125
    %v2248 = vmul.f32 %v2223, 0.03125
    %v2249 = vmul.f32 %v2225, 0.03125
    %v2250 = vmul.f32 %v2227, 0.03125
    %v2251 = vmul.f32 %v2229, 0.03125
    %v2252 = vmul.f32 %v2231, 0.03125
    %v2253 = vmul.f32 %v2233, 0.03125
    %v2254 = vmul.f32 %v2235, 0.03125
    %v2255 = vmul.f32 %v2237, 0.03125
    %v2256 = vmul.f32 %v2239, 0.03125
    %v2257 = vmul.f32 %v2241, 0.03125
    %vm2258 = vcmp.lt.s32.totalorder %v701, 32
    %v2259 = vsub.f32 %v2194, %v2242
    %v2260 = vsub.f32 %v2195, %v2243
    %v2261 = vsub.f32 %v2196, %v2244
    %v2262 = vsub.f32 %v2197, %v2245
    %v2263 = vsub.f32 %v2198, %v2246
    %v2264 = vsub.f32 %v2199, %v2247
    %v2265 = vsub.f32 %v2200, %v2248
    %v2266 = vsub.f32 %v2201, %v2249
    %v2267 = vsub.f32 %v2202, %v2250
    %v2268 = vsub.f32 %v2203, %v2251
    %v2269 = vsub.f32 %v2204, %v2252
    %v2270 = vsub.f32 %v2205, %v2253
    %v2271 = vsub.f32 %v2206, %v2254
    %v2272 = vsub.f32 %v2207, %v2255
    %v2273 = vsub.f32 %v2208, %v2256
    %v2274 = vsub.f32 %v2209, %v2257
    %v2275 = vsel %vm2258, %v2259, 0.0
    %v2276 = vsel %vm2258, %v2260, 0.0
    %v2277 = vsel %vm2258, %v2261, 0.0
    %v2278 = vsel %vm2258, %v2262, 0.0
    %v2279 = vsel %vm2258, %v2263, 0.0
    %v2280 = vsel %vm2258, %v2264, 0.0
    %v2281 = vsel %vm2258, %v2265, 0.0
    %v2282 = vsel %vm2258, %v2266, 0.0
    %v2283 = vsel %vm2258, %v2267, 0.0
    %v2284 = vsel %vm2258, %v2268, 0.0
    %v2285 = vsel %vm2258, %v2269, 0.0
    %v2286 = vsel %vm2258, %v2270, 0.0
    %v2287 = vsel %vm2258, %v2271, 0.0
    %v2288 = vsel %vm2258, %v2272, 0.0
    %v2289 = vsel %vm2258, %v2273, 0.0
    %v2290 = vsel %vm2258, %v2274, 0.0
    %v2291 = vmul.f32 %v2275, %v2275
    %v2292 = vmul.f32 %v2276, %v2276
    %v2293 = vmul.f32 %v2277, %v2277
    %v2294 = vmul.f32 %v2278, %v2278
    %v2295 = vmul.f32 %v2279, %v2279
    %v2296 = vmul.f32 %v2280, %v2280
    %v2297 = vmul.f32 %v2281, %v2281
    %v2298 = vmul.f32 %v2282, %v2282
    %v2299 = vmul.f32 %v2283, %v2283
    %v2300 = vmul.f32 %v2284, %v2284
    %v2301 = vmul.f32 %v2285, %v2285
    %v2302 = vmul.f32 %v2286, %v2286
    %v2303 = vmul.f32 %v2287, %v2287
    %v2304 = vmul.f32 %v2288, %v2288
    %v2305 = vmul.f32 %v2289, %v2289
    %v2306 = vmul.f32 %v2290, %v2290
    %2307 = vadd.xlane.f32.xlu0 %v2291
    %v2308 = vpop.xlane.xlu0 %2307
    %2309 = vadd.xlane.f32.xlu0 %v2292
    %v2310 = vpop.xlane.xlu0 %2309
    %2311 = vadd.xlane.f32.xlu0 %v2293
    %v2312 = vpop.xlane.xlu0 %2311
    %2313 = vadd.xlane.f32.xlu0 %v2294
    %v2314 = vpop.xlane.xlu0 %2313
    %2315 = vadd.xlane.f32.xlu0 %v2295
    %v2316 = vpop.xlane.xlu0 %2315
    %2317 = vadd.xlane.f32.xlu0 %v2296
    %v2318 = vpop.xlane.xlu0 %2317
    %2319 = vadd.xlane.f32.xlu0 %v2297
    %v2320 = vpop.xlane.xlu0 %2319
    %2321 = vadd.xlane.f32.xlu0 %v2298
    %v2322 = vpop.xlane.xlu0 %2321
    %2323 = vadd.xlane.f32.xlu0 %v2299
    %v2324 = vpop.xlane.xlu0 %2323
    %2325 = vadd.xlane.f32.xlu0 %v2300
    %v2326 = vpop.xlane.xlu0 %2325
    %2327 = vadd.xlane.f32.xlu0 %v2301
    %v2328 = vpop.xlane.xlu0 %2327
    %2329 = vadd.xlane.f32.xlu0 %v2302
    %v2330 = vpop.xlane.xlu0 %2329
    %2331 = vadd.xlane.f32.xlu0 %v2303
    %v2332 = vpop.xlane.xlu0 %2331
    %2333 = vadd.xlane.f32.xlu0 %v2304
    %v2334 = vpop.xlane.xlu0 %2333
    %2335 = vadd.xlane.f32.xlu0 %v2305
    %v2336 = vpop.xlane.xlu0 %2335
    %2337 = vadd.xlane.f32.xlu0 %v2306
    %v2338 = vpop.xlane.xlu0 %2337
    %v2339 = vmul.f32 %v2308, 0.03125
    %v2340 = vmul.f32 %v2310, 0.03125
    %v2341 = vmul.f32 %v2312, 0.03125
    %v2342 = vmul.f32 %v2314, 0.03125
    %v2343 = vmul.f32 %v2316, 0.03125
    %v2344 = vmul.f32 %v2318, 0.03125
    %v2345 = vmul.f32 %v2320, 0.03125
    %v2346 = vmul.f32 %v2322, 0.03125
    %v2347 = vmul.f32 %v2324, 0.03125
    %v2348 = vmul.f32 %v2326, 0.03125
    %v2349 = vmul.f32 %v2328, 0.03125
    %v2350 = vmul.f32 %v2330, 0.03125
    %v2351 = vmul.f32 %v2332, 0.03125
    %v2352 = vmul.f32 %v2334, 0.03125
    %v2353 = vmul.f32 %v2336, 0.03125
    %v2354 = vmul.f32 %v2338, 0.03125
    %v2355 = vadd.f32 %v2339, 1e-05
    %v2356 = vadd.f32 %v2340, 1e-05
    %v2357 = vadd.f32 %v2341, 1e-05
    %v2358 = vadd.f32 %v2342, 1e-05
    %v2359 = vadd.f32 %v2343, 1e-05
    %v2360 = vadd.f32 %v2344, 1e-05
    %v2361 = vadd.f32 %v2345, 1e-05
    %v2362 = vadd.f32 %v2346, 1e-05
    %v2363 = vadd.f32 %v2347, 1e-05
    %v2364 = vadd.f32 %v2348, 1e-05
    %v2365 = vadd.f32 %v2349, 1e-05
    %v2366 = vadd.f32 %v2350, 1e-05
    %v2367 = vadd.f32 %v2351, 1e-05
    %v2368 = vadd.f32 %v2352, 1e-05
    %v2369 = vadd.f32 %v2353, 1e-05
    %v2370 = vadd.f32 %v2354, 1e-05
    %v2371 = vrsqrt.pop %v2355
    %v2372 = vrsqrt.pop %v2356
    %v2373 = vrsqrt.pop %v2357
    %v2374 = vrsqrt.pop %v2358
    %v2375 = vrsqrt.pop %v2359
    %v2376 = vrsqrt.pop %v2360
    %v2377 = vrsqrt.pop %v2361
    %v2378 = vrsqrt.pop %v2362
    %v2379 = vrsqrt.pop %v2363
    %v2380 = vrsqrt.pop %v2364
    %v2381 = vrsqrt.pop %v2365
    %v2382 = vrsqrt.pop %v2366
    %v2383 = vrsqrt.pop %v2367
    %v2384 = vrsqrt.pop %v2368
    %v2385 = vrsqrt.pop %v2369
    %v2386 = vrsqrt.pop %v2370
    %v2387 = vmul.f32 %v2275, %v2371
    %v2388 = vmul.f32 %v2276, %v2372
    %v2389 = vmul.f32 %v2277, %v2373
    %v2390 = vmul.f32 %v2278, %v2374
    %v2391 = vmul.f32 %v2279, %v2375
    %v2392 = vmul.f32 %v2280, %v2376
    %v2393 = vmul.f32 %v2281, %v2377
    %v2394 = vmul.f32 %v2282, %v2378
    %v2395 = vmul.f32 %v2283, %v2379
    %v2396 = vmul.f32 %v2284, %v2380
    %v2397 = vmul.f32 %v2285, %v2381
    %v2398 = vmul.f32 %v2286, %v2382
    %v2399 = vmul.f32 %v2287, %v2383
    %v2400 = vmul.f32 %v2288, %v2384
    %v2401 = vmul.f32 %v2289, %v2385
    %v2402 = vmul.f32 %v2290, %v2386
    %v2403 = vlaneseq
    %v2404 = vshrl.u32 %v2403, 7
    %v2405 = vsub.s32 7, %v2404
    %v2406 = vrot.slane %v106, %v2405
    %v2407 = vmul.f32 %v2387, %v2406
    %v2408 = vmul.f32 %v2388, %v2406
    %v2409 = vmul.f32 %v2389, %v2406
    %v2410 = vmul.f32 %v2390, %v2406
    %v2411 = vmul.f32 %v2391, %v2406
    %v2412 = vmul.f32 %v2392, %v2406
    %v2413 = vmul.f32 %v2393, %v2406
    %v2414 = vmul.f32 %v2394, %v2406
    %v2415 = vmul.f32 %v2395, %v2406
    %v2416 = vmul.f32 %v2396, %v2406
    %v2417 = vmul.f32 %v2397, %v2406
    %v2418 = vmul.f32 %v2398, %v2406
    %v2419 = vmul.f32 %v2399, %v2406
    %v2420 = vmul.f32 %v2400, %v2406
    %v2421 = vmul.f32 %v2401, %v2406
    %v2422 = vmul.f32 %v2402, %v2406
    %v2423 = vlaneseq
    %v2424 = vshrl.u32 %v2423, 7
    %v2425 = vsub.s32 0, %v2424
    %v2426 = vrot.slane %v107, %v2425
    %v2427 = vadd.f32 %v2407, %v2426
    %v2428 = vadd.f32 %v2408, %v2426
    %v2429 = vadd.f32 %v2409, %v2426
    %v2430 = vadd.f32 %v2410, %v2426
    %v2431 = vadd.f32 %v2411, %v2426
    %v2432 = vadd.f32 %v2412, %v2426
    %v2433 = vadd.f32 %v2413, %v2426
    %v2434 = vadd.f32 %v2414, %v2426
    %v2435 = vadd.f32 %v2415, %v2426
    %v2436 = vadd.f32 %v2416, %v2426
    %v2437 = vadd.f32 %v2417, %v2426
    %v2438 = vadd.f32 %v2418, %v2426
    %v2439 = vadd.f32 %v2419, %v2426
    %v2440 = vadd.f32 %v2420, %v2426
    %v2441 = vadd.f32 %v2421, %v2426
    %v2442 = vadd.f32 %v2422, %v2426
    %v2443 = vmul.f32 %v2427, 0.5
    %v2444 = vmul.f32 %v2428, 0.5
    %v2445 = vmul.f32 %v2429, 0.5
    %v2446 = vmul.f32 %v2430, 0.5
    %v2447 = vmul.f32 %v2431, 0.5
    %v2448 = vmul.f32 %v2432, 0.5
    %v2449 = vmul.f32 %v2433, 0.5
    %v2450 = vmul.f32 %v2434, 0.5
    %v2451 = vmul.f32 %v2435, 0.5
    %v2452 = vmul.f32 %v2436, 0.5
    %v2453 = vmul.f32 %v2437, 0.5
    %v2454 = vmul.f32 %v2438, 0.5
    %v2455 = vmul.f32 %v2439, 0.5
    %v2456 = vmul.f32 %v2440, 0.5
    %v2457 = vmul.f32 %v2441, 0.5
    %v2458 = vmul.f32 %v2442, 0.5
    %v2459 = vmul.f32 %v2427, %v903
    %v2460 = vmul.f32 %v2428, %v903
    %v2461 = vmul.f32 %v2429, %v903
    %v2462 = vmul.f32 %v2430, %v903
    %v2463 = vmul.f32 %v2431, %v903
    %v2464 = vmul.f32 %v2432, %v903
    %v2465 = vmul.f32 %v2433, %v903
    %v2466 = vmul.f32 %v2434, %v903
    %v2467 = vmul.f32 %v2435, %v903
    %v2468 = vmul.f32 %v2436, %v903
    %v2469 = vmul.f32 %v2437, %v903
    %v2470 = vmul.f32 %v2438, %v903
    %v2471 = vmul.f32 %v2439, %v903
    %v2472 = vmul.f32 %v2440, %v903
    %v2473 = vmul.f32 %v2441, %v903
    %v2474 = vmul.f32 %v2442, %v903
    %v2475 = verf.f32.pop %v2459
    %v2476 = verf.f32.pop %v2460
    %v2477 = verf.f32.pop %v2461
    %v2478 = verf.f32.pop %v2462
    %v2479 = verf.f32.pop %v2463
    %v2480 = verf.f32.pop %v2464
    %v2481 = verf.f32.pop %v2465
    %v2482 = verf.f32.pop %v2466
    %v2483 = verf.f32.pop %v2467
    %v2484 = verf.f32.pop %v2468
    %v2485 = verf.f32.pop %v2469
    %v2486 = verf.f32.pop %v2470
    %v2487 = verf.f32.pop %v2471
    %v2488 = verf.f32.pop %v2472
    %v2489 = verf.f32.pop %v2473
    %v2490 = verf.f32.pop %v2474
    %v2491 = vadd.f32 %v2475, 1.0
    %v2492 = vadd.f32 %v2476, 1.0
    %v2493 = vadd.f32 %v2477, 1.0
    %v2494 = vadd.f32 %v2478, 1.0
    %v2495 = vadd.f32 %v2479, 1.0
    %v2496 = vadd.f32 %v2480, 1.0
    %v2497 = vadd.f32 %v2481, 1.0
    %v2498 = vadd.f32 %v2482, 1.0
    %v2499 = vadd.f32 %v2483, 1.0
    %v2500 = vadd.f32 %v2484, 1.0
    %v2501 = vadd.f32 %v2485, 1.0
    %v2502 = vadd.f32 %v2486, 1.0
    %v2503 = vadd.f32 %v2487, 1.0
    %v2504 = vadd.f32 %v2488, 1.0
    %v2505 = vadd.f32 %v2489, 1.0
    %v2506 = vadd.f32 %v2490, 1.0
    %v2507 = vmul.f32 %v2443, %v2491
    %v2508 = vmul.f32 %v2444, %v2492
    %v2509 = vmul.f32 %v2445, %v2493
    %v2510 = vmul.f32 %v2446, %v2494
    %v2511 = vmul.f32 %v2447, %v2495
    %v2512 = vmul.f32 %v2448, %v2496
    %v2513 = vmul.f32 %v2449, %v2497
    %v2514 = vmul.f32 %v2450, %v2498
    %v2515 = vmul.f32 %v2451, %v2499
    %v2516 = vmul.f32 %v2452, %v2500
    %v2517 = vmul.f32 %v2453, %v2501
    %v2518 = vmul.f32 %v2454, %v2502
    %v2519 = vmul.f32 %v2455, %v2503
    %v2520 = vmul.f32 %v2456, %v2504
    %v2521 = vmul.f32 %v2457, %v2505
    %v2522 = vmul.f32 %v2458, %v2506
    %s2523 = scalar_lea.vmem [#allocation7], 384
    %v2524 = vld [vmem:[%s2523] sm:$0xf]
    %v2525 = vld [vmem:[%s2523 + $0x4] sm:$0xf]
    %v2526 = vld [vmem:[%s2523 + $0x8] sm:$0xf]
    %v2527 = vld [vmem:[%s2523 + $0xc] sm:$0xf]
    %v2528 = vld [vmem:[%s2523 + $0x10] sm:$0xf]
    %v2529 = vld [vmem:[%s2523 + $0x14] sm:$0xf]
    %v2530 = vld [vmem:[%s2523 + $0x18] sm:$0xf]
    %v2531 = vld [vmem:[%s2523 + $0x1c] sm:$0xf]
    %v2532 = vld [vmem:[%s2523 + $0x20] sm:$0xf]
    %v2533 = vld [vmem:[%s2523 + $0x24] sm:$0xf]
    %v2534 = vld [vmem:[%s2523 + $0x28] sm:$0xf]
    %v2535 = vld [vmem:[%s2523 + $0x2c] sm:$0xf]
    %v2536 = vld [vmem:[%s2523 + $0x30] sm:$0xf]
    %v2537 = vld [vmem:[%s2523 + $0x34] sm:$0xf]
    %v2538 = vld [vmem:[%s2523 + $0x38] sm:$0xf]
    %v2539 = vld [vmem:[%s2523 + $0x3c] sm:$0xf]
    %s2540 = scalar_lea.vmem [#allocation7], 448
    %v2541 = vld [vmem:[%s2540] sm:$0xf]
    %v2542 = vld [vmem:[%s2540 + $0x4] sm:$0xf]
    %v2543 = vld [vmem:[%s2540 + $0x8] sm:$0xf]
    %v2544 = vld [vmem:[%s2540 + $0xc] sm:$0xf]
    %v2545 = vld [vmem:[%s2540 + $0x10] sm:$0xf]
    %v2546 = vld [vmem:[%s2540 + $0x14] sm:$0xf]
    %v2547 = vld [vmem:[%s2540 + $0x18] sm:$0xf]
    %v2548 = vld [vmem:[%s2540 + $0x1c] sm:$0xf]
    %v2549 = vld [vmem:[%s2540 + $0x20] sm:$0xf]
    %v2550 = vld [vmem:[%s2540 + $0x24] sm:$0xf]
    %v2551 = vld [vmem:[%s2540 + $0x28] sm:$0xf]
    %v2552 = vld [vmem:[%s2540 + $0x2c] sm:$0xf]
    %v2553 = vld [vmem:[%s2540 + $0x30] sm:$0xf]
    %v2554 = vld [vmem:[%s2540 + $0x34] sm:$0xf]
    %v2555 = vld [vmem:[%s2540 + $0x38] sm:$0xf]
    %v2556 = vld [vmem:[%s2540 + $0x3c] sm:$0xf]
    %s2557 = scalar_lea.vmem [#allocation7], 512
    %v2558 = vld [vmem:[%s2557] sm:$0xf]
    %v2559 = vld [vmem:[%s2557 + $0x4] sm:$0xf]
    %v2560 = vld [vmem:[%s2557 + $0x8] sm:$0xf]
    %v2561 = vld [vmem:[%s2557 + $0xc] sm:$0xf]
    %v2562 = vld [vmem:[%s2557 + $0x10] sm:$0xf]
    %v2563 = vld [vmem:[%s2557 + $0x14] sm:$0xf]
    %v2564 = vld [vmem:[%s2557 + $0x18] sm:$0xf]
    %v2565 = vld [vmem:[%s2557 + $0x1c] sm:$0xf]
    %v2566 = vld [vmem:[%s2557 + $0x20] sm:$0xf]
    %v2567 = vld [vmem:[%s2557 + $0x24] sm:$0xf]
    %v2568 = vld [vmem:[%s2557 + $0x28] sm:$0xf]
    %v2569 = vld [vmem:[%s2557 + $0x2c] sm:$0xf]
    %v2570 = vld [vmem:[%s2557 + $0x30] sm:$0xf]
    %v2571 = vld [vmem:[%s2557 + $0x34] sm:$0xf]
    %v2572 = vld [vmem:[%s2557 + $0x38] sm:$0xf]
    %v2573 = vld [vmem:[%s2557 + $0x3c] sm:$0xf]
    %v2590 = vunpack.c.l.b16 %v2524
    %v2591 = vunpack.c.l.b16 %v2525
    %v2592 = vunpack.c.l.b16 %v2526
    %v2593 = vunpack.c.l.b16 %v2527
    %v2594 = vunpack.c.l.b16 %v2528
    %v2595 = vunpack.c.l.b16 %v2529
    %v2596 = vunpack.c.l.b16 %v2530
    %v2597 = vunpack.c.l.b16 %v2531
    %v2598 = vunpack.c.l.b16 %v2532
    %v2599 = vunpack.c.l.b16 %v2533
    %v2600 = vunpack.c.l.b16 %v2534
    %v2601 = vunpack.c.l.b16 %v2535
    %v2602 = vunpack.c.l.b16 %v2536
    %v2603 = vunpack.c.l.b16 %v2537
    %v2604 = vunpack.c.l.b16 %v2538
    %v2605 = vunpack.c.l.b16 %v2539
    %v2606 = vpack.c.b16 %v2591, %v2590
    %v2607 = vpack.c.b16 %v2593, %v2592
    %v2608 = vpack.c.b16 %v2595, %v2594
    %v2609 = vpack.c.b16 %v2597, %v2596
    %v2610 = vpack.c.b16 %v2599, %v2598
    %v2611 = vpack.c.b16 %v2601, %v2600
    %v2612 = vpack.c.b16 %v2603, %v2602
    %v2613 = vpack.c.b16 %v2605, %v2604
    %2622 = vmatprep.subr.bf16.mxu0 0
    %2623 = vmatpush1.bf16.msra.mxu0 %v2606
    %2624 = vmatprep.subr.bf16.mxu0 0
    %2625 = vmatpush1.bf16.msra.mxu0 %v2607
    %2626 = vmatprep.subr.bf16.mxu0 0
    %2627 = vmatpush1.bf16.msra.mxu0 %v2608
    %2628 = vmatprep.subr.bf16.mxu0 0
    %2629 = vmatpush1.bf16.msra.mxu0 %v2609
    %2630 = vmatprep.subr.bf16.mxu0 0
    %2631 = vmatpush1.bf16.msra.mxu0 %v2610
    %2632 = vmatprep.subr.bf16.mxu0 0
    %2633 = vmatpush1.bf16.msra.mxu0 %v2611
    %2634 = vmatprep.subr.bf16.mxu0 0
    %2635 = vmatpush1.bf16.msra.mxu0 %v2612
    %2636 = vmatprep.subr.bf16.mxu0 0
    %2637 = vmatpush1.bf16.msra.mxu0 %v2613
    %2638 = vmatprep.subr.bf16.mxu0 0
    %2639 = vmatpush1.bf16.msra.mxu0 0
    %2640 = vmatprep.subr.bf16.mxu0 0
    %2641 = vmatpush1.bf16.msra.mxu0 0
    %2642 = vmatprep.subr.bf16.mxu0 0
    %2643 = vmatpush1.bf16.msra.mxu0 0
    %2644 = vmatprep.subr.bf16.mxu0 0
    %2645 = vmatpush1.bf16.msra.mxu0 0
    %2646 = vmatprep.subr.bf16.mxu0 0
    %2647 = vmatpush1.bf16.msra.mxu0 0
    %2648 = vmatprep.subr.bf16.mxu0 0
    %2649 = vmatpush1.bf16.msra.mxu0 0
    %2650 = vmatprep.subr.bf16.mxu0 0
    %2651 = vmatpush1.bf16.msra.mxu0 0
    %2652 = vmatprep.subr.bf16.mxu0 0
    %2653 = vmatpush1.bf16.msra.mxu0 0
    %2654 = vmatprep.mubr.bf16.mxu0 0
    %2655 = vmatmul.mubr.bf16.gmra.mrb[0].mxu0 %v173
    %v2656 = vpop.f32.mrb[0].mxu0
    %v2657 = vadd.f32 0.0, %v2656
    %v2658 = vpop.f32.mrb[0].mxu0
    %v2659 = vpop.f32.mrb[0].mxu0
    %v2660 = vadd.f32 0.0, %v2659
    %v2661 = vpop.f32.mrb[0].mxu0
    %2662 = vmatprep.mubr.bf16.mxu0 0
    %2663 = vmatmul.mubr.bf16.gmra.mrb[0].mxu0 %v174
    %v2664 = vpop.f32.mrb[0].mxu0
    %v2665 = vadd.f32 0.0, %v2664
    %v2666 = vpop.f32.mrb[0].mxu0
    %v2667 = vpop.f32.mrb[0].mxu0
    %v2668 = vadd.f32 0.0, %v2667
    %v2669 = vpop.f32.mrb[0].mxu0
    %2670 = vmatprep.mubr.bf16.mxu0 0
    %2671 = vmatmul.mubr.bf16.gmra.mrb[0].mxu0 %v175
    %v2672 = vpop.f32.mrb[0].mxu0
    %v2673 = vadd.f32 0.0, %v2672
    %v2674 = vpop.f32.mrb[0].mxu0
    %v2675 = vpop.f32.mrb[0].mxu0
    %v2676 = vadd.f32 0.0, %v2675
    %v2677 = vpop.f32.mrb[0].mxu0
    %2678 = vmatprep.mubr.bf16.mxu0 0
    %2679 = vmatmul.mubr.bf16.gmra.mrb[0].mxu0 %v176
    %v2680 = vpop.f32.mrb[0].mxu0
    %v2681 = vadd.f32 0.0, %v2680
    %v2682 = vpop.f32.mrb[0].mxu0
    %v2683 = vpop.f32.mrb[0].mxu0
    %v2684 = vadd.f32 0.0, %v2683
    %v2685 = vpop.f32.mrb[0].mxu0
    %2686 = vmatprep.mubr.bf16.mxu0 0
    %2687 = vmatmul.mubr.bf16.gmra.mrb[0].mxu0 %v177
    %v2688 = vpop.f32.mrb[0].mxu0
    %v2689 = vadd.f32 0.0, %v2688
    %v2690 = vpop.f32.mrb[0].mxu0
    %v2691 = vpop.f32.mrb[0].mxu0
    %v2692 = vadd.f32 0.0, %v2691
    %v2693 = vpop.f32.mrb[0].mxu0
    %2694 = vmatprep.mubr.bf16.mxu0 0
    %2695 = vmatmul.mubr.bf16.gmra.mrb[0].mxu0 %v178
    %v2696 = vpop.f32.mrb[0].mxu0
    %v2697 = vadd.f32 0.0, %v2696
    %v2698 = vpop.f32.mrb[0].mxu0
    %v2699 = vpop.f32.mrb[0].mxu0
    %v2700 = vadd.f32 0.0, %v2699
    %v2701 = vpop.f32.mrb[0].mxu0
    %2702 = vmatprep.mubr.bf16.mxu0 0
    %2703 = vmatmul.mubr.bf16.gmra.mrb[0].mxu0 %v179
    %v2704 = vpop.f32.mrb[0].mxu0
    %v2705 = vadd.f32 0.0, %v2704
    %v2706 = vpop.f32.mrb[0].mxu0
    %v2707 = vpop.f32.mrb[0].mxu0
    %v2708 = vadd.f32 0.0, %v2707
    %v2709 = vpop.f32.mrb[0].mxu0
    %2710 = vmatprep.mubr.bf16.mxu0 0
    %2711 = vmatmul.mubr.bf16.gmra.mrb[0].mxu0 %v180
    %v2712 = vpop.f32.mrb[0].mxu0
    %v2713 = vadd.f32 0.0, %v2712
    %v2714 = vpop.f32.mrb[0].mxu0
    %v2715 = vpop.f32.mrb[0].mxu0
    %v2716 = vadd.f32 0.0, %v2715
    %v2717 = vpop.f32.mrb[0].mxu0
    %2718 = vdwg.mxu0
    %v2719 = vadd.f32 %v2507, %v2657
    %v2720 = vadd.f32 %v2508, %v2660
    %v2721 = vadd.f32 %v2509, %v2665
    %v2722 = vadd.f32 %v2510, %v2668
    %v2723 = vadd.f32 %v2511, %v2673
    %v2724 = vadd.f32 %v2512, %v2676
    %v2725 = vadd.f32 %v2513, %v2681
    %v2726 = vadd.f32 %v2514, %v2684
    %v2727 = vadd.f32 %v2515, %v2689
    %v2728 = vadd.f32 %v2516, %v2692
    %v2729 = vadd.f32 %v2517, %v2697
    %v2730 = vadd.f32 %v2518, %v2700
    %v2731 = vadd.f32 %v2519, %v2705
    %v2732 = vadd.f32 %v2520, %v2708
    %v2733 = vadd.f32 %v2521, %v2713
    %v2734 = vadd.f32 %v2522, %v2716
    %v2735 = vlaneseq
    %v2736 = vshrl.u32 %v2735, 7
    %v2737 = vsub.s32 1, %v2736
    %v2738 = vrot.slane %v107, %v2737
    %v2739 = vadd.f32 %v2719, %v2738
    %v2740 = vadd.f32 %v2720, %v2738
    %v2741 = vadd.f32 %v2721, %v2738
    %v2742 = vadd.f32 %v2722, %v2738
    %v2743 = vadd.f32 %v2723, %v2738
    %v2744 = vadd.f32 %v2724, %v2738
    %v2745 = vadd.f32 %v2725, %v2738
    %v2746 = vadd.f32 %v2726, %v2738
    %v2747 = vadd.f32 %v2727, %v2738
    %v2748 = vadd.f32 %v2728, %v2738
    %v2749 = vadd.f32 %v2729, %v2738
    %v2750 = vadd.f32 %v2730, %v2738
    %v2751 = vadd.f32 %v2731, %v2738
    %v2752 = vadd.f32 %v2732, %v2738
    %v2753 = vadd.f32 %v2733, %v2738
    %v2754 = vadd.f32 %v2734, %v2738
    %v2755 = vpack.c.bf16 %v2740, %v2739
    %v2756 = vpack.c.bf16 %v2742, %v2741
    %v2757 = vpack.c.bf16 %v2744, %v2743
    %v2758 = vpack.c.bf16 %v2746, %v2745
    %v2759 = vpack.c.bf16 %v2748, %v2747
    %v2760 = vpack.c.bf16 %v2750, %v2749
    %v2761 = vpack.c.bf16 %v2752, %v2751
    %v2762 = vpack.c.bf16 %v2754, %v2753
    %v2763 = vlaneseq
    %v2764 = vshrl.u32 %v2763, 7
    %v2765 = vsub.s32 2, %v2764
    %v2766 = vrot.slane %v107, %v2765
    %v2783 = vunpack.c.l.b16 %v2541
    %v2784 = vunpack.c.l.b16 %v2542
    %v2785 = vunpack.c.l.b16 %v2543
    %v2786 = vunpack.c.l.b16 %v2544
    %v2787 = vunpack.c.l.b16 %v2545
    %v2788 = vunpack.c.l.b16 %v2546
    %v2789 = vunpack.c.l.b16 %v2547
    %v2790 = vunpack.c.l.b16 %v2548
    %v2791 = vunpack.c.l.b16 %v2549
    %v2792 = vunpack.c.l.b16 %v2550
    %v2793 = vunpack.c.l.b16 %v2551
    %v2794 = vunpack.c.l.b16 %v2552
    %v2795 = vunpack.c.l.b16 %v2553
    %v2796 = vunpack.c.l.b16 %v2554
    %v2797 = vunpack.c.l.b16 %v2555
    %v2798 = vunpack.c.l.b16 %v2556
    %v2799 = vpack.c.b16 %v2784, %v2783
    %v2800 = vpack.c.b16 %v2786, %v2785
    %v2801 = vpack.c.b16 %v2788, %v2787
    %v2802 = vpack.c.b16 %v2790, %v2789
    %v2803 = vpack.c.b16 %v2792, %v2791
    %v2804 = vpack.c.b16 %v2794, %v2793
    %v2805 = vpack.c.b16 %v2796, %v2795
    %v2806 = vpack.c.b16 %v2798, %v2797
    %2815 = vmatprep.subr.bf16.mxu0 0
    %2816 = vmatpush1.bf16.msra.mxu0 %v2799
    %2817 = vmatprep.subr.bf16.mxu0 0
    %2818 = vmatpush1.bf16.msra.mxu0 %v2800
    %2819 = vmatprep.subr.bf16.mxu0 0
    %2820 = vmatpush1.bf16.msra.mxu0 %v2801
    %2821 = vmatprep.subr.bf16.mxu0 0
    %2822 = vmatpush1.bf16.msra.mxu0 %v2802
    %2823 = vmatprep.subr.bf16.mxu0 0
    %2824 = vmatpush1.bf16.msra.mxu0 %v2803
    %2825 = vmatprep.subr.bf16.mxu0 0
    %2826 = vmatpush1.bf16.msra.mxu0 %v2804
    %2827 = vmatprep.subr.bf16.mxu0 0
    %2828 = vmatpush1.bf16.msra.mxu0 %v2805
    %2829 = vmatprep.subr.bf16.mxu0 0
    %2830 = vmatpush1.bf16.msra.mxu0 %v2806
    %2831 = vmatprep.subr.bf16.mxu0 0
    %2832 = vmatpush1.bf16.msra.mxu0 0
    %2833 = vmatprep.subr.bf16.mxu0 0
    %2834 = vmatpush1.bf16.msra.mxu0 0
    %2835 = vmatprep.subr.bf16.mxu0 0
    %2836 = vmatpush1.bf16.msra.mxu0 0
    %2837 = vmatprep.subr.bf16.mxu0 0
    %2838 = vmatpush1.bf16.msra.mxu0 0
    %2839 = vmatprep.subr.bf16.mxu0 0
    %2840 = vmatpush1.bf16.msra.mxu0 0
    %2841 = vmatprep.subr.bf16.mxu0 0
    %2842 = vmatpush1.bf16.msra.mxu0 0
    %2843 = vmatprep.subr.bf16.mxu0 0
    %2844 = vmatpush1.bf16.msra.mxu0 0
    %2845 = vmatprep.subr.bf16.mxu0 0
    %2846 = vmatpush1.bf16.msra.mxu0 0
    %2847 = vmatprep.mubr.bf16.mxu0 0
    %2848 = vmatmul.mubr.bf16.gmra.mrb[0].mxu0 %v2755
    %v2849 = vpop.f32.mrb[0].mxu0
    %v2850 = vadd.f32 %v2766, %v2849
    %v2851 = vpop.f32.mrb[0].mxu0
    %v2852 = vpop.f32.mrb[0].mxu0
    %v2853 = vadd.f32 %v2766, %v2852
    %v2854 = vpop.f32.mrb[0].mxu0
    %2855 = vmatprep.mubr.bf16.mxu0 0
    %2856 = vmatmul.mubr.bf16.gmra.mrb[0].mxu0 %v2756
    %v2857 = vpop.f32.mrb[0].mxu0
    %v2858 = vadd.f32 %v2766, %v2857
    %v2859 = vpop.f32.mrb[0].mxu0
    %v2860 = vpop.f32.mrb[0].mxu0
    %v2861 = vadd.f32 %v2766, %v2860
    %v2862 = vpop.f32.mrb[0].mxu0
    %2863 = vmatprep.mubr.bf16.mxu0 0
    %2864 = vmatmul.mubr.bf16.gmra.mrb[0].mxu0 %v2757
    %v2865 = vpop.f32.mrb[0].mxu0
    %v2866 = vadd.f32 %v2766, %v2865
    %v2867 = vpop.f32.mrb[0].mxu0
    %v2868 = vpop.f32.mrb[0].mxu0
    %v2869 = vadd.f32 %v2766, %v2868
    %v2870 = vpop.f32.mrb[0].mxu0
    %2871 = vmatprep.mubr.bf16.mxu0 0
    %2872 = vmatmul.mubr.bf16.gmra.mrb[0].mxu0 %v2758
    %v2873 = vpop.f32.mrb[0].mxu0
    %v2874 = vadd.f32 %v2766, %v2873
    %v2875 = vpop.f32.mrb[0].mxu0
    %v2876 = vpop.f32.mrb[0].mxu0
    %v2877 = vadd.f32 %v2766, %v2876
    %v2878 = vpop.f32.mrb[0].mxu0
    %2879 = vmatprep.mubr.bf16.mxu0 0
    %2880 = vmatmul.mubr.bf16.gmra.mrb[0].mxu0 %v2759
    %v2881 = vpop.f32.mrb[0].mxu0
    %v2882 = vadd.f32 %v2766, %v2881
    %v2883 = vpop.f32.mrb[0].mxu0
    %v2884 = vpop.f32.mrb[0].mxu0
    %v2885 = vadd.f32 %v2766, %v2884
    %v2886 = vpop.f32.mrb[0].mxu0
    %2887 = vmatprep.mubr.bf16.mxu0 0
    %2888 = vmatmul.mubr.bf16.gmra.mrb[0].mxu0 %v2760
    %v2889 = vpop.f32.mrb[0].mxu0
    %v2890 = vadd.f32 %v2766, %v2889
    %v2891 = vpop.f32.mrb[0].mxu0
    %v2892 = vpop.f32.mrb[0].mxu0
    %v2893 = vadd.f32 %v2766, %v2892
    %v2894 = vpop.f32.mrb[0].mxu0
    %2895 = vmatprep.mubr.bf16.mxu0 0
    %2896 = vmatmul.mubr.bf16.gmra.mrb[0].mxu0 %v2761
    %v2897 = vpop.f32.mrb[0].mxu0
    %v2898 = vadd.f32 %v2766, %v2897
    %v2899 = vpop.f32.mrb[0].mxu0
    %v2900 = vpop.f32.mrb[0].mxu0
    %v2901 = vadd.f32 %v2766, %v2900
    %v2902 = vpop.f32.mrb[0].mxu0
    %2903 = vmatprep.mubr.bf16.mxu0 0
    %2904 = vmatmul.mubr.bf16.gmra.mrb[0].mxu0 %v2762
    %v2905 = vpop.f32.mrb[0].mxu0
    %v2906 = vadd.f32 %v2766, %v2905
    %v2907 = vpop.f32.mrb[0].mxu0
    %v2908 = vpop.f32.mrb[0].mxu0
    %v2909 = vadd.f32 %v2766, %v2908
    %v2910 = vpop.f32.mrb[0].mxu0
    %2911 = vdwg.mxu0
    %v2912 = vmul.f32 %v2850, 0.5
    %v2913 = vmul.f32 %v2853, 0.5
    %v2914 = vmul.f32 %v2858, 0.5
    %v2915 = vmul.f32 %v2861, 0.5
    %v2916 = vmul.f32 %v2866, 0.5
    %v2917 = vmul.f32 %v2869, 0.5
    %v2918 = vmul.f32 %v2874, 0.5
    %v2919 = vmul.f32 %v2877, 0.5
    %v2920 = vmul.f32 %v2882, 0.5
    %v2921 = vmul.f32 %v2885, 0.5
    %v2922 = vmul.f32 %v2890, 0.5
    %v2923 = vmul.f32 %v2893, 0.5
    %v2924 = vmul.f32 %v2898, 0.5
    %v2925 = vmul.f32 %v2901, 0.5
    %v2926 = vmul.f32 %v2906, 0.5
    %v2927 = vmul.f32 %v2909, 0.5
    %v2928 = vmul.f32 %v2850, %v903
    %v2929 = vmul.f32 %v2853, %v903
    %v2930 = vmul.f32 %v2858, %v903
    %v2931 = vmul.f32 %v2861, %v903
    %v2932 = vmul.f32 %v2866, %v903
    %v2933 = vmul.f32 %v2869, %v903
    %v2934 = vmul.f32 %v2874, %v903
    %v2935 = vmul.f32 %v2877, %v903
    %v2936 = vmul.f32 %v2882, %v903
    %v2937 = vmul.f32 %v2885, %v903
    %v2938 = vmul.f32 %v2890, %v903
    %v2939 = vmul.f32 %v2893, %v903
    %v2940 = vmul.f32 %v2898, %v903
    %v2941 = vmul.f32 %v2901, %v903
    %v2942 = vmul.f32 %v2906, %v903
    %v2943 = vmul.f32 %v2909, %v903
    %v2944 = verf.f32.pop %v2928
    %v2945 = verf.f32.pop %v2929
    %v2946 = verf.f32.pop %v2930
    %v2947 = verf.f32.pop %v2931
    %v2948 = verf.f32.pop %v2932
    %v2949 = verf.f32.pop %v2933
    %v2950 = verf.f32.pop %v2934
    %v2951 = verf.f32.pop %v2935
    %v2952 = verf.f32.pop %v2936
    %v2953 = verf.f32.pop %v2937
    %v2954 = verf.f32.pop %v2938
    %v2955 = verf.f32.pop %v2939
    %v2956 = verf.f32.pop %v2940
    %v2957 = verf.f32.pop %v2941
    %v2958 = verf.f32.pop %v2942
    %v2959 = verf.f32.pop %v2943
    %v2960 = vadd.f32 %v2944, 1.0
    %v2961 = vadd.f32 %v2945, 1.0
    %v2962 = vadd.f32 %v2946, 1.0
    %v2963 = vadd.f32 %v2947, 1.0
    %v2964 = vadd.f32 %v2948, 1.0
    %v2965 = vadd.f32 %v2949, 1.0
    %v2966 = vadd.f32 %v2950, 1.0
    %v2967 = vadd.f32 %v2951, 1.0
    %v2968 = vadd.f32 %v2952, 1.0
    %v2969 = vadd.f32 %v2953, 1.0
    %v2970 = vadd.f32 %v2954, 1.0
    %v2971 = vadd.f32 %v2955, 1.0
    %v2972 = vadd.f32 %v2956, 1.0
    %v2973 = vadd.f32 %v2957, 1.0
    %v2974 = vadd.f32 %v2958, 1.0
    %v2975 = vadd.f32 %v2959, 1.0
    %v2976 = vmul.f32 %v2912, %v2960
    %v2977 = vmul.f32 %v2913, %v2961
    %v2978 = vmul.f32 %v2914, %v2962
    %v2979 = vmul.f32 %v2915, %v2963
    %v2980 = vmul.f32 %v2916, %v2964
    %v2981 = vmul.f32 %v2917, %v2965
    %v2982 = vmul.f32 %v2918, %v2966
    %v2983 = vmul.f32 %v2919, %v2967
    %v2984 = vmul.f32 %v2920, %v2968
    %v2985 = vmul.f32 %v2921, %v2969
    %v2986 = vmul.f32 %v2922, %v2970
    %v2987 = vmul.f32 %v2923, %v2971
    %v2988 = vmul.f32 %v2924, %v2972
    %v2989 = vmul.f32 %v2925, %v2973
    %v2990 = vmul.f32 %v2926, %v2974
    %v2991 = vmul.f32 %v2927, %v2975
    %v2992 = vpack.c.bf16 %v2977, %v2976
    %v2993 = vpack.c.bf16 %v2979, %v2978
    %v2994 = vpack.c.bf16 %v2981, %v2980
    %v2995 = vpack.c.bf16 %v2983, %v2982
    %v2996 = vpack.c.bf16 %v2985, %v2984
    %v2997 = vpack.c.bf16 %v2987, %v2986
    %v2998 = vpack.c.bf16 %v2989, %v2988
    %v2999 = vpack.c.bf16 %v2991, %v2990
    %v3000 = vlaneseq
    %v3001 = vshrl.u32 %v3000, 7
    %v3002 = vsub.s32 3, %v3001
    %v3003 = vrot.slane %v107, %v3002
    %v3020 = vunpack.c.l.b16 %v2558
    %v3021 = vunpack.c.l.b16 %v2559
    %v3022 = vunpack.c.l.b16 %v2560
    %v3023 = vunpack.c.l.b16 %v2561
    %v3024 = vunpack.c.l.b16 %v2562
    %v3025 = vunpack.c.l.b16 %v2563
    %v3026 = vunpack.c.l.b16 %v2564
    %v3027 = vunpack.c.l.b16 %v2565
    %v3028 = vunpack.c.l.b16 %v2566
    %v3029 = vunpack.c.l.b16 %v2567
    %v3030 = vunpack.c.l.b16 %v2568
    %v3031 = vunpack.c.l.b16 %v2569
    %v3032 = vunpack.c.l.b16 %v2570
    %v3033 = vunpack.c.l.b16 %v2571
    %v3034 = vunpack.c.l.b16 %v2572
    %v3035 = vunpack.c.l.b16 %v2573
    %v3036 = vpack.c.b16 %v3021, %v3020
    %v3037 = vpack.c.b16 %v3023, %v3022
    %v3038 = vpack.c.b16 %v3025, %v3024
    %v3039 = vpack.c.b16 %v3027, %v3026
    %v3040 = vpack.c.b16 %v3029, %v3028
    %v3041 = vpack.c.b16 %v3031, %v3030
    %v3042 = vpack.c.b16 %v3033, %v3032
    %v3043 = vpack.c.b16 %v3035, %v3034
    %3052 = vmatprep.subr.bf16.mxu0 0
    %3053 = vmatpush1.bf16.msra.mxu0 %v3036
    %3054 = vmatprep.subr.bf16.mxu0 0
    %3055 = vmatpush1.bf16.msra.mxu0 %v3037
    %3056 = vmatprep.subr.bf16.mxu0 0
    %3057 = vmatpush1.bf16.msra.mxu0 %v3038
    %3058 = vmatprep.subr.bf16.mxu0 0
    %3059 = vmatpush1.bf16.msra.mxu0 %v3039
    %3060 = vmatprep.subr.bf16.mxu0 0
    %3061 = vmatpush1.bf16.msra.mxu0 %v3040
    %3062 = vmatprep.subr.bf16.mxu0 0
    %3063 = vmatpush1.bf16.msra.mxu0 %v3041
    %3064 = vmatprep.subr.bf16.mxu0 0
    %3065 = vmatpush1.bf16.msra.mxu0 %v3042
    %3066 = vmatprep.subr.bf16.mxu0 0
    %3067 = vmatpush1.bf16.msra.mxu0 %v3043
    %3068 = vmatprep.subr.bf16.mxu0 0
    %3069 = vmatpush1.bf16.msra.mxu0 0
    %3070 = vmatprep.subr.bf16.mxu0 0
    %3071 = vmatpush1.bf16.msra.mxu0 0
    %3072 = vmatprep.subr.bf16.mxu0 0
    %3073 = vmatpush1.bf16.msra.mxu0 0
    %3074 = vmatprep.subr.bf16.mxu0 0
    %3075 = vmatpush1.bf16.msra.mxu0 0
    %3076 = vmatprep.subr.bf16.mxu0 0
    %3077 = vmatpush1.bf16.msra.mxu0 0
    %3078 = vmatprep.subr.bf16.mxu0 0
    %3079 = vmatpush1.bf16.msra.mxu0 0
    %3080 = vmatprep.subr.bf16.mxu0 0
    %3081 = vmatpush1.bf16.msra.mxu0 0
    %3082 = vmatprep.subr.bf16.mxu0 0
    %3083 = vmatpush1.bf16.msra.mxu0 0
    %3084 = vmatprep.mubr.bf16.mxu0 0
    %3085 = vmatmul.mubr.bf16.gmra.mrb[0].mxu0 %v2992
    %v3086 = vpop.f32.mrb[0].mxu0
    %v3087 = vadd.f32 %v3003, %v3086
    %v3088 = vpop.f32.mrb[0].mxu0
    %v3089 = vpop.f32.mrb[0].mxu0
    %v3090 = vadd.f32 %v3003, %v3089
    %v3091 = vpop.f32.mrb[0].mxu0
    %3092 = vmatprep.mubr.bf16.mxu0 0
    %3093 = vmatmul.mubr.bf16.gmra.mrb[0].mxu0 %v2993
    %v3094 = vpop.f32.mrb[0].mxu0
    %v3095 = vadd.f32 %v3003, %v3094
    %v3096 = vpop.f32.mrb[0].mxu0
    %v3097 = vpop.f32.mrb[0].mxu0
    %v3098 = vadd.f32 %v3003, %v3097
    %v3099 = vpop.f32.mrb[0].mxu0
    %3100 = vmatprep.mubr.bf16.mxu0 0
    %3101 = vmatmul.mubr.bf16.gmra.mrb[0].mxu0 %v2994
    %v3102 = vpop.f32.mrb[0].mxu0
    %v3103 = vadd.f32 %v3003, %v3102
    %v3104 = vpop.f32.mrb[0].mxu0
    %v3105 = vpop.f32.mrb[0].mxu0
    %v3106 = vadd.f32 %v3003, %v3105
    %v3107 = vpop.f32.mrb[0].mxu0
    %3108 = vmatprep.mubr.bf16.mxu0 0
    %3109 = vmatmul.mubr.bf16.gmra.mrb[0].mxu0 %v2995
    %v3110 = vpop.f32.mrb[0].mxu0
    %v3111 = vadd.f32 %v3003, %v3110
    %v3112 = vpop.f32.mrb[0].mxu0
    %v3113 = vpop.f32.mrb[0].mxu0
    %v3114 = vadd.f32 %v3003, %v3113
    %v3115 = vpop.f32.mrb[0].mxu0
    %3116 = vmatprep.mubr.bf16.mxu0 0
    %3117 = vmatmul.mubr.bf16.gmra.mrb[0].mxu0 %v2996
    %v3118 = vpop.f32.mrb[0].mxu0
    %v3119 = vadd.f32 %v3003, %v3118
    %v3120 = vpop.f32.mrb[0].mxu0
    %v3121 = vpop.f32.mrb[0].mxu0
    %v3122 = vadd.f32 %v3003, %v3121
    %v3123 = vpop.f32.mrb[0].mxu0
    %3124 = vmatprep.mubr.bf16.mxu0 0
    %3125 = vmatmul.mubr.bf16.gmra.mrb[0].mxu0 %v2997
    %v3126 = vpop.f32.mrb[0].mxu0
    %v3127 = vadd.f32 %v3003, %v3126
    %v3128 = vpop.f32.mrb[0].mxu0
    %v3129 = vpop.f32.mrb[0].mxu0
    %v3130 = vadd.f32 %v3003, %v3129
    %v3131 = vpop.f32.mrb[0].mxu0
    %3132 = vmatprep.mubr.bf16.mxu0 0
    %3133 = vmatmul.mubr.bf16.gmra.mrb[0].mxu0 %v2998
    %v3134 = vpop.f32.mrb[0].mxu0
    %v3135 = vadd.f32 %v3003, %v3134
    %v3136 = vpop.f32.mrb[0].mxu0
    %v3137 = vpop.f32.mrb[0].mxu0
    %v3138 = vadd.f32 %v3003, %v3137
    %v3139 = vpop.f32.mrb[0].mxu0
    %3140 = vmatprep.mubr.bf16.mxu0 0
    %3141 = vmatmul.mubr.bf16.gmra.mrb[0].mxu0 %v2999
    %v3142 = vpop.f32.mrb[0].mxu0
    %v3143 = vadd.f32 %v3003, %v3142
    %v3144 = vpop.f32.mrb[0].mxu0
    %v3145 = vpop.f32.mrb[0].mxu0
    %v3146 = vadd.f32 %v3003, %v3145
    %v3147 = vpop.f32.mrb[0].mxu0
    %3148 = vdwg.mxu0
    %vm3149 = vcmp.lt.s32.totalorder %v701, 4
    %v3150 = vsel %vm3149, %v3087, -1e+30
    %v3151 = vsel %vm3149, %v3090, -1e+30
    %v3152 = vsel %vm3149, %v3095, -1e+30
    %v3153 = vsel %vm3149, %v3098, -1e+30
    %v3154 = vsel %vm3149, %v3103, -1e+30
    %v3155 = vsel %vm3149, %v3106, -1e+30
    %v3156 = vsel %vm3149, %v3111, -1e+30
    %v3157 = vsel %vm3149, %v3114, -1e+30
    %v3158 = vsel %vm3149, %v3119, -1e+30
    %v3159 = vsel %vm3149, %v3122, -1e+30
    %v3160 = vsel %vm3149, %v3127, -1e+30
    %v3161 = vsel %vm3149, %v3130, -1e+30
    %v3162 = vsel %vm3149, %v3135, -1e+30
    %v3163 = vsel %vm3149, %v3138, -1e+30
    %v3164 = vsel %vm3149, %v3143, -1e+30
    %v3165 = vsel %vm3149, %v3146, -1e+30
    %3166 = vmax.xlane.f32.xlu0 %v3150
    %v3167 = vpop.xlane.xlu0 %3166
    %3168 = vmax.xlane.f32.xlu0 %v3151
    %v3169 = vpop.xlane.xlu0 %3168
    %3170 = vmax.xlane.f32.xlu0 %v3152
    %v3171 = vpop.xlane.xlu0 %3170
    %3172 = vmax.xlane.f32.xlu0 %v3153
    %v3173 = vpop.xlane.xlu0 %3172
    %3174 = vmax.xlane.f32.xlu0 %v3154
    %v3175 = vpop.xlane.xlu0 %3174
    %3176 = vmax.xlane.f32.xlu0 %v3155
    %v3177 = vpop.xlane.xlu0 %3176
    %3178 = vmax.xlane.f32.xlu0 %v3156
    %v3179 = vpop.xlane.xlu0 %3178
    %3180 = vmax.xlane.f32.xlu0 %v3157
    %v3181 = vpop.xlane.xlu0 %3180
    %3182 = vmax.xlane.f32.xlu0 %v3158
    %v3183 = vpop.xlane.xlu0 %3182
    %3184 = vmax.xlane.f32.xlu0 %v3159
    %v3185 = vpop.xlane.xlu0 %3184
    %3186 = vmax.xlane.f32.xlu0 %v3160
    %v3187 = vpop.xlane.xlu0 %3186
    %3188 = vmax.xlane.f32.xlu0 %v3161
    %v3189 = vpop.xlane.xlu0 %3188
    %3190 = vmax.xlane.f32.xlu0 %v3162
    %v3191 = vpop.xlane.xlu0 %3190
    %3192 = vmax.xlane.f32.xlu0 %v3163
    %v3193 = vpop.xlane.xlu0 %3192
    %3194 = vmax.xlane.f32.xlu0 %v3164
    %v3195 = vpop.xlane.xlu0 %3194
    %3196 = vmax.xlane.f32.xlu0 %v3165
    %v3197 = vpop.xlane.xlu0 %3196
    %v3198 = vsub.f32 %v3150, %v3167
    %v3199 = vsub.f32 %v3151, %v3169
    %v3200 = vsub.f32 %v3152, %v3171
    %v3201 = vsub.f32 %v3153, %v3173
    %v3202 = vsub.f32 %v3154, %v3175
    %v3203 = vsub.f32 %v3155, %v3177
    %v3204 = vsub.f32 %v3156, %v3179
    %v3205 = vsub.f32 %v3157, %v3181
    %v3206 = vsub.f32 %v3158, %v3183
    %v3207 = vsub.f32 %v3159, %v3185
    %v3208 = vsub.f32 %v3160, %v3187
    %v3209 = vsub.f32 %v3161, %v3189
    %v3210 = vsub.f32 %v3162, %v3191
    %v3211 = vsub.f32 %v3163, %v3193
    %v3212 = vsub.f32 %v3164, %v3195
    %v3213 = vsub.f32 %v3165, %v3197
    %v3214 = vmul.f32 %v3198, 1.442695
    %v3215 = vpow.pop %v3214
    %v3216 = vmul.f32 %v3199, 1.442695
    %v3217 = vpow.pop %v3216
    %v3218 = vmul.f32 %v3200, 1.442695
    %v3219 = vpow.pop %v3218
    %v3220 = vmul.f32 %v3201, 1.442695
    %v3221 = vpow.pop %v3220
    %v3222 = vmul.f32 %v3202, 1.442695
    %v3223 = vpow.pop %v3222
    %v3224 = vmul.f32 %v3203, 1.442695
    %v3225 = vpow.pop %v3224
    %v3226 = vmul.f32 %v3204, 1.442695
    %v3227 = vpow.pop %v3226
    %v3228 = vmul.f32 %v3205, 1.442695
    %v3229 = vpow.pop %v3228
    %v3230 = vmul.f32 %v3206, 1.442695
    %v3231 = vpow.pop %v3230
    %v3232 = vmul.f32 %v3207, 1.442695
    %v3233 = vpow.pop %v3232
    %v3234 = vmul.f32 %v3208, 1.442695
    %v3235 = vpow.pop %v3234
    %v3236 = vmul.f32 %v3209, 1.442695
    %v3237 = vpow.pop %v3236
    %v3238 = vmul.f32 %v3210, 1.442695
    %v3239 = vpow.pop %v3238
    %v3240 = vmul.f32 %v3211, 1.442695
    %v3241 = vpow.pop %v3240
    %v3242 = vmul.f32 %v3212, 1.442695
    %v3243 = vpow.pop %v3242
    %v3244 = vmul.f32 %v3213, 1.442695
    %v3245 = vpow.pop %v3244
    %v3246 = vsel %vm3149, %v3215, 0.0
    %v3247 = vsel %vm3149, %v3217, 0.0
    %v3248 = vsel %vm3149, %v3219, 0.0
    %v3249 = vsel %vm3149, %v3221, 0.0
    %v3250 = vsel %vm3149, %v3223, 0.0
    %v3251 = vsel %vm3149, %v3225, 0.0
    %v3252 = vsel %vm3149, %v3227, 0.0
    %v3253 = vsel %vm3149, %v3229, 0.0
    %v3254 = vsel %vm3149, %v3231, 0.0
    %v3255 = vsel %vm3149, %v3233, 0.0
    %v3256 = vsel %vm3149, %v3235, 0.0
    %v3257 = vsel %vm3149, %v3237, 0.0
    %v3258 = vsel %vm3149, %v3239, 0.0
    %v3259 = vsel %vm3149, %v3241, 0.0
    %v3260 = vsel %vm3149, %v3243, 0.0
    %v3261 = vsel %vm3149, %v3245, 0.0
    %3262 = vadd.xlane.f32.xlu0 %v3246
    %v3263 = vpop.xlane.xlu0 %3262
    %3264 = vadd.xlane.f32.xlu0 %v3247
    %v3265 = vpop.xlane.xlu0 %3264
    %3266 = vadd.xlane.f32.xlu0 %v3248
    %v3267 = vpop.xlane.xlu0 %3266
    %3268 = vadd.xlane.f32.xlu0 %v3249
    %v3269 = vpop.xlane.xlu0 %3268
    %3270 = vadd.xlane.f32.xlu0 %v3250
    %v3271 = vpop.xlane.xlu0 %3270
    %3272 = vadd.xlane.f32.xlu0 %v3251
    %v3273 = vpop.xlane.xlu0 %3272
    %3274 = vadd.xlane.f32.xlu0 %v3252
    %v3275 = vpop.xlane.xlu0 %3274
    %3276 = vadd.xlane.f32.xlu0 %v3253
    %v3277 = vpop.xlane.xlu0 %3276
    %3278 = vadd.xlane.f32.xlu0 %v3254
    %v3279 = vpop.xlane.xlu0 %3278
    %3280 = vadd.xlane.f32.xlu0 %v3255
    %v3281 = vpop.xlane.xlu0 %3280
    %3282 = vadd.xlane.f32.xlu0 %v3256
    %v3283 = vpop.xlane.xlu0 %3282
    %3284 = vadd.xlane.f32.xlu0 %v3257
    %v3285 = vpop.xlane.xlu0 %3284
    %3286 = vadd.xlane.f32.xlu0 %v3258
    %v3287 = vpop.xlane.xlu0 %3286
    %3288 = vadd.xlane.f32.xlu0 %v3259
    %v3289 = vpop.xlane.xlu0 %3288
    %3290 = vadd.xlane.f32.xlu0 %v3260
    %v3291 = vpop.xlane.xlu0 %3290
    %3292 = vadd.xlane.f32.xlu0 %v3261
    %v3293 = vpop.xlane.xlu0 %3292
    %v3294 = vlog2.pop %v3263
    %v3295 = vmul.f32 %v3294, 0.6931472
    %v3296 = vlog2.pop %v3265
    %v3297 = vmul.f32 %v3296, 0.6931472
    %v3298 = vlog2.pop %v3267
    %v3299 = vmul.f32 %v3298, 0.6931472
    %v3300 = vlog2.pop %v3269
    %v3301 = vmul.f32 %v3300, 0.6931472
    %v3302 = vlog2.pop %v3271
    %v3303 = vmul.f32 %v3302, 0.6931472
    %v3304 = vlog2.pop %v3273
    %v3305 = vmul.f32 %v3304, 0.6931472
    %v3306 = vlog2.pop %v3275
    %v3307 = vmul.f32 %v3306, 0.6931472
    %v3308 = vlog2.pop %v3277
    %v3309 = vmul.f32 %v3308, 0.6931472
    %v3310 = vlog2.pop %v3279
    %v3311 = vmul.f32 %v3310, 0.6931472
    %v3312 = vlog2.pop %v3281
    %v3313 = vmul.f32 %v3312, 0.6931472
    %v3314 = vlog2.pop %v3283
    %v3315 = vmul.f32 %v3314, 0.6931472
    %v3316 = vlog2.pop %v3285
    %v3317 = vmul.f32 %v3316, 0.6931472
    %v3318 = vlog2.pop %v3287
    %v3319 = vmul.f32 %v3318, 0.6931472
    %v3320 = vlog2.pop %v3289
    %v3321 = vmul.f32 %v3320, 0.6931472
    %v3322 = vlog2.pop %v3291
    %v3323 = vmul.f32 %v3322, 0.6931472
    %v3324 = vlog2.pop %v3293
    %v3325 = vmul.f32 %v3324, 0.6931472
    %v3326 = vadd.f32 %v3167, %v3295
    %v3327 = vadd.f32 %v3169, %v3297
    %v3328 = vadd.f32 %v3171, %v3299
    %v3329 = vadd.f32 %v3173, %v3301
    %v3330 = vadd.f32 %v3175, %v3303
    %v3331 = vadd.f32 %v3177, %v3305
    %v3332 = vadd.f32 %v3179, %v3307
    %v3333 = vadd.f32 %v3181, %v3309
    %v3334 = vadd.f32 %v3183, %v3311
    %v3335 = vadd.f32 %v3185, %v3313
    %v3336 = vadd.f32 %v3187, %v3315
    %v3337 = vadd.f32 %v3189, %v3317
    %v3338 = vadd.f32 %v3191, %v3319
    %v3339 = vadd.f32 %v3193, %v3321
    %v3340 = vadd.f32 %v3195, %v3323
    %v3341 = vadd.f32 %v3197, %v3325
    %v3342 = vsub.f32 %v3087, %v3326
    %v3343 = vsub.f32 %v3090, %v3327
    %v3344 = vsub.f32 %v3095, %v3328
    %v3345 = vsub.f32 %v3098, %v3329
    %v3346 = vsub.f32 %v3103, %v3330
    %v3347 = vsub.f32 %v3106, %v3331
    %v3348 = vsub.f32 %v3111, %v3332
    %v3349 = vsub.f32 %v3114, %v3333
    %v3350 = vsub.f32 %v3119, %v3334
    %v3351 = vsub.f32 %v3122, %v3335
    %v3352 = vsub.f32 %v3127, %v3336
    %v3353 = vsub.f32 %v3130, %v3337
    %v3354 = vsub.f32 %v3135, %v3338
    %v3355 = vsub.f32 %v3138, %v3339
    %v3356 = vsub.f32 %v3143, %v3340
    %v3357 = vsub.f32 %v3146, %v3341
    %v3358 = vsel %vm3149, %v3342, 0.0
    %v3359 = vsel %vm3149, %v3343, 0.0
    %v3360 = vsel %vm3149, %v3344, 0.0
    %v3361 = vsel %vm3149, %v3345, 0.0
    %v3362 = vsel %vm3149, %v3346, 0.0
    %v3363 = vsel %vm3149, %v3347, 0.0
    %v3364 = vsel %vm3149, %v3348, 0.0
    %v3365 = vsel %vm3149, %v3349, 0.0
    %v3366 = vsel %vm3149, %v3350, 0.0
    %v3367 = vsel %vm3149, %v3351, 0.0
    %v3368 = vsel %vm3149, %v3352, 0.0
    %v3369 = vsel %vm3149, %v3353, 0.0
    %v3370 = vsel %vm3149, %v3354, 0.0
    %v3371 = vsel %vm3149, %v3355, 0.0
    %v3372 = vsel %vm3149, %v3356, 0.0
    %v3373 = vsel %vm3149, %v3357, 0.0
    %3374 = vst [vmem:[#allocation10] sm:$0xff] %v3358
    %3375 = vst [vmem:[#allocation10 + $0x8] sm:$0xff] %v3359
    %3376 = vst [vmem:[#allocation10 + $0x10] sm:$0xff] %v3360
    %3377 = vst [vmem:[#allocation10 + $0x18] sm:$0xff] %v3361
    %3378 = vst [vmem:[#allocation10 + $0x20] sm:$0xff] %v3362
    %3379 = vst [vmem:[#allocation10 + $0x28] sm:$0xff] %v3363
    %3380 = vst [vmem:[#allocation10 + $0x30] sm:$0xff] %v3364
    %3381 = vst [vmem:[#allocation10 + $0x38] sm:$0xff] %v3365
    %3382 = vst [vmem:[#allocation10 + $0x40] sm:$0xff] %v3366
    %3383 = vst [vmem:[#allocation10 + $0x48] sm:$0xff] %v3367
    %3384 = vst [vmem:[#allocation10 + $0x50] sm:$0xff] %v3368
    %3385 = vst [vmem:[#allocation10 + $0x58] sm:$0xff] %v3369
    %3386 = vst [vmem:[#allocation10 + $0x60] sm:$0xff] %v3370
    %3387 = vst [vmem:[#allocation10 + $0x68] sm:$0xff] %v3371
    %3388 = vst [vmem:[#allocation10 + $0x70] sm:$0xff] %v3372
    %3389 = vst [vmem:[#allocation10 + $0x78] sm:$0xff] %v3373
    // Predicated region
    $region34: #{tpu_custom_call.1} parent=1 // pred_check
      _
    $region35: #{tpu_custom_call.1} parent=1 // pred_check_branch
      %3391 = sbr.rel (0) target = $region37
    $region36: #{tpu_custom_call.1} parent=1 // pred_region
      %s3393 = ssub.s32 2048, 2048
      %3394 = vsyncadd [#allocation4], %s3393
      %s3395 = sshll.u32 [#allocation10], 4
      %s3396 = int_to_ptr.vmem [resolvable:$true] %s3395
      %3401 = dma.vmem_to_hbm [thread:$0]  %s3396, 2048, %s4, [#allocation4], 128, 128, 8
    $region37: #{tpu_custom_call.1} parent=1 // pred_fallthru
      _
    // Predicated region
    $region38: #{tpu_custom_call.1} parent=1 // pred_check
      _
    $region39: #{tpu_custom_call.1} parent=1 // pred_check_branch
      %3403 = sbr.rel (0) target = $region41
    $region40: #{tpu_custom_call.1} parent=1 // pred_region
      %3404 = dma.done [#allocation4], 2048
    $region41: #{tpu_custom_call.1} parent=1 // pred_fallthru
      _
    %3405 = vsyncpa [#allocation3], 1
    %3406 = vsyncpa [#allocation6], 1
    %3407 = vsyncpa [#allocation9], 1
    %3408 = vsyncpa [#allocation4], 1

</llo_original>
